<compile_context>
chip_gen: v6e
topology: v6e:2x2x1
jax: 0.10.0
libtpu: 0.0.40
codegen_flags: <defaults>
</compile_context>

<pallas_src>
import functools

import numpy as np

import jax
import jax.numpy as jnp
from jax.experimental import pallas as pl
from jax.experimental.pallas import tpu as pltpu


# ---------------------------------------------------------------------------
# Fused Pallas kernel: whole DenseBlock_Drop forward for one image
# ---------------------------------------------------------------------------

def _dense_block_kernel(H, W, C,
                        x_ref, w3b_ref, b3_ref, w1k_ref, b1_ref,
                        wdbk_ref, bdb_ref, sce_ref, sco_ref, sre_ref, sro_ref,
                        pool_ref, skip_ref, xpad_ref):
    WC = W * C

    # Zero the padded scratch once per image; only the interior is rewritten
    # below, the 1-pixel halo stays zero (replaces 6 jnp.pad HBM round trips).
    xpad_ref[...] = jnp.zeros_like(xpad_ref)

    def conv3x3_bn_relu(a):
        # a: (H, W*C) f32.  Banded-matmul formulation of the 3x3 conv with
        # channel mixing; BN scale is already folded into the band weights.
        xpad_ref[1:H + 1, C:C + WC] = a
        acc = jnp.dot(xpad_ref[0:H, :], w3b_ref[0],
                      preferred_element_type=jnp.float32)
        acc += jnp.dot(xpad_ref[1:H + 1, :], w3b_ref[1],
                       preferred_element_type=jnp.float32)
        acc += jnp.dot(xpad_ref[2:H + 2, :], w3b_ref[2],
                       preferred_element_type=jnp.float32)
        return jnp.maximum(acc + b3_ref[...], 0.0)      # BN bias + ReLU

    def conv1x1_bn(a, wk_ref, b_ref):
        # 1x1 conv + BN as one lane-dense matmul against kron(I_W, w*scale).
        return jnp.dot(a, wk_ref[...],
                       preferred_element_type=jnp.float32) + b_ref[...]

    def rec_layer(a):
        reconv1 = conv3x3_bn_relu(a)                    # Dropout(0.2) = id
        layer_add = conv1x1_bn(a, w1k_ref, b1_ref)
        add_conv1 = jnp.maximum(reconv1 + layer_add, 0.0)
        reconv2 = conv3x3_bn_relu(add_conv1)
        add_conv2 = jnp.maximum(reconv2 + layer_add, 0.0)
        return conv3x3_bn_relu(add_conv2)               # Dropout(0.2) = id

    def maxpool2x2(a):
        # 2x2 / stride-2 max pool via 0/1 selection matmuls -> stays
        # lane-dense, no lane-sparse reshapes or strided relayouts.
        cols = jnp.maximum(
            jnp.dot(a, sce_ref[...], preferred_element_type=jnp.float32),
            jnp.dot(a, sco_ref[...], preferred_element_type=jnp.float32))
        return jnp.maximum(
            jnp.dot(sre_ref[...], cols, preferred_element_type=jnp.float32),
            jnp.dot(sro_ref[...], cols, preferred_element_type=jnp.float32))

    x = x_ref[0].astype(jnp.float32)                    # (H, W*C)

    conv4 = rec_layer(rec_layer(x))                     # shared weights, twice
    skip_ref[0] = conv4.astype(skip_ref.dtype)          # skip_connection

    conv4add = conv1x1_bn(x, wdbk_ref, bdb_ref)         # BN(conv(x))
    add4 = jnp.maximum(conv4add + conv4, 0.0)

    # torch.cat((add4, conv4), dim=channel) is realized by writing the two
    # pooled halves side-by-side along lanes; Dropout2d(0.5) = identity.
    pooled = jnp.concatenate([maxpool2x2(add4), maxpool2x2(conv4)], axis=1)
    pool_ref[0] = pooled.astype(pool_ref.dtype)


# ---------------------------------------------------------------------------
# pallas_call wrapper
# ---------------------------------------------------------------------------

def _fused_forward(x2d, p):
    B, H, WC = x2d.shape
    C = (p["w3band"].shape[1] - p["w3band"].shape[2]) // 2
    W = WC // C
    H2, W2 = H // 2, W // 2

    kernel = functools.partial(_dense_block_kernel, H, W, C)
    pool_flat, skip_flat = pl.pallas_call(
        kernel,
        out_shape=(
            jax.ShapeDtypeStruct((B, H2, 2 * W2 * C), x2d.dtype),   # pool
            jax.ShapeDtypeStruct((B, H, W * C), x2d.dtype),         # skip
        ),
        grid=(B,),
        in_specs=[
            pl.BlockSpec((1, H, W * C), lambda b: (b, 0, 0)),            # x
            pl.BlockSpec((3, (W + 2) * C, W * C), lambda b: (0, 0, 0)),  # w3band
            pl.BlockSpec((1, W * C), lambda b: (0, 0)),                  # b3
            pl.BlockSpec((W * C, W * C), lambda b: (0, 0)),              # w1k
            pl.BlockSpec((1, W * C), lambda b: (0, 0)),                  # b1
            pl.BlockSpec((W * C, W * C), lambda b: (0, 0)),              # wdbk
            pl.BlockSpec((1, W * C), lambda b: (0, 0)),                  # bdb
            pl.BlockSpec((W * C, W2 * C), lambda b: (0, 0)),             # sel_col_e
            pl.BlockSpec((W * C, W2 * C), lambda b: (0, 0)),             # sel_col_o
            pl.BlockSpec((H2, H), lambda b: (0, 0)),                     # sel_row_e
            pl.BlockSpec((H2, H), lambda b: (0, 0)),                     # sel_row_o
        ],
        out_specs=(
            pl.BlockSpec((1, H2, 2 * W2 * C), lambda b: (b, 0, 0)),
            pl.BlockSpec((1, H, W * C), lambda b: (b, 0, 0)),
        ),
        scratch_shapes=[pltpu.VMEM((H + 2, (W + 2) * C), jnp.float32)],
        compiler_params=pltpu.CompilerParams(
            dimension_semantics=("parallel",)),   # batch across TCs (v7x)
    )(x2d, p["w3band"], p["b3"], p["w1k"], p["b1"], p["wdbk"], p["bdb"],
      p["sel_col_e"], p["sel_col_o"], p["sel_row_e"], p["sel_row_o"])
    return pool_flat, skip_flat


@jax.jit
def dense_block_drop_forward(x_nchw, params):
    B, C, H, W = x_nchw.shape
    # single NCHW -> lane-dense (B, H, W*C) layout change (fused under jit)
    x2d = jnp.transpose(x_nchw, (0, 2, 3, 1)).reshape(B, H, W * C)
    pool_flat, skip_flat = _fused_forward(x2d, params)
    H2, W2 = H // 2, W // 2
    skip = jnp.transpose(skip_flat.reshape(B, H, W, C), (0, 3, 1, 2))
    pool4 = (pool_flat.reshape(B, H2, 2, W2, C)
             .transpose(0, 2, 4, 1, 3)        # (B, [add4|conv4], C, H2, W2)
             .reshape(B, 2 * C, H2, W2))
    return pool4, skip


# ---------------------------------------------------------------------------
# Parameters: deterministic synthetic init -> kernel-ready operands
# ---------------------------------------------------------------------------

_BN_EPS = 1e-5


def _bn_scale_bias(key, c):
    k1, k2, k3, k4 = jax.random.split(key, 4)
    gamma = 1.0 + 0.1 * jax.random.normal(k1, (c,), jnp.float32)
    beta = 0.1 * jax.random.normal(k2, (c,), jnp.float32)
    mean = 0.1 * jax.random.normal(k3, (c,), jnp.float32)
    var = 0.5 + jax.random.uniform(k4, (c,), jnp.float32)
    scale = gamma / jnp.sqrt(var + _BN_EPS)
    bias = beta - mean * scale
    return np.asarray(scale, np.float32), np.asarray(bias, np.float32)


def init_params(key, C, H, W):
    k = jax.random.split(key, 6)
    # RecLayer.Convolution: 3x3 conv (OIHW, no bias) + BN
    w3 = np.asarray(0.1 * jax.random.normal(k[0], (C, C, 3, 3), jnp.float32))
    s3, b3 = _bn_scale_bias(k[1], C)
    # RecLayer.conv1 (1x1, no bias) + RecLayer.batch_norm
    w1 = np.asarray(0.1 * jax.random.normal(k[2], (C, C, 1, 1), jnp.float32))
    s1, b1 = _bn_scale_bias(k[3], C)
    # DenseBlock_Drop.conv (1x1, no bias) + DenseBlock_Drop.batch_norm
    wdb = np.asarray(0.1 * jax.random.normal(k[4], (C, C, 1, 1), jnp.float32))
    sdb, bdb = _bn_scale_bias(k[5], C)

    # Fold BN scale into weights (OIHW -> HWIO, scaled along Cout).
    w3_hwio = np.transpose(w3, (2, 3, 1, 0)) * s3[None, None, None, :]

    # Banded 3x3 weights: out(H, W*C) = sum_ky xpad[ky:ky+H] @ band[ky]
    band = np.zeros((3, (W + 2) * C, W * C), np.float32)
    for ky in range(3):
        for kx in range(3):
            for x in range(W):
                xp = x + kx
                band[ky, xp * C:(xp + 1) * C, x * C:(x + 1) * C] = w3_hwio[ky, kx]

    def kron1x1(w_oihw, scale):
        wm = np.transpose(w_oihw[:, :, 0, 0], (1, 0)) * scale[None, :]  # (Ci,Co)
        return np.kron(np.eye(W, dtype=np.float32), wm).astype(np.float32)

    # 0/1 selection matrices for the matmul-based 2x2 max pool.
    H2, W2 = H // 2, W // 2
    sel_col_e = np.zeros((W * C, W2 * C), np.float32)
    sel_col_o = np.zeros((W * C, W2 * C), np.float32)
    for x2 in range(W2):
        for c in range(C):
            sel_col_e[(2 * x2) * C + c, x2 * C + c] = 1.0
            sel_col_o[(2 * x2 + 1) * C + c, x2 * C + c] = 1.0
    sel_row_e = np.zeros((H2, H), np.float32)
    sel_row_o = np.zeros((H2, H), np.float32)
    for y2 in range(H2):
        sel_row_e[y2, 2 * y2] = 1.0
        sel_row_o[y2, 2 * y2 + 1] = 1.0

    as_j = lambda a: jnp.asarray(a, jnp.float32)
    return {
        "w3band": as_j(band),
        "b3": as_j(np.tile(b3, W)[None, :]),
        "w1k": as_j(kron1x1(w1, s1)),
        "b1": as_j(np.tile(b1, W)[None, :]),
        "wdbk": as_j(kron1x1(wdb, sdb)),
        "bdb": as_j(np.tile(bdb, W)[None, :]),
        "sel_col_e": as_j(sel_col_e),
        "sel_col_o": as_j(sel_col_o),
        "sel_row_e": as_j(sel_row_e),
        "sel_row_o": as_j(sel_row_o),
    }


if __name__ == "__main__":
    B, C, H, W = 2, 8, 16, 16          # W*C = 128 -> exactly one vreg lane width
    key = jax.random.PRNGKey(0)
    kx, kp = jax.random.split(key)
    x = jax.random.normal(kx, (B, C, H, W), jnp.float32)   # PyTorch NCHW input
    params = init_params(kp, C, H, W)

    pool4, skip = dense_block_drop_forward(x, params)
    jax.block_until_ready((pool4, skip))

    assert pool4.shape == (B, 2 * C, H // 2, W // 2), pool4.shape
    assert skip.shape == (B, C, H, W), skip.shape
    assert bool(jnp.isfinite(pool4).all()) and bool(jnp.isfinite(skip).all())
    print("KERNEL_OK")
</pallas_src>

<mosaic_0001>
module attributes {stable_mosaic.version = 11 : i64} {
  func.func @_dense_block_kernel(%arg0: i32, %arg1: memref<1x16x128xf32, #tpu.memory_space<vmem>>, %arg2: memref<3x144x128xf32, #tpu.memory_space<vmem>>, %arg3: memref<1x128xf32, #tpu.memory_space<vmem>>, %arg4: memref<128x128xf32, #tpu.memory_space<vmem>>, %arg5: memref<1x128xf32, #tpu.memory_space<vmem>>, %arg6: memref<128x128xf32, #tpu.memory_space<vmem>>, %arg7: memref<1x128xf32, #tpu.memory_space<vmem>>, %arg8: memref<128x64xf32, #tpu.memory_space<vmem>>, %arg9: memref<128x64xf32, #tpu.memory_space<vmem>>, %arg10: memref<8x16xf32, #tpu.memory_space<vmem>>, %arg11: memref<8x16xf32, #tpu.memory_space<vmem>>, %arg12: memref<1x8x128xf32, #tpu.memory_space<vmem>>, %arg13: memref<1x16x128xf32, #tpu.memory_space<vmem>>, %arg14: memref<18x144xf32, #tpu.memory_space<vmem>>) attributes {dimension_semantics = [#tpu.dimension_semantics<parallel>], iteration_bounds = array<i64: 2>, scalar_prefetch = 0 : i64, scratch_operands = 1 : i64, tpu.core_type = #tpu.core_type<tc>, window_params = [{transform_indices = @transform_0, window_bounds = array<i64: 1, 16, 128>}, {pipeline_mode = #tpu.pipeline_mode<synchronous>, transform_indices = @transform_1, window_bounds = array<i64: 3, 144, 128>}, {pipeline_mode = #tpu.pipeline_mode<synchronous>, transform_indices = @transform_2, window_bounds = array<i64: 1, 128>}, {pipeline_mode = #tpu.pipeline_mode<synchronous>, transform_indices = @transform_3, window_bounds = array<i64: 128, 128>}, {pipeline_mode = #tpu.pipeline_mode<synchronous>, transform_indices = @transform_4, window_bounds = array<i64: 1, 128>}, {pipeline_mode = #tpu.pipeline_mode<synchronous>, transform_indices = @transform_5, window_bounds = array<i64: 128, 128>}, {pipeline_mode = #tpu.pipeline_mode<synchronous>, transform_indices = @transform_6, window_bounds = array<i64: 1, 128>}, {pipeline_mode = #tpu.pipeline_mode<synchronous>, transform_indices = @transform_7, window_bounds = array<i64: 128, 64>}, {pipeline_mode = #tpu.pipeline_mode<synchronous>, transform_indices = @transform_8, window_bounds = array<i64: 128, 64>}, {pipeline_mode = #tpu.pipeline_mode<synchronous>, transform_indices = @transform_9, window_bounds = array<i64: 8, 16>}, {pipeline_mode = #tpu.pipeline_mode<synchronous>, transform_indices = @transform_10, window_bounds = array<i64: 8, 16>}, {transform_indices = @transform_11, window_bounds = array<i64: 1, 8, 128>}, {transform_indices = @transform_12, window_bounds = array<i64: 1, 16, 128>}]} {
    %cst = arith.constant 0.000000e+00 : f32
    %0 = vector.broadcast %cst : f32 to vector<18x144xf32>
    %c0 = arith.constant 0 : index
    %c0_0 = arith.constant 0 : index
    %1 = vector.load %arg14[%c0, %c0_0] : memref<18x144xf32, #tpu.memory_space<vmem>>, vector<18x144xf32>
    tpu.vector_store %arg14[%c0, %c0_0], %0 {strides = array<i32>} : memref<18x144xf32, #tpu.memory_space<vmem>>, vector<18x144xf32>,
    %c0_1 = arith.constant 0 : index
    %c0_2 = arith.constant 0 : index
    %c0_3 = arith.constant 0 : index
    %2 = vector.load %arg1[%c0_1, %c0_2, %c0_3] : memref<1x16x128xf32, #tpu.memory_space<vmem>>, vector<1x16x128xf32>
    %3 = vector.shape_cast %2 : vector<1x16x128xf32> to vector<16x128xf32>
    %c1 = arith.constant 1 : index
    %c8 = arith.constant 8 : index
    %4 = vector.load %arg14[%c1, %c8] : memref<18x144xf32, #tpu.memory_space<vmem>>, vector<16x128xf32>
    tpu.vector_store %arg14[%c1, %c8], %3 {strides = array<i32>} : memref<18x144xf32, #tpu.memory_space<vmem>>, vector<16x128xf32>,
    %c0_4 = arith.constant 0 : index
    %c0_5 = arith.constant 0 : index
    %5 = vector.load %arg14[%c0_4, %c0_5] : memref<18x144xf32, #tpu.memory_space<vmem>>, vector<16x144xf32>
    %c0_6 = arith.constant 0 : index
    %c0_7 = arith.constant 0 : index
    %c0_8 = arith.constant 0 : index
    %6 = vector.load %arg2[%c0_6, %c0_7, %c0_8] : memref<3x144x128xf32, #tpu.memory_space<vmem>>, vector<1x144x128xf32>
    %7 = vector.shape_cast %6 : vector<1x144x128xf32> to vector<144x128xf32>
    %cst_9 = arith.constant dense<0.000000e+00> : vector<16x128xf32>
    %8 = tpu.matmul %5, %7, %cst_9 {dimension_numbers = #tpu.dot_dimension_numbers<[1], [0], [0], [1], [0, 0, 1, 1], [], []>} : vector<16x144xf32>, vector<144x128xf32>, vector<16x128xf32> -> vector<16x128xf32>
    %c1_10 = arith.constant 1 : index
    %c0_11 = arith.constant 0 : index
    %9 = vector.load %arg14[%c1_10, %c0_11] : memref<18x144xf32, #tpu.memory_space<vmem>>, vector<16x144xf32>
    %c1_12 = arith.constant 1 : index
    %c0_13 = arith.constant 0 : index
    %c0_14 = arith.constant 0 : index
    %10 = vector.load %arg2[%c1_12, %c0_13, %c0_14] : memref<3x144x128xf32, #tpu.memory_space<vmem>>, vector<1x144x128xf32>
    %11 = vector.shape_cast %10 : vector<1x144x128xf32> to vector<144x128xf32>
    %cst_15 = arith.constant dense<0.000000e+00> : vector<16x128xf32>
    %12 = tpu.matmul %9, %11, %cst_15 {dimension_numbers = #tpu.dot_dimension_numbers<[1], [0], [0], [1], [0, 0, 1, 1], [], []>} : vector<16x144xf32>, vector<144x128xf32>, vector<16x128xf32> -> vector<16x128xf32>
    %13 = arith.addf %8, %12 : vector<16x128xf32>
    %c2 = arith.constant 2 : index
    %c0_16 = arith.constant 0 : index
    %14 = vector.load %arg14[%c2, %c0_16] : memref<18x144xf32, #tpu.memory_space<vmem>>, vector<16x144xf32>
    %c2_17 = arith.constant 2 : index
    %c0_18 = arith.constant 0 : index
    %c0_19 = arith.constant 0 : index
    %15 = vector.load %arg2[%c2_17, %c0_18, %c0_19] : memref<3x144x128xf32, #tpu.memory_space<vmem>>, vector<1x144x128xf32>
    %16 = vector.shape_cast %15 : vector<1x144x128xf32> to vector<144x128xf32>
    %cst_20 = arith.constant dense<0.000000e+00> : vector<16x128xf32>
    %17 = tpu.matmul %14, %16, %cst_20 {dimension_numbers = #tpu.dot_dimension_numbers<[1], [0], [0], [1], [0, 0, 1, 1], [], []>} : vector<16x144xf32>, vector<144x128xf32>, vector<16x128xf32> -> vector<16x128xf32>
    %18 = arith.addf %13, %17 : vector<16x128xf32>
    %c0_21 = arith.constant 0 : index
    %c0_22 = arith.constant 0 : index
    %19 = vector.load %arg3[%c0_21, %c0_22] : memref<1x128xf32, #tpu.memory_space<vmem>>, vector<1x128xf32>
    %20 = vector.broadcast %19 : vector<1x128xf32> to vector<16x128xf32>
    %21 = arith.addf %18, %20 : vector<16x128xf32>
    %cst_23 = arith.constant 0.000000e+00 : f32
    %22 = vector.broadcast %cst_23 : f32 to vector<16x128xf32>
    %23 = arith.maximumf %21, %22 : vector<16x128xf32>
    %c0_24 = arith.constant 0 : index
    %c0_25 = arith.constant 0 : index
    %24 = vector.load %arg4[%c0_24, %c0_25] : memref<128x128xf32, #tpu.memory_space<vmem>>, vector<128x128xf32>
    %cst_26 = arith.constant dense<0.000000e+00> : vector<16x128xf32>
    %25 = tpu.matmul %3, %24, %cst_26 {dimension_numbers = #tpu.dot_dimension_numbers<[1], [0], [0], [1], [0, 0, 1, 1], [], []>} : vector<16x128xf32>, vector<128x128xf32>, vector<16x128xf32> -> vector<16x128xf32>
    %c0_27 = arith.constant 0 : index
    %c0_28 = arith.constant 0 : index
    %26 = vector.load %arg5[%c0_27, %c0_28] : memref<1x128xf32, #tpu.memory_space<vmem>>, vector<1x128xf32>
    %27 = vector.broadcast %26 : vector<1x128xf32> to vector<16x128xf32>
    %28 = arith.addf %25, %27 : vector<16x128xf32>
    %29 = arith.addf %23, %28 : vector<16x128xf32>
    %cst_29 = arith.constant 0.000000e+00 : f32
    %30 = vector.broadcast %cst_29 : f32 to vector<16x128xf32>
    %31 = arith.maximumf %29, %30 : vector<16x128xf32>
    %c1_30 = arith.constant 1 : index
    %c8_31 = arith.constant 8 : index
    %32 = vector.load %arg14[%c1_30, %c8_31] : memref<18x144xf32, #tpu.memory_space<vmem>>, vector<16x128xf32>
    tpu.vector_store %arg14[%c1_30, %c8_31], %31 {strides = array<i32>} : memref<18x144xf32, #tpu.memory_space<vmem>>, vector<16x128xf32>,
    %c0_32 = arith.constant 0 : index
    %c0_33 = arith.constant 0 : index
    %33 = vector.load %arg14[%c0_32, %c0_33] : memref<18x144xf32, #tpu.memory_space<vmem>>, vector<16x144xf32>
    %c0_34 = arith.constant 0 : index
    %c0_35 = arith.constant 0 : index
    %c0_36 = arith.constant 0 : index
    %34 = vector.load %arg2[%c0_34, %c0_35, %c0_36] : memref<3x144x128xf32, #tpu.memory_space<vmem>>, vector<1x144x128xf32>
    %35 = vector.shape_cast %34 : vector<1x144x128xf32> to vector<144x128xf32>
    %cst_37 = arith.constant dense<0.000000e+00> : vector<16x128xf32>
    %36 = tpu.matmul %33, %35, %cst_37 {dimension_numbers = #tpu.dot_dimension_numbers<[1], [0], [0], [1], [0, 0, 1, 1], [], []>} : vector<16x144xf32>, vector<144x128xf32>, vector<16x128xf32> -> vector<16x128xf32>
    %c1_38 = arith.constant 1 : index
    %c0_39 = arith.constant 0 : index
    %37 = vector.load %arg14[%c1_38, %c0_39] : memref<18x144xf32, #tpu.memory_space<vmem>>, vector<16x144xf32>
    %c1_40 = arith.constant 1 : index
    %c0_41 = arith.constant 0 : index
    %c0_42 = arith.constant 0 : index
    %38 = vector.load %arg2[%c1_40, %c0_41, %c0_42] : memref<3x144x128xf32, #tpu.memory_space<vmem>>, vector<1x144x128xf32>
    %39 = vector.shape_cast %38 : vector<1x144x128xf32> to vector<144x128xf32>
    %cst_43 = arith.constant dense<0.000000e+00> : vector<16x128xf32>
    %40 = tpu.matmul %37, %39, %cst_43 {dimension_numbers = #tpu.dot_dimension_numbers<[1], [0], [0], [1], [0, 0, 1, 1], [], []>} : vector<16x144xf32>, vector<144x128xf32>, vector<16x128xf32> -> vector<16x128xf32>
    %41 = arith.addf %36, %40 : vector<16x128xf32>
    %c2_44 = arith.constant 2 : index
    %c0_45 = arith.constant 0 : index
    %42 = vector.load %arg14[%c2_44, %c0_45] : memref<18x144xf32, #tpu.memory_space<vmem>>, vector<16x144xf32>
    %c2_46 = arith.constant 2 : index
    %c0_47 = arith.constant 0 : index
    %c0_48 = arith.constant 0 : index
    %43 = vector.load %arg2[%c2_46, %c0_47, %c0_48] : memref<3x144x128xf32, #tpu.memory_space<vmem>>, vector<1x144x128xf32>
    %44 = vector.shape_cast %43 : vector<1x144x128xf32> to vector<144x128xf32>
    %cst_49 = arith.constant dense<0.000000e+00> : vector<16x128xf32>
    %45 = tpu.matmul %42, %44, %cst_49 {dimension_numbers = #tpu.dot_dimension_numbers<[1], [0], [0], [1], [0, 0, 1, 1], [], []>} : vector<16x144xf32>, vector<144x128xf32>, vector<16x128xf32> -> vector<16x128xf32>
    %46 = arith.addf %41, %45 : vector<16x128xf32>
    %c0_50 = arith.constant 0 : index
    %c0_51 = arith.constant 0 : index
    %47 = vector.load %arg3[%c0_50, %c0_51] : memref<1x128xf32, #tpu.memory_space<vmem>>, vector<1x128xf32>
    %48 = vector.broadcast %47 : vector<1x128xf32> to vector<16x128xf32>
    %49 = arith.addf %46, %48 : vector<16x128xf32>
    %cst_52 = arith.constant 0.000000e+00 : f32
    %50 = vector.broadcast %cst_52 : f32 to vector<16x128xf32>
    %51 = arith.maximumf %49, %50 : vector<16x128xf32>
    %52 = arith.addf %51, %28 : vector<16x128xf32>
    %cst_53 = arith.constant 0.000000e+00 : f32
    %53 = vector.broadcast %cst_53 : f32 to vector<16x128xf32>
    %54 = arith.maximumf %52, %53 : vector<16x128xf32>
    %c1_54 = arith.constant 1 : index
    %c8_55 = arith.constant 8 : index
    %55 = vector.load %arg14[%c1_54, %c8_55] : memref<18x144xf32, #tpu.memory_space<vmem>>, vector<16x128xf32>
    tpu.vector_store %arg14[%c1_54, %c8_55], %54 {strides = array<i32>} : memref<18x144xf32, #tpu.memory_space<vmem>>, vector<16x128xf32>,
    %c0_56 = arith.constant 0 : index
    %c0_57 = arith.constant 0 : index
    %56 = vector.load %arg14[%c0_56, %c0_57] : memref<18x144xf32, #tpu.memory_space<vmem>>, vector<16x144xf32>
    %c0_58 = arith.constant 0 : index
    %c0_59 = arith.constant 0 : index
    %c0_60 = arith.constant 0 : index
    %57 = vector.load %arg2[%c0_58, %c0_59, %c0_60] : memref<3x144x128xf32, #tpu.memory_space<vmem>>, vector<1x144x128xf32>
    %58 = vector.shape_cast %57 : vector<1x144x128xf32> to vector<144x128xf32>
    %cst_61 = arith.constant dense<0.000000e+00> : vector<16x128xf32>
    %59 = tpu.matmul %56, %58, %cst_61 {dimension_numbers = #tpu.dot_dimension_numbers<[1], [0], [0], [1], [0, 0, 1, 1], [], []>} : vector<16x144xf32>, vector<144x128xf32>, vector<16x128xf32> -> vector<16x128xf32>
    %c1_62 = arith.constant 1 : index
    %c0_63 = arith.constant 0 : index
    %60 = vector.load %arg14[%c1_62, %c0_63] : memref<18x144xf32, #tpu.memory_space<vmem>>, vector<16x144xf32>
    %c1_64 = arith.constant 1 : index
    %c0_65 = arith.constant 0 : index
    %c0_66 = arith.constant 0 : index
    %61 = vector.load %arg2[%c1_64, %c0_65, %c0_66] : memref<3x144x128xf32, #tpu.memory_space<vmem>>, vector<1x144x128xf32>
    %62 = vector.shape_cast %61 : vector<1x144x128xf32> to vector<144x128xf32>
    %cst_67 = arith.constant dense<0.000000e+00> : vector<16x128xf32>
    %63 = tpu.matmul %60, %62, %cst_67 {dimension_numbers = #tpu.dot_dimension_numbers<[1], [0], [0], [1], [0, 0, 1, 1], [], []>} : vector<16x144xf32>, vector<144x128xf32>, vector<16x128xf32> -> vector<16x128xf32>
    %64 = arith.addf %59, %63 : vector<16x128xf32>
    %c2_68 = arith.constant 2 : index
    %c0_69 = arith.constant 0 : index
    %65 = vector.load %arg14[%c2_68, %c0_69] : memref<18x144xf32, #tpu.memory_space<vmem>>, vector<16x144xf32>
    %c2_70 = arith.constant 2 : index
    %c0_71 = arith.constant 0 : index
    %c0_72 = arith.constant 0 : index
    %66 = vector.load %arg2[%c2_70, %c0_71, %c0_72] : memref<3x144x128xf32, #tpu.memory_space<vmem>>, vector<1x144x128xf32>
    %67 = vector.shape_cast %66 : vector<1x144x128xf32> to vector<144x128xf32>
    %cst_73 = arith.constant dense<0.000000e+00> : vector<16x128xf32>
    %68 = tpu.matmul %65, %67, %cst_73 {dimension_numbers = #tpu.dot_dimension_numbers<[1], [0], [0], [1], [0, 0, 1, 1], [], []>} : vector<16x144xf32>, vector<144x128xf32>, vector<16x128xf32> -> vector<16x128xf32>
    %69 = arith.addf %64, %68 : vector<16x128xf32>
    %c0_74 = arith.constant 0 : index
    %c0_75 = arith.constant 0 : index
    %70 = vector.load %arg3[%c0_74, %c0_75] : memref<1x128xf32, #tpu.memory_space<vmem>>, vector<1x128xf32>
    %71 = vector.broadcast %70 : vector<1x128xf32> to vector<16x128xf32>
    %72 = arith.addf %69, %71 : vector<16x128xf32>
    %cst_76 = arith.constant 0.000000e+00 : f32
    %73 = vector.broadcast %cst_76 : f32 to vector<16x128xf32>
    %74 = arith.maximumf %72, %73 : vector<16x128xf32>
    %c1_77 = arith.constant 1 : index
    %c8_78 = arith.constant 8 : index
    %75 = vector.load %arg14[%c1_77, %c8_78] : memref<18x144xf32, #tpu.memory_space<vmem>>, vector<16x128xf32>
    tpu.vector_store %arg14[%c1_77, %c8_78], %74 {strides = array<i32>} : memref<18x144xf32, #tpu.memory_space<vmem>>, vector<16x128xf32>,
    %c0_79 = arith.constant 0 : index
    %c0_80 = arith.constant 0 : index
    %76 = vector.load %arg14[%c0_79, %c0_80] : memref<18x144xf32, #tpu.memory_space<vmem>>, vector<16x144xf32>
    %c0_81 = arith.constant 0 : index
    %c0_82 = arith.constant 0 : index
    %c0_83 = arith.constant 0 : index
    %77 = vector.load %arg2[%c0_81, %c0_82, %c0_83] : memref<3x144x128xf32, #tpu.memory_space<vmem>>, vector<1x144x128xf32>
    %78 = vector.shape_cast %77 : vector<1x144x128xf32> to vector<144x128xf32>
    %cst_84 = arith.constant dense<0.000000e+00> : vector<16x128xf32>
    %79 = tpu.matmul %76, %78, %cst_84 {dimension_numbers = #tpu.dot_dimension_numbers<[1], [0], [0], [1], [0, 0, 1, 1], [], []>} : vector<16x144xf32>, vector<144x128xf32>, vector<16x128xf32> -> vector<16x128xf32>
    %c1_85 = arith.constant 1 : index
    %c0_86 = arith.constant 0 : index
    %80 = vector.load %arg14[%c1_85, %c0_86] : memref<18x144xf32, #tpu.memory_space<vmem>>, vector<16x144xf32>
    %c1_87 = arith.constant 1 : index
    %c0_88 = arith.constant 0 : index
    %c0_89 = arith.constant 0 : index
    %81 = vector.load %arg2[%c1_87, %c0_88, %c0_89] : memref<3x144x128xf32, #tpu.memory_space<vmem>>, vector<1x144x128xf32>
    %82 = vector.shape_cast %81 : vector<1x144x128xf32> to vector<144x128xf32>
    %cst_90 = arith.constant dense<0.000000e+00> : vector<16x128xf32>
    %83 = tpu.matmul %80, %82, %cst_90 {dimension_numbers = #tpu.dot_dimension_numbers<[1], [0], [0], [1], [0, 0, 1, 1], [], []>} : vector<16x144xf32>, vector<144x128xf32>, vector<16x128xf32> -> vector<16x128xf32>
    %84 = arith.addf %79, %83 : vector<16x128xf32>
    %c2_91 = arith.constant 2 : index
    %c0_92 = arith.constant 0 : index
    %85 = vector.load %arg14[%c2_91, %c0_92] : memref<18x144xf32, #tpu.memory_space<vmem>>, vector<16x144xf32>
    %c2_93 = arith.constant 2 : index
    %c0_94 = arith.constant 0 : index
    %c0_95 = arith.constant 0 : index
    %86 = vector.load %arg2[%c2_93, %c0_94, %c0_95] : memref<3x144x128xf32, #tpu.memory_space<vmem>>, vector<1x144x128xf32>
    %87 = vector.shape_cast %86 : vector<1x144x128xf32> to vector<144x128xf32>
    %cst_96 = arith.constant dense<0.000000e+00> : vector<16x128xf32>
    %88 = tpu.matmul %85, %87, %cst_96 {dimension_numbers = #tpu.dot_dimension_numbers<[1], [0], [0], [1], [0, 0, 1, 1], [], []>} : vector<16x144xf32>, vector<144x128xf32>, vector<16x128xf32> -> vector<16x128xf32>
    %89 = arith.addf %84, %88 : vector<16x128xf32>
    %c0_97 = arith.constant 0 : index
    %c0_98 = arith.constant 0 : index
    %90 = vector.load %arg3[%c0_97, %c0_98] : memref<1x128xf32, #tpu.memory_space<vmem>>, vector<1x128xf32>
    %91 = vector.broadcast %90 : vector<1x128xf32> to vector<16x128xf32>
    %92 = arith.addf %89, %91 : vector<16x128xf32>
    %cst_99 = arith.constant 0.000000e+00 : f32
    %93 = vector.broadcast %cst_99 : f32 to vector<16x128xf32>
    %94 = arith.maximumf %92, %93 : vector<16x128xf32>
    %c0_100 = arith.constant 0 : index
    %c0_101 = arith.constant 0 : index
    %95 = vector.load %arg4[%c0_100, %c0_101] : memref<128x128xf32, #tpu.memory_space<vmem>>, vector<128x128xf32>
    %cst_102 = arith.constant dense<0.000000e+00> : vector<16x128xf32>
    %96 = tpu.matmul %74, %95, %cst_102 {dimension_numbers = #tpu.dot_dimension_numbers<[1], [0], [0], [1], [0, 0, 1, 1], [], []>} : vector<16x128xf32>, vector<128x128xf32>, vector<16x128xf32> -> vector<16x128xf32>
    %c0_103 = arith.constant 0 : index
    %c0_104 = arith.constant 0 : index
    %97 = vector.load %arg5[%c0_103, %c0_104] : memref<1x128xf32, #tpu.memory_space<vmem>>, vector<1x128xf32>
    %98 = vector.broadcast %97 : vector<1x128xf32> to vector<16x128xf32>
    %99 = arith.addf %96, %98 : vector<16x128xf32>
    %100 = arith.addf %94, %99 : vector<16x128xf32>
    %cst_105 = arith.constant 0.000000e+00 : f32
    %101 = vector.broadcast %cst_105 : f32 to vector<16x128xf32>
    %102 = arith.maximumf %100, %101 : vector<16x128xf32>
    %c1_106 = arith.constant 1 : index
    %c8_107 = arith.constant 8 : index
    %103 = vector.load %arg14[%c1_106, %c8_107] : memref<18x144xf32, #tpu.memory_space<vmem>>, vector<16x128xf32>
    tpu.vector_store %arg14[%c1_106, %c8_107], %102 {strides = array<i32>} : memref<18x144xf32, #tpu.memory_space<vmem>>, vector<16x128xf32>,
    %c0_108 = arith.constant 0 : index
    %c0_109 = arith.constant 0 : index
    %104 = vector.load %arg14[%c0_108, %c0_109] : memref<18x144xf32, #tpu.memory_space<vmem>>, vector<16x144xf32>
    %c0_110 = arith.constant 0 : index
    %c0_111 = arith.constant 0 : index
    %c0_112 = arith.constant 0 : index
    %105 = vector.load %arg2[%c0_110, %c0_111, %c0_112] : memref<3x144x128xf32, #tpu.memory_space<vmem>>, vector<1x144x128xf32>
    %106 = vector.shape_cast %105 : vector<1x144x128xf32> to vector<144x128xf32>
    %cst_113 = arith.constant dense<0.000000e+00> : vector<16x128xf32>
    %107 = tpu.matmul %104, %106, %cst_113 {dimension_numbers = #tpu.dot_dimension_numbers<[1], [0], [0], [1], [0, 0, 1, 1], [], []>} : vector<16x144xf32>, vector<144x128xf32>, vector<16x128xf32> -> vector<16x128xf32>
    %c1_114 = arith.constant 1 : index
    %c0_115 = arith.constant 0 : index
    %108 = vector.load %arg14[%c1_114, %c0_115] : memref<18x144xf32, #tpu.memory_space<vmem>>, vector<16x144xf32>
    %c1_116 = arith.constant 1 : index
    %c0_117 = arith.constant 0 : index
    %c0_118 = arith.constant 0 : index
    %109 = vector.load %arg2[%c1_116, %c0_117, %c0_118] : memref<3x144x128xf32, #tpu.memory_space<vmem>>, vector<1x144x128xf32>
    %110 = vector.shape_cast %109 : vector<1x144x128xf32> to vector<144x128xf32>
    %cst_119 = arith.constant dense<0.000000e+00> : vector<16x128xf32>
    %111 = tpu.matmul %108, %110, %cst_119 {dimension_numbers = #tpu.dot_dimension_numbers<[1], [0], [0], [1], [0, 0, 1, 1], [], []>} : vector<16x144xf32>, vector<144x128xf32>, vector<16x128xf32> -> vector<16x128xf32>
    %112 = arith.addf %107, %111 : vector<16x128xf32>
    %c2_120 = arith.constant 2 : index
    %c0_121 = arith.constant 0 : index
    %113 = vector.load %arg14[%c2_120, %c0_121] : memref<18x144xf32, #tpu.memory_space<vmem>>, vector<16x144xf32>
    %c2_122 = arith.constant 2 : index
    %c0_123 = arith.constant 0 : index
    %c0_124 = arith.constant 0 : index
    %114 = vector.load %arg2[%c2_122, %c0_123, %c0_124] : memref<3x144x128xf32, #tpu.memory_space<vmem>>, vector<1x144x128xf32>
    %115 = vector.shape_cast %114 : vector<1x144x128xf32> to vector<144x128xf32>
    %cst_125 = arith.constant dense<0.000000e+00> : vector<16x128xf32>
    %116 = tpu.matmul %113, %115, %cst_125 {dimension_numbers = #tpu.dot_dimension_numbers<[1], [0], [0], [1], [0, 0, 1, 1], [], []>} : vector<16x144xf32>, vector<144x128xf32>, vector<16x128xf32> -> vector<16x128xf32>
    %117 = arith.addf %112, %116 : vector<16x128xf32>
    %c0_126 = arith.constant 0 : index
    %c0_127 = arith.constant 0 : index
    %118 = vector.load %arg3[%c0_126, %c0_127] : memref<1x128xf32, #tpu.memory_space<vmem>>, vector<1x128xf32>
    %119 = vector.broadcast %118 : vector<1x128xf32> to vector<16x128xf32>
    %120 = arith.addf %117, %119 : vector<16x128xf32>
    %cst_128 = arith.constant 0.000000e+00 : f32
    %121 = vector.broadcast %cst_128 : f32 to vector<16x128xf32>
    %122 = arith.maximumf %120, %121 : vector<16x128xf32>
    %123 = arith.addf %122, %99 : vector<16x128xf32>
    %cst_129 = arith.constant 0.000000e+00 : f32
    %124 = vector.broadcast %cst_129 : f32 to vector<16x128xf32>
    %125 = arith.maximumf %123, %124 : vector<16x128xf32>
    %c1_130 = arith.constant 1 : index
    %c8_131 = arith.constant 8 : index
    %126 = vector.load %arg14[%c1_130, %c8_131] : memref<18x144xf32, #tpu.memory_space<vmem>>, vector<16x128xf32>
    tpu.vector_store %arg14[%c1_130, %c8_131], %125 {strides = array<i32>} : memref<18x144xf32, #tpu.memory_space<vmem>>, vector<16x128xf32>,
    %c0_132 = arith.constant 0 : index
    %c0_133 = arith.constant 0 : index
    %127 = vector.load %arg14[%c0_132, %c0_133] : memref<18x144xf32, #tpu.memory_space<vmem>>, vector<16x144xf32>
    %c0_134 = arith.constant 0 : index
    %c0_135 = arith.constant 0 : index
    %c0_136 = arith.constant 0 : index
    %128 = vector.load %arg2[%c0_134, %c0_135, %c0_136] : memref<3x144x128xf32, #tpu.memory_space<vmem>>, vector<1x144x128xf32>
    %129 = vector.shape_cast %128 : vector<1x144x128xf32> to vector<144x128xf32>
    %cst_137 = arith.constant dense<0.000000e+00> : vector<16x128xf32>
    %130 = tpu.matmul %127, %129, %cst_137 {dimension_numbers = #tpu.dot_dimension_numbers<[1], [0], [0], [1], [0, 0, 1, 1], [], []>} : vector<16x144xf32>, vector<144x128xf32>, vector<16x128xf32> -> vector<16x128xf32>
    %c1_138 = arith.constant 1 : index
    %c0_139 = arith.constant 0 : index
    %131 = vector.load %arg14[%c1_138, %c0_139] : memref<18x144xf32, #tpu.memory_space<vmem>>, vector<16x144xf32>
    %c1_140 = arith.constant 1 : index
    %c0_141 = arith.constant 0 : index
    %c0_142 = arith.constant 0 : index
    %132 = vector.load %arg2[%c1_140, %c0_141, %c0_142] : memref<3x144x128xf32, #tpu.memory_space<vmem>>, vector<1x144x128xf32>
    %133 = vector.shape_cast %132 : vector<1x144x128xf32> to vector<144x128xf32>
    %cst_143 = arith.constant dense<0.000000e+00> : vector<16x128xf32>
    %134 = tpu.matmul %131, %133, %cst_143 {dimension_numbers = #tpu.dot_dimension_numbers<[1], [0], [0], [1], [0, 0, 1, 1], [], []>} : vector<16x144xf32>, vector<144x128xf32>, vector<16x128xf32> -> vector<16x128xf32>
    %135 = arith.addf %130, %134 : vector<16x128xf32>
    %c2_144 = arith.constant 2 : index
    %c0_145 = arith.constant 0 : index
    %136 = vector.load %arg14[%c2_144, %c0_145] : memref<18x144xf32, #tpu.memory_space<vmem>>, vector<16x144xf32>
    %c2_146 = arith.constant 2 : index
    %c0_147 = arith.constant 0 : index
    %c0_148 = arith.constant 0 : index
    %137 = vector.load %arg2[%c2_146, %c0_147, %c0_148] : memref<3x144x128xf32, #tpu.memory_space<vmem>>, vector<1x144x128xf32>
    %138 = vector.shape_cast %137 : vector<1x144x128xf32> to vector<144x128xf32>
    %cst_149 = arith.constant dense<0.000000e+00> : vector<16x128xf32>
    %139 = tpu.matmul %136, %138, %cst_149 {dimension_numbers = #tpu.dot_dimension_numbers<[1], [0], [0], [1], [0, 0, 1, 1], [], []>} : vector<16x144xf32>, vector<144x128xf32>, vector<16x128xf32> -> vector<16x128xf32>
    %140 = arith.addf %135, %139 : vector<16x128xf32>
    %c0_150 = arith.constant 0 : index
    %c0_151 = arith.constant 0 : index
    %141 = vector.load %arg3[%c0_150, %c0_151] : memref<1x128xf32, #tpu.memory_space<vmem>>, vector<1x128xf32>
    %142 = vector.broadcast %141 : vector<1x128xf32> to vector<16x128xf32>
    %143 = arith.addf %140, %142 : vector<16x128xf32>
    %cst_152 = arith.constant 0.000000e+00 : f32
    %144 = vector.broadcast %cst_152 : f32 to vector<16x128xf32>
    %145 = arith.maximumf %143, %144 : vector<16x128xf32>
    %c0_153 = arith.constant 0 : index
    %c0_154 = arith.constant 0 : index
    %c0_155 = arith.constant 0 : index
    %146 = vector.load %arg13[%c0_153, %c0_154, %c0_155] : memref<1x16x128xf32, #tpu.memory_space<vmem>>, vector<1x16x128xf32>
    %147 = vector.shape_cast %146 : vector<1x16x128xf32> to vector<16x128xf32>
    %148 = vector.shape_cast %145 : vector<16x128xf32> to vector<1x16x128xf32>
    tpu.vector_store %arg13[%c0_153, %c0_154, %c0_155], %148 {strides = array<i32>} : memref<1x16x128xf32, #tpu.memory_space<vmem>>, vector<1x16x128xf32>,
    %c0_156 = arith.constant 0 : index
    %c0_157 = arith.constant 0 : index
    %149 = vector.load %arg6[%c0_156, %c0_157] : memref<128x128xf32, #tpu.memory_space<vmem>>, vector<128x128xf32>
    %cst_158 = arith.constant dense<0.000000e+00> : vector<16x128xf32>
    %150 = tpu.matmul %3, %149, %cst_158 {dimension_numbers = #tpu.dot_dimension_numbers<[1], [0], [0], [1], [0, 0, 1, 1], [], []>} : vector<16x128xf32>, vector<128x128xf32>, vector<16x128xf32> -> vector<16x128xf32>
    %c0_159 = arith.constant 0 : index
    %c0_160 = arith.constant 0 : index
    %151 = vector.load %arg7[%c0_159, %c0_160] : memref<1x128xf32, #tpu.memory_space<vmem>>, vector<1x128xf32>
    %152 = vector.broadcast %151 : vector<1x128xf32> to vector<16x128xf32>
    %153 = arith.addf %150, %152 : vector<16x128xf32>
    %154 = arith.addf %153, %145 : vector<16x128xf32>
    %cst_161 = arith.constant 0.000000e+00 : f32
    %155 = vector.broadcast %cst_161 : f32 to vector<16x128xf32>
    %156 = arith.maximumf %154, %155 : vector<16x128xf32>
    %c0_162 = arith.constant 0 : index
    %c0_163 = arith.constant 0 : index
    %157 = vector.load %arg8[%c0_162, %c0_163] : memref<128x64xf32, #tpu.memory_space<vmem>>, vector<128x64xf32>
    %cst_164 = arith.constant dense<0.000000e+00> : vector<16x64xf32>
    %158 = tpu.matmul %156, %157, %cst_164 {dimension_numbers = #tpu.dot_dimension_numbers<[1], [0], [0], [1], [0, 0, 1, 1], [], []>} : vector<16x128xf32>, vector<128x64xf32>, vector<16x64xf32> -> vector<16x64xf32>
    %c0_165 = arith.constant 0 : index
    %c0_166 = arith.constant 0 : index
    %159 = vector.load %arg9[%c0_165, %c0_166] : memref<128x64xf32, #tpu.memory_space<vmem>>, vector<128x64xf32>
    %cst_167 = arith.constant dense<0.000000e+00> : vector<16x64xf32>
    %160 = tpu.matmul %156, %159, %cst_167 {dimension_numbers = #tpu.dot_dimension_numbers<[1], [0], [0], [1], [0, 0, 1, 1], [], []>} : vector<16x128xf32>, vector<128x64xf32>, vector<16x64xf32> -> vector<16x64xf32>
    %161 = arith.maximumf %158, %160 : vector<16x64xf32>
    %c0_168 = arith.constant 0 : index
    %c0_169 = arith.constant 0 : index
    %162 = vector.load %arg10[%c0_168, %c0_169] : memref<8x16xf32, #tpu.memory_space<vmem>>, vector<8x16xf32>
    %cst_170 = arith.constant dense<0.000000e+00> : vector<8x64xf32>
    %163 = tpu.matmul %162, %161, %cst_170 {dimension_numbers = #tpu.dot_dimension_numbers<[1], [0], [0], [1], [0, 0, 1, 1], [], []>} : vector<8x16xf32>, vector<16x64xf32>, vector<8x64xf32> -> vector<8x64xf32>
    %c0_171 = arith.constant 0 : index
    %c0_172 = arith.constant 0 : index
    %164 = vector.load %arg11[%c0_171, %c0_172] : memref<8x16xf32, #tpu.memory_space<vmem>>, vector<8x16xf32>
    %cst_173 = arith.constant dense<0.000000e+00> : vector<8x64xf32>
    %165 = tpu.matmul %164, %161, %cst_173 {dimension_numbers = #tpu.dot_dimension_numbers<[1], [0], [0], [1], [0, 0, 1, 1], [], []>} : vector<8x16xf32>, vector<16x64xf32>, vector<8x64xf32> -> vector<8x64xf32>
    %166 = arith.maximumf %163, %165 : vector<8x64xf32>
    %c0_174 = arith.constant 0 : index
    %c0_175 = arith.constant 0 : index
    %167 = vector.load %arg8[%c0_174, %c0_175] : memref<128x64xf32, #tpu.memory_space<vmem>>, vector<128x64xf32>
    %cst_176 = arith.constant dense<0.000000e+00> : vector<16x64xf32>
    %168 = tpu.matmul %145, %167, %cst_176 {dimension_numbers = #tpu.dot_dimension_numbers<[1], [0], [0], [1], [0, 0, 1, 1], [], []>} : vector<16x128xf32>, vector<128x64xf32>, vector<16x64xf32> -> vector<16x64xf32>
    %c0_177 = arith.constant 0 : index
    %c0_178 = arith.constant 0 : index
    %169 = vector.load %arg9[%c0_177, %c0_178] : memref<128x64xf32, #tpu.memory_space<vmem>>, vector<128x64xf32>
    %cst_179 = arith.constant dense<0.000000e+00> : vector<16x64xf32>
    %170 = tpu.matmul %145, %169, %cst_179 {dimension_numbers = #tpu.dot_dimension_numbers<[1], [0], [0], [1], [0, 0, 1, 1], [], []>} : vector<16x128xf32>, vector<128x64xf32>, vector<16x64xf32> -> vector<16x64xf32>
    %171 = arith.maximumf %168, %170 : vector<16x64xf32>
    %c0_180 = arith.constant 0 : index
    %c0_181 = arith.constant 0 : index
    %172 = vector.load %arg10[%c0_180, %c0_181] : memref<8x16xf32, #tpu.memory_space<vmem>>, vector<8x16xf32>
    %cst_182 = arith.constant dense<0.000000e+00> : vector<8x64xf32>
    %173 = tpu.matmul %172, %171, %cst_182 {dimension_numbers = #tpu.dot_dimension_numbers<[1], [0], [0], [1], [0, 0, 1, 1], [], []>} : vector<8x16xf32>, vector<16x64xf32>, vector<8x64xf32> -> vector<8x64xf32>
    %c0_183 = arith.constant 0 : index
    %c0_184 = arith.constant 0 : index
    %174 = vector.load %arg11[%c0_183, %c0_184] : memref<8x16xf32, #tpu.memory_space<vmem>>, vector<8x16xf32>
    %cst_185 = arith.constant dense<0.000000e+00> : vector<8x64xf32>
    %175 = tpu.matmul %174, %171, %cst_185 {dimension_numbers = #tpu.dot_dimension_numbers<[1], [0], [0], [1], [0, 0, 1, 1], [], []>} : vector<8x16xf32>, vector<16x64xf32>, vector<8x64xf32> -> vector<8x64xf32>
    %176 = arith.maximumf %173, %175 : vector<8x64xf32>
    %177 = tpu.concatenate %166, %176 in 1 : vector<8x64xf32>, vector<8x64xf32> -> vector<8x128xf32>
    %c0_186 = arith.constant 0 : index
    %c0_187 = arith.constant 0 : index
    %c0_188 = arith.constant 0 : index
    %178 = vector.load %arg12[%c0_186, %c0_187, %c0_188] : memref<1x8x128xf32, #tpu.memory_space<vmem>>, vector<1x8x128xf32>
    %179 = vector.shape_cast %178 : vector<1x8x128xf32> to vector<8x128xf32>
    %180 = vector.shape_cast %177 : vector<8x128xf32> to vector<1x8x128xf32>
    tpu.vector_store %arg12[%c0_186, %c0_187, %c0_188], %180 {strides = array<i32>} : memref<1x8x128xf32, #tpu.memory_space<vmem>>, vector<1x8x128xf32>,
    return
  }
  func.func @transform_0(%arg0: i32) -> (i32, i32, i32) {
    %c0_i32 = arith.constant 0 : i32
    %c0_i32_0 = arith.constant 0 : i32
    %c0_i32_1 = arith.constant 0 : i32
    return %arg0, %c0_i32, %c0_i32_0 : i32, i32, i32
  }
  func.func @transform_1(%arg0: i32) -> (i32, i32, i32) {
    %c0_i32 = arith.constant 0 : i32
    %c0_i32_0 = arith.constant 0 : i32
    %c0_i32_1 = arith.constant 0 : i32
    %c0_i32_2 = arith.constant 0 : i32
    return %c0_i32, %c0_i32_0, %c0_i32_1 : i32, i32, i32
  }
  func.func @transform_2(%arg0: i32) -> (i32, i32) {
    %c0_i32 = arith.constant 0 : i32
    %c0_i32_0 = arith.constant 0 : i32
    %c0_i32_1 = arith.constant 0 : i32
    return %c0_i32, %c0_i32_0 : i32, i32
  }
  func.func @transform_3(%arg0: i32) -> (i32, i32) {
    %c0_i32 = arith.constant 0 : i32
    %c0_i32_0 = arith.constant 0 : i32
    %c0_i32_1 = arith.constant 0 : i32
    return %c0_i32, %c0_i32_0 : i32, i32
  }
  func.func @transform_4(%arg0: i32) -> (i32, i32) {
    %c0_i32 = arith.constant 0 : i32
    %c0_i32_0 = arith.constant 0 : i32
    %c0_i32_1 = arith.constant 0 : i32
    return %c0_i32, %c0_i32_0 : i32, i32
  }
  func.func @transform_5(%arg0: i32) -> (i32, i32) {
    %c0_i32 = arith.constant 0 : i32
    %c0_i32_0 = arith.constant 0 : i32
    %c0_i32_1 = arith.constant 0 : i32
    return %c0_i32, %c0_i32_0 : i32, i32
  }
  func.func @transform_6(%arg0: i32) -> (i32, i32) {
    %c0_i32 = arith.constant 0 : i32
    %c0_i32_0 = arith.constant 0 : i32
    %c0_i32_1 = arith.constant 0 : i32
    return %c0_i32, %c0_i32_0 : i32, i32
  }
  func.func @transform_7(%arg0: i32) -> (i32, i32) {
    %c0_i32 = arith.constant 0 : i32
    %c0_i32_0 = arith.constant 0 : i32
    %c0_i32_1 = arith.constant 0 : i32
    return %c0_i32, %c0_i32_0 : i32, i32
  }
  func.func @transform_8(%arg0: i32) -> (i32, i32) {
    %c0_i32 = arith.constant 0 : i32
    %c0_i32_0 = arith.constant 0 : i32
    %c0_i32_1 = arith.constant 0 : i32
    return %c0_i32, %c0_i32_0 : i32, i32
  }
  func.func @transform_9(%arg0: i32) -> (i32, i32) {
    %c0_i32 = arith.constant 0 : i32
    %c0_i32_0 = arith.constant 0 : i32
    %c0_i32_1 = arith.constant 0 : i32
    return %c0_i32, %c0_i32_0 : i32, i32
  }
  func.func @transform_10(%arg0: i32) -> (i32, i32) {
    %c0_i32 = arith.constant 0 : i32
    %c0_i32_0 = arith.constant 0 : i32
    %c0_i32_1 = arith.constant 0 : i32
    return %c0_i32, %c0_i32_0 : i32, i32
  }
  func.func @transform_11(%arg0: i32) -> (i32, i32, i32) {
    %c0_i32 = arith.constant 0 : i32
    %c0_i32_0 = arith.constant 0 : i32
    %c0_i32_1 = arith.constant 0 : i32
    return %arg0, %c0_i32, %c0_i32_0 : i32, i32, i32
  }
  func.func @transform_12(%arg0: i32) -> (i32, i32, i32) {
    %c0_i32 = arith.constant 0 : i32
    %c0_i32_0 = arith.constant 0 : i32
    %c0_i32_1 = arith.constant 0 : i32
    return %arg0, %c0_i32, %c0_i32_0 : i32, i32, i32
  }
}

</mosaic_0001>

<llo_original>
// kernel: dense_block_drop_forward.1
$region0: #{dense_block_drop_forward.1}
  #allocation0 [shape = 'u32[]', space=smem, size = 0x4, offset = 0x4, fixed_abs, tag = 'smem constant byte address 0x4 - core index']
  #allocation1 [shape = 'u32[144,128]{1,0:T(1,128)}', space=vmem, size = 0x12000, scoped, tag = 'internal scratch']
  #allocation2 [shape = 'f32[18,144]{1,0:T(8,128)}', space=vmem, size = 0x6000, scoped, tag = 'scratch operand']
  %s0 = inlined_call_operand.vmem [shape: f32[2,16,128], index: 0, kind: input, shape index: {}]
  %s1 = inlined_call_operand.vmem [shape: f32[3,144,128], index: 1, kind: input, shape index: {}]
  %s2 = inlined_call_operand.vmem [shape: f32[1,128], index: 2, kind: input, shape index: {}]
  %s3 = inlined_call_operand.vmem [shape: f32[128,128], index: 3, kind: input, shape index: {}]
  %s4 = inlined_call_operand.vmem [shape: f32[1,128], index: 4, kind: input, shape index: {}]
  %s5 = inlined_call_operand.vmem [shape: f32[128,128], index: 5, kind: input, shape index: {}]
  %s6 = inlined_call_operand.vmem [shape: f32[1,128], index: 6, kind: input, shape index: {}]
  %s7 = inlined_call_operand.vmem [shape: f32[128,64], index: 7, kind: input, shape index: {}]
  %s8 = inlined_call_operand.vmem [shape: f32[128,64], index: 8, kind: input, shape index: {}]
  %s9 = inlined_call_operand.vmem [shape: f32[8,16], index: 9, kind: input, shape index: {}]
  %s10 = inlined_call_operand.vmem [shape: f32[8,16], index: 10, kind: input, shape index: {}]
  %s11 = inlined_call_operand.vmem [shape: f32[2,8,128], index: 11, kind: output, shape index: {0}]
  %s12 = inlined_call_operand.vmem [shape: f32[2,16,128], index: 12, kind: output, shape index: {1}]
  %13 = xla_tuple %s11, %s12
  %s14 = sld [smem:[#allocation0]]
  $region85: #{dense_block_drop_forward.1} parent=0
    _
  %s16 = ssub.s32 1, %s14
  %s17 = scalar_select 0, %s16, %s14
  loop: start=0, step=1, limit=4
  $region2: #{dense_block_drop_forward.1} parent=0 // loop_pre_header
    _
  $region3: #{dense_block_drop_forward.1} parent=0 // loop_header
    %s19 = sphi 0, %s23
    %p20 = scmp.ge.s32.totalorder %s19, 4
    %s29 = sphi 0, %s31
    %s32 = sphi 0, %s29
    %s33 = sphi 0, %s32
    %s49 = sphi 0, %s33
    %s53 = sphi 0, %s53
    %s55 = sphi 0, %s53
    %s56 = sphi 0, %s55
    %s70 = sphi 0, %s56
    %s74 = sphi 0, %s74
    %s76 = sphi 0, %s74
    %s77 = sphi 0, %s76
    %s91 = sphi 0, %s77
    %s95 = sphi 0, %s95
    %s97 = sphi 0, %s95
    %s98 = sphi 0, %s97
    %s112 = sphi 0, %s98
    %s116 = sphi 0, %s116
    %s118 = sphi 0, %s116
    %s119 = sphi 0, %s118
    %s133 = sphi 0, %s119
    %s137 = sphi 0, %s137
    %s139 = sphi 0, %s137
    %s140 = sphi 0, %s139
    %s154 = sphi 0, %s140
    %s158 = sphi 0, %s158
    %s160 = sphi 0, %s158
    %s161 = sphi 0, %s160
    %s175 = sphi 0, %s161
    %s179 = sphi 0, %s179
    %s181 = sphi 0, %s179
    %s182 = sphi 0, %s181
    %s196 = sphi 0, %s182
    %s200 = sphi 0, %s200
    %s202 = sphi 0, %s200
    %s203 = sphi 0, %s202
    %s217 = sphi 0, %s203
    %s221 = sphi 0, %s221
    %s223 = sphi 0, %s221
    %s224 = sphi 0, %s223
    %s238 = sphi 0, %s224
    %s242 = sphi 0, %s242
    %s244 = sphi 0, %s242
    %s245 = sphi 0, %s244
    %s259 = sphi 0, %s245
    %s265 = sphi 0, %s267
    %s268 = sphi 0, %s265
    %s269 = sphi 0, %s268
    %s285 = sphi 0, %s269
    %s291 = sphi 0, %s293
    %s294 = sphi 0, %s291
    %s295 = sphi 0, %s294
    %s311 = sphi 0, %s295
  $region4: #{dense_block_drop_forward.1} parent=0 // loop_header_branch
    %22 = sbr.rel (%p20) target = $region8
  $region5: #{dense_block_drop_forward.1} parent=0 // loop_body
    %s24 = ssub.s32 %s19, 1
    %s25 = ssub.s32 %s19, 2
    %s26 = sadd.s32 %s19, 1
    %s27 = ssub.s32 %s19, %s26
    %p28 = scmp.eq.s32.totalorder %s27, 0
    %s30 = sadd.s32 %s29, 1
    %s31 = scalar_select %p28, %s29, %s30
    %p34 = pneg %p28
    %p35 = scmp.eq.s32.totalorder %s19, 1
    %p36 = por %p34, %p35
    %p37 = scmp.ne.s32.totalorder %s29, %s32
    %p38 = scmp.eq.s32.totalorder %s19, 0
    %p39 = por %p37, %p38
    %p40 = scmp.ne.s32.totalorder %s29, %s32
    %p41 = scmp.eq.s32.totalorder %s24, 1
    %p42 = por %p40, %p41
    %p43 = scmp.ne.s32.totalorder %s32, %s33
    %p44 = scmp.eq.s32.totalorder %s24, 0
    %p45 = por %p43, %p44
    %p46 = scmp.ne.s32.totalorder %s32, %s33
    %p47 = scmp.eq.s32.totalorder %s25, 1
    %p48 = por %p46, %p47
    %p50 = scmp.ne.s32.totalorder %s33, %s49
    %p51 = scmp.eq.s32.totalorder %s25, 0
    %p52 = por %p50, %p51
    %s54 = sadd.s32 %s53, 1
    %p57 = scmp.eq.s32.totalorder %s19, 1
    %p58 = scmp.ne.s32.totalorder %s53, %s55
    %p59 = scmp.eq.s32.totalorder %s19, 0
    %p60 = por %p58, %p59
    %p61 = scmp.ne.s32.totalorder %s53, %s55
    %p62 = scmp.eq.s32.totalorder %s24, 1
    %p63 = por %p61, %p62
    %p64 = scmp.ne.s32.totalorder %s55, %s56
    %p65 = scmp.eq.s32.totalorder %s24, 0
    %p66 = por %p64, %p65
    %p67 = scmp.ne.s32.totalorder %s55, %s56
    %p68 = scmp.eq.s32.totalorder %s25, 1
    %p69 = por %p67, %p68
    %p71 = scmp.ne.s32.totalorder %s56, %s70
    %p72 = scmp.eq.s32.totalorder %s25, 0
    %p73 = por %p71, %p72
    %s75 = sadd.s32 %s74, 1
    %p78 = scmp.eq.s32.totalorder %s19, 1
    %p79 = scmp.ne.s32.totalorder %s74, %s76
    %p80 = scmp.eq.s32.totalorder %s19, 0
    %p81 = por %p79, %p80
    %p82 = scmp.ne.s32.totalorder %s74, %s76
    %p83 = scmp.eq.s32.totalorder %s24, 1
    %p84 = por %p82, %p83
    %p85 = scmp.ne.s32.totalorder %s76, %s77
    %p86 = scmp.eq.s32.totalorder %s24, 0
    %p87 = por %p85, %p86
    %p88 = scmp.ne.s32.totalorder %s76, %s77
    %p89 = scmp.eq.s32.totalorder %s25, 1
    %p90 = por %p88, %p89
    %p92 = scmp.ne.s32.totalorder %s77, %s91
    %p93 = scmp.eq.s32.totalorder %s25, 0
    %p94 = por %p92, %p93
    %s96 = sadd.s32 %s95, 1
    %p99 = scmp.eq.s32.totalorder %s19, 1
    %p100 = scmp.ne.s32.totalorder %s95, %s97
    %p101 = scmp.eq.s32.totalorder %s19, 0
    %p102 = por %p100, %p101
    %p103 = scmp.ne.s32.totalorder %s95, %s97
    %p104 = scmp.eq.s32.totalorder %s24, 1
    %p105 = por %p103, %p104
    %p106 = scmp.ne.s32.totalorder %s97, %s98
    %p107 = scmp.eq.s32.totalorder %s24, 0
    %p108 = por %p106, %p107
    %p109 = scmp.ne.s32.totalorder %s97, %s98
    %p110 = scmp.eq.s32.totalorder %s25, 1
    %p111 = por %p109, %p110
    %p113 = scmp.ne.s32.totalorder %s98, %s112
    %p114 = scmp.eq.s32.totalorder %s25, 0
    %p115 = por %p113, %p114
    %s117 = sadd.s32 %s116, 1
    %p120 = scmp.eq.s32.totalorder %s19, 1
    %p121 = scmp.ne.s32.totalorder %s116, %s118
    %p122 = scmp.eq.s32.totalorder %s19, 0
    %p123 = por %p121, %p122
    %p124 = scmp.ne.s32.totalorder %s116, %s118
    %p125 = scmp.eq.s32.totalorder %s24, 1
    %p126 = por %p124, %p125
    %p127 = scmp.ne.s32.totalorder %s118, %s119
    %p128 = scmp.eq.s32.totalorder %s24, 0
    %p129 = por %p127, %p128
    %p130 = scmp.ne.s32.totalorder %s118, %s119
    %p131 = scmp.eq.s32.totalorder %s25, 1
    %p132 = por %p130, %p131
    %p134 = scmp.ne.s32.totalorder %s119, %s133
    %p135 = scmp.eq.s32.totalorder %s25, 0
    %p136 = por %p134, %p135
    %s138 = sadd.s32 %s137, 1
    %p141 = scmp.eq.s32.totalorder %s19, 1
    %p142 = scmp.ne.s32.totalorder %s137, %s139
    %p143 = scmp.eq.s32.totalorder %s19, 0
    %p144 = por %p142, %p143
    %p145 = scmp.ne.s32.totalorder %s137, %s139
    %p146 = scmp.eq.s32.totalorder %s24, 1
    %p147 = por %p145, %p146
    %p148 = scmp.ne.s32.totalorder %s139, %s140
    %p149 = scmp.eq.s32.totalorder %s24, 0
    %p150 = por %p148, %p149
    %p151 = scmp.ne.s32.totalorder %s139, %s140
    %p152 = scmp.eq.s32.totalorder %s25, 1
    %p153 = por %p151, %p152
    %p155 = scmp.ne.s32.totalorder %s140, %s154
    %p156 = scmp.eq.s32.totalorder %s25, 0
    %p157 = por %p155, %p156
    %s159 = sadd.s32 %s158, 1
    %p162 = scmp.eq.s32.totalorder %s19, 1
    %p163 = scmp.ne.s32.totalorder %s158, %s160
    %p164 = scmp.eq.s32.totalorder %s19, 0
    %p165 = por %p163, %p164
    %p166 = scmp.ne.s32.totalorder %s158, %s160
    %p167 = scmp.eq.s32.totalorder %s24, 1
    %p168 = por %p166, %p167
    %p169 = scmp.ne.s32.totalorder %s160, %s161
    %p170 = scmp.eq.s32.totalorder %s24, 0
    %p171 = por %p169, %p170
    %p172 = scmp.ne.s32.totalorder %s160, %s161
    %p173 = scmp.eq.s32.totalorder %s25, 1
    %p174 = por %p172, %p173
    %p176 = scmp.ne.s32.totalorder %s161, %s175
    %p177 = scmp.eq.s32.totalorder %s25, 0
    %p178 = por %p176, %p177
    %s180 = sadd.s32 %s179, 1
    %p183 = scmp.eq.s32.totalorder %s19, 1
    %p184 = scmp.ne.s32.totalorder %s179, %s181
    %p185 = scmp.eq.s32.totalorder %s19, 0
    %p186 = por %p184, %p185
    %p187 = scmp.ne.s32.totalorder %s179, %s181
    %p188 = scmp.eq.s32.totalorder %s24, 1
    %p189 = por %p187, %p188
    %p190 = scmp.ne.s32.totalorder %s181, %s182
    %p191 = scmp.eq.s32.totalorder %s24, 0
    %p192 = por %p190, %p191
    %p193 = scmp.ne.s32.totalorder %s181, %s182
    %p194 = scmp.eq.s32.totalorder %s25, 1
    %p195 = por %p193, %p194
    %p197 = scmp.ne.s32.totalorder %s182, %s196
    %p198 = scmp.eq.s32.totalorder %s25, 0
    %p199 = por %p197, %p198
    %s201 = sadd.s32 %s200, 1
    %p204 = scmp.eq.s32.totalorder %s19, 1
    %p205 = scmp.ne.s32.totalorder %s200, %s202
    %p206 = scmp.eq.s32.totalorder %s19, 0
    %p207 = por %p205, %p206
    %p208 = scmp.ne.s32.totalorder %s200, %s202
    %p209 = scmp.eq.s32.totalorder %s24, 1
    %p210 = por %p208, %p209
    %p211 = scmp.ne.s32.totalorder %s202, %s203
    %p212 = scmp.eq.s32.totalorder %s24, 0
    %p213 = por %p211, %p212
    %p214 = scmp.ne.s32.totalorder %s202, %s203
    %p215 = scmp.eq.s32.totalorder %s25, 1
    %p216 = por %p214, %p215
    %p218 = scmp.ne.s32.totalorder %s203, %s217
    %p219 = scmp.eq.s32.totalorder %s25, 0
    %p220 = por %p218, %p219
    %s222 = sadd.s32 %s221, 1
    %p225 = scmp.eq.s32.totalorder %s19, 1
    %p226 = scmp.ne.s32.totalorder %s221, %s223
    %p227 = scmp.eq.s32.totalorder %s19, 0
    %p228 = por %p226, %p227
    %p229 = scmp.ne.s32.totalorder %s221, %s223
    %p230 = scmp.eq.s32.totalorder %s24, 1
    %p231 = por %p229, %p230
    %p232 = scmp.ne.s32.totalorder %s223, %s224
    %p233 = scmp.eq.s32.totalorder %s24, 0
    %p234 = por %p232, %p233
    %p235 = scmp.ne.s32.totalorder %s223, %s224
    %p236 = scmp.eq.s32.totalorder %s25, 1
    %p237 = por %p235, %p236
    %p239 = scmp.ne.s32.totalorder %s224, %s238
    %p240 = scmp.eq.s32.totalorder %s25, 0
    %p241 = por %p239, %p240
    %s243 = sadd.s32 %s242, 1
    %p246 = scmp.eq.s32.totalorder %s19, 1
    %p247 = scmp.ne.s32.totalorder %s242, %s244
    %p248 = scmp.eq.s32.totalorder %s19, 0
    %p249 = por %p247, %p248
    %p250 = scmp.ne.s32.totalorder %s242, %s244
    %p251 = scmp.eq.s32.totalorder %s24, 1
    %p252 = por %p250, %p251
    %p253 = scmp.ne.s32.totalorder %s244, %s245
    %p254 = scmp.eq.s32.totalorder %s24, 0
    %p255 = por %p253, %p254
    %p256 = scmp.ne.s32.totalorder %s244, %s245
    %p257 = scmp.eq.s32.totalorder %s25, 1
    %p258 = por %p256, %p257
    %p260 = scmp.ne.s32.totalorder %s245, %s259
    %p261 = scmp.eq.s32.totalorder %s25, 0
    %p262 = por %p260, %p261
    %s263 = ssub.s32 %s19, %s26
    %p264 = scmp.eq.s32.totalorder %s263, 0
    %s266 = sadd.s32 %s265, 1
    %s267 = scalar_select %p264, %s265, %s266
    %p270 = pneg %p264
    %p271 = scmp.eq.s32.totalorder %s19, 1
    %p272 = por %p270, %p271
    %p273 = scmp.ne.s32.totalorder %s265, %s268
    %p274 = scmp.eq.s32.totalorder %s19, 0
    %p275 = por %p273, %p274
    %p276 = scmp.ne.s32.totalorder %s265, %s268
    %p277 = scmp.eq.s32.totalorder %s24, 1
    %p278 = por %p276, %p277
    %p279 = scmp.ne.s32.totalorder %s268, %s269
    %p280 = scmp.eq.s32.totalorder %s24, 0
    %p281 = por %p279, %p280
    %p282 = scmp.ne.s32.totalorder %s268, %s269
    %p283 = scmp.eq.s32.totalorder %s25, 1
    %p284 = por %p282, %p283
    %p286 = scmp.ne.s32.totalorder %s269, %s285
    %p287 = scmp.eq.s32.totalorder %s25, 0
    %p288 = por %p286, %p287
    %s289 = ssub.s32 %s19, %s26
    %p290 = scmp.eq.s32.totalorder %s289, 0
    %s292 = sadd.s32 %s291, 1
    %s293 = scalar_select %p290, %s291, %s292
    %p296 = pneg %p290
    %p297 = scmp.eq.s32.totalorder %s19, 1
    %p298 = por %p296, %p297
    %p299 = scmp.ne.s32.totalorder %s291, %s294
    %p300 = scmp.eq.s32.totalorder %s19, 0
    %p301 = por %p299, %p300
    %p302 = scmp.ne.s32.totalorder %s291, %s294
    %p303 = scmp.eq.s32.totalorder %s24, 1
    %p304 = por %p302, %p303
    %p305 = scmp.ne.s32.totalorder %s294, %s295
    %p306 = scmp.eq.s32.totalorder %s24, 0
    %p307 = por %p305, %p306
    %p308 = scmp.ne.s32.totalorder %s294, %s295
    %p309 = scmp.eq.s32.totalorder %s25, 1
    %p310 = por %p308, %p309
    %p312 = scmp.ne.s32.totalorder %s295, %s311
    %p313 = scmp.eq.s32.totalorder %s25, 0
    %p314 = por %p312, %p313
    %p315 = scmp.le.s32.totalorder 1, %s19
    %p316 = scmp.lt.s32.totalorder %s19, 3
    %p317 = pnand %p315, %p316
    %p318 = pneg %p317
    // Predicated region
    $region9: #{dense_block_drop_forward.1} parent=5 // pred_check
      _
    $region10: #{dense_block_drop_forward.1} parent=5 // pred_check_branch
      %320 = sbr.rel (%p317) target = $region12
    $region11: #{dense_block_drop_forward.1} parent=5 // pred_region
      %s321 = ssub.s32 %s19, 1
      // Predicated region
      $region13: #{dense_block_drop_forward.1} parent=11 // pred_check
        %p322 = pneg %p66
      $region14: #{dense_block_drop_forward.1} parent=11 // pred_check_branch
        %324 = sbr.rel (%p322) target = $region16
      $region15: #{dense_block_drop_forward.1} parent=11 // pred_region
        _
      $region16: #{dense_block_drop_forward.1} parent=11 // pred_fallthru
        _
      // Predicated region
      $region17: #{dense_block_drop_forward.1} parent=11 // pred_check
        %p325 = pneg %p87
      $region18: #{dense_block_drop_forward.1} parent=11 // pred_check_branch
        %327 = sbr.rel (%p325) target = $region20
      $region19: #{dense_block_drop_forward.1} parent=11 // pred_region
        _
      $region20: #{dense_block_drop_forward.1} parent=11 // pred_fallthru
        _
      // Predicated region
      $region21: #{dense_block_drop_forward.1} parent=11 // pred_check
        %p328 = pneg %p108
      $region22: #{dense_block_drop_forward.1} parent=11 // pred_check_branch
        %330 = sbr.rel (%p328) target = $region24
      $region23: #{dense_block_drop_forward.1} parent=11 // pred_region
        _
      $region24: #{dense_block_drop_forward.1} parent=11 // pred_fallthru
        _
      // Predicated region
      $region25: #{dense_block_drop_forward.1} parent=11 // pred_check
        %p331 = pneg %p129
      $region26: #{dense_block_drop_forward.1} parent=11 // pred_check_branch
        %333 = sbr.rel (%p331) target = $region28
      $region27: #{dense_block_drop_forward.1} parent=11 // pred_region
        _
      $region28: #{dense_block_drop_forward.1} parent=11 // pred_fallthru
        _
      // Predicated region
      $region29: #{dense_block_drop_forward.1} parent=11 // pred_check
        %p334 = pneg %p150
      $region30: #{dense_block_drop_forward.1} parent=11 // pred_check_branch
        %336 = sbr.rel (%p334) target = $region32
      $region31: #{dense_block_drop_forward.1} parent=11 // pred_region
        _
      $region32: #{dense_block_drop_forward.1} parent=11 // pred_fallthru
        _
      // Predicated region
      $region33: #{dense_block_drop_forward.1} parent=11 // pred_check
        %p337 = pneg %p171
      $region34: #{dense_block_drop_forward.1} parent=11 // pred_check_branch
        %339 = sbr.rel (%p337) target = $region36
      $region35: #{dense_block_drop_forward.1} parent=11 // pred_region
        _
      $region36: #{dense_block_drop_forward.1} parent=11 // pred_fallthru
        _
      // Predicated region
      $region37: #{dense_block_drop_forward.1} parent=11 // pred_check
        %p340 = pneg %p192
      $region38: #{dense_block_drop_forward.1} parent=11 // pred_check_branch
        %342 = sbr.rel (%p340) target = $region40
      $region39: #{dense_block_drop_forward.1} parent=11 // pred_region
        _
      $region40: #{dense_block_drop_forward.1} parent=11 // pred_fallthru
        _
      // Predicated region
      $region41: #{dense_block_drop_forward.1} parent=11 // pred_check
        %p343 = pneg %p213
      $region42: #{dense_block_drop_forward.1} parent=11 // pred_check_branch
        %345 = sbr.rel (%p343) target = $region44
      $region43: #{dense_block_drop_forward.1} parent=11 // pred_region
        _
      $region44: #{dense_block_drop_forward.1} parent=11 // pred_fallthru
        _
      // Predicated region
      $region45: #{dense_block_drop_forward.1} parent=11 // pred_check
        %p346 = pneg %p234
      $region46: #{dense_block_drop_forward.1} parent=11 // pred_check_branch
        %348 = sbr.rel (%p346) target = $region48
      $region47: #{dense_block_drop_forward.1} parent=11 // pred_region
        _
      $region48: #{dense_block_drop_forward.1} parent=11 // pred_fallthru
        _
      // Predicated region
      $region49: #{dense_block_drop_forward.1} parent=11 // pred_check
        %p349 = pneg %p255
      $region50: #{dense_block_drop_forward.1} parent=11 // pred_check_branch
        %351 = sbr.rel (%p349) target = $region52
      $region51: #{dense_block_drop_forward.1} parent=11 // pred_region
        _
      $region52: #{dense_block_drop_forward.1} parent=11 // pred_fallthru
        _
    $region12: #{dense_block_drop_forward.1} parent=5 // pred_fallthru
      _
    %p352 = scmp.lt.s32.totalorder %s19, 2
    // Predicated region
    $region53: #{dense_block_drop_forward.1} parent=5 // pred_check
      %p353 = pneg %p352
    $region54: #{dense_block_drop_forward.1} parent=5 // pred_check_branch
      %355 = sbr.rel (%p353) target = $region56
    $region55: #{dense_block_drop_forward.1} parent=5 // pred_region
      // Predicated region
      $region57: #{dense_block_drop_forward.1} parent=55 // pred_check
        %p356 = pneg %p39
      $region58: #{dense_block_drop_forward.1} parent=55 // pred_check_branch
        %358 = sbr.rel (%p356) target = $region60
      $region59: #{dense_block_drop_forward.1} parent=55 // pred_region
        %p359 = scmp.lt.s32.totalorder %s19, 1
        %s360 = scalar_select %p359, %s19, 1
        %s361 = smul.addr %s360, 2
        %s362 = smul.addr %s361, 8
        %s363 = scalar_lea.vmem %s0, %s362
      $region60: #{dense_block_drop_forward.1} parent=55 // pred_fallthru
        _
    $region56: #{dense_block_drop_forward.1} parent=5 // pred_fallthru
      _
    %p364 = scmp.le.s32.totalorder 1, %s19
    %p365 = scmp.lt.s32.totalorder %s19, 3
    %p366 = pnand %p364, %p365
    %p367 = pneg %p366
    // Predicated region
    $region61: #{dense_block_drop_forward.1} parent=5 // pred_check
      _
    $region62: #{dense_block_drop_forward.1} parent=5 // pred_check_branch
      %369 = sbr.rel (%p366) target = $region64
    $region63: #{dense_block_drop_forward.1} parent=5 // pred_region
      %s370 = ssub.s32 %s19, 1
      %p371 = scmp.lt.s32.totalorder %s24, 1
      %s372 = scalar_select %p371, %s24, 1
      %s373 = smul.addr %s372, 2
      %s374 = smul.addr %s373, 8
      %s375 = scalar_lea.vmem %s0, %s374
      %p376 = pneg %p45
      %p377 = pneg %p42
      %p378 = pneg %p66
      %p379 = pneg %p63
      %p380 = pneg %p87
      %p381 = pneg %p84
      %p382 = pneg %p108
      %p383 = pneg %p105
      %p384 = pneg %p129
      %p385 = pneg %p126
      %p386 = pneg %p150
      %p387 = pneg %p147
      %p388 = pneg %p171
      %p389 = pneg %p168
      %p390 = pneg %p192
      %p391 = pneg %p189
      %p392 = pneg %p213
      %p393 = pneg %p210
      %p394 = pneg %p234
      %p395 = pneg %p231
      %p396 = pneg %p255
      %p397 = pneg %p252
      %p398 = pneg %p281
      %p399 = pneg %p278
      %p400 = scmp.lt.s32.totalorder %s24, 1
      %s401 = scalar_select %p400, %s24, 1
      %s402 = smul.addr %s401, 8
      %s403 = scalar_lea.vmem %s11, %s402
      %p404 = pneg %p307
      %p405 = pneg %p304
      %p406 = scmp.lt.s32.totalorder %s24, 1
      %s407 = scalar_select %p406, %s24, 1
      %s408 = smul.addr %s407, 2
      %s409 = smul.addr %s408, 8
      %s410 = scalar_lea.vmem %s12, %s409
      %p411 = scmp.lt.s32.totalorder %s24, 1
      %s412 = scalar_select %p411, %s24, 1
      %s413 = smul.addr %s412, 2
      %s414 = smul.addr %s413, 8
      %s415 = scalar_lea.vmem %s0, %s414
      %p416 = scmp.lt.s32.totalorder %s24, 1
      %s417 = scalar_select %p416, %s24, 1
      %s418 = smul.addr %s417, 8
      %s419 = scalar_lea.vmem %s11, %s418
      %p420 = scmp.lt.s32.totalorder %s24, 1
      %s421 = scalar_select %p420, %s24, 1
      %s422 = smul.addr %s421, 2
      %s423 = smul.addr %s422, 8
      %s424 = scalar_lea.vmem %s12, %s423
      %425 = vst [vmem:[#allocation2] sm:$0xff] 0.0
      %vm426 = vcmask 130048
      %427 = vst.msk [vmem:[#allocation2 + $0x8] sm:$0xff] %vm426, 0.0
      %428 = vst [vmem:[#allocation2 + $0x10] sm:$0xff] 0.0
      %429 = vst.msk [vmem:[#allocation2 + $0x18] sm:$0xff] %vm426, 0.0
      %430 = vst [vmem:[#allocation2 + $0x20] sm:$0x3] 0.0
      %vm431 = vcmask 123904
      %432 = vst.msk [vmem:[#allocation2 + $0x28] sm:$0x3] %vm431, 0.0
      %v433 = vld [vmem:[%s415] sm:$0xff]
      %v434 = vld [vmem:[%s415 + $0x8] sm:$0xff]
      %vm437 = vcmask 1040384
      %v438 = vrot.slane %v433, 7
      %v439 = vrot.slane %v434, 7
      %v440 = vsel %vm437, %v438, %v439
      %441 = vrot.lane.b32.xlu0 %v438, 8
      %v442 = vpop.permute.xlu0 %441
      %443 = vrot.lane.b32.xlu0 %v440, 8
      %v444 = vpop.permute.xlu0 %443
      %445 = vrot.lane.b32.xlu0 %v439, 8
      %v446 = vpop.permute.xlu0 %445
      %vm450 = vcmask 1047617
      %451 = vst.msk [vmem:[#allocation2] sm:$0xfe] %vm450, %v442
      %vm452 = vcmask 64513
      %453 = vst.msk [vmem:[#allocation2 + $0x8] sm:$0xfe] %vm452, %v442
      %vm454 = vcmask 1047616
      %455 = vst.msk [vmem:[#allocation2 + $0x10] sm:$0xff] %vm454, %v444
      %vm456 = vcmask 64512
      %457 = vst.msk [vmem:[#allocation2 + $0x18] sm:$0xff] %vm456, %v444
      %vm458 = vcmask 1040448
      %459 = vst.msk [vmem:[#allocation2 + $0x20] sm:$0x1] %vm458, %v446
      %vm460 = vcmask 57344
      %461 = vst.msk [vmem:[#allocation2 + $0x28] sm:$0x1] %vm460, %v446
      %v462 = vld [vmem:[#allocation2] sm:$0xff]
      %v463 = vld [vmem:[#allocation2 + $0x8] sm:$0xff]
      %v464 = vld [vmem:[#allocation2 + $0x10] sm:$0xff]
      %v465 = vld [vmem:[#allocation2 + $0x18] sm:$0xff]
      %v466 = vld [vmem:[%s1] sm:$0xff]
      %v467 = vld [vmem:[%s1 + $0x8] sm:$0xff]
      %v468 = vld [vmem:[%s1 + $0x10] sm:$0xff]
      %v469 = vld [vmem:[%s1 + $0x18] sm:$0xff]
      %v470 = vld [vmem:[%s1 + $0x20] sm:$0xff]
      %v471 = vld [vmem:[%s1 + $0x28] sm:$0xff]
      %v472 = vld [vmem:[%s1 + $0x30] sm:$0xff]
      %v473 = vld [vmem:[%s1 + $0x38] sm:$0xff]
      %v474 = vld [vmem:[%s1 + $0x40] sm:$0xff]
      %v475 = vld [vmem:[%s1 + $0x48] sm:$0xff]
      %v476 = vld [vmem:[%s1 + $0x50] sm:$0xff]
      %v477 = vld [vmem:[%s1 + $0x58] sm:$0xff]
      %v478 = vld [vmem:[%s1 + $0x60] sm:$0xff]
      %v479 = vld [vmem:[%s1 + $0x68] sm:$0xff]
      %v480 = vld [vmem:[%s1 + $0x70] sm:$0xff]
      %v481 = vld [vmem:[%s1 + $0x78] sm:$0xff]
      %v482 = vld [vmem:[%s1 + $0x80] sm:$0xff]
      %v483 = vld [vmem:[%s1 + $0x88] sm:$0xff]
      %v484 = vld [vmem:[#allocation2] sm:$0xfe]
      %v485 = vld [vmem:[#allocation2 + $0x8] sm:$0xfe]
      %v486 = vld [vmem:[#allocation2 + $0x20] sm:$0x1]
      %v487 = vld [vmem:[#allocation2 + $0x28] sm:$0x1]
      %s488 = scalar_lea.vmem %s1, 144
      %v489 = vld [vmem:[%s488] sm:$0xff]
      %v490 = vld [vmem:[%s488 + $0x8] sm:$0xff]
      %v491 = vld [vmem:[%s488 + $0x10] sm:$0xff]
      %v492 = vld [vmem:[%s488 + $0x18] sm:$0xff]
      %v493 = vld [vmem:[%s488 + $0x20] sm:$0xff]
      %v494 = vld [vmem:[%s488 + $0x28] sm:$0xff]
      %v495 = vld [vmem:[%s488 + $0x30] sm:$0xff]
      %v496 = vld [vmem:[%s488 + $0x38] sm:$0xff]
      %v497 = vld [vmem:[%s488 + $0x40] sm:$0xff]
      %v498 = vld [vmem:[%s488 + $0x48] sm:$0xff]
      %v499 = vld [vmem:[%s488 + $0x50] sm:$0xff]
      %v500 = vld [vmem:[%s488 + $0x58] sm:$0xff]
      %v501 = vld [vmem:[%s488 + $0x60] sm:$0xff]
      %v502 = vld [vmem:[%s488 + $0x68] sm:$0xff]
      %v503 = vld [vmem:[%s488 + $0x70] sm:$0xff]
      %v504 = vld [vmem:[%s488 + $0x78] sm:$0xff]
      %v505 = vld [vmem:[%s488 + $0x80] sm:$0xff]
      %v506 = vld [vmem:[%s488 + $0x88] sm:$0xff]
      %vm513 = vcmask 1046528
      %v514 = vrot.slane %v484, 1
      %v515 = vrot.slane %v464, 1
      %v516 = vsel %vm513, %v514, %v515
      %v517 = vrot.slane %v485, 1
      %v518 = vrot.slane %v465, 1
      %v519 = vsel %vm513, %v517, %v518
      %v520 = vrot.slane %v486, 1
      %v521 = vsel %vm513, %v515, %v520
      %v522 = vrot.slane %v487, 1
      %v523 = vsel %vm513, %v518, %v522
      %v526 = vsel %vm426, %v519, 0
      %v528 = vsel %vm426, %v523, 0
      %530 = vmatprep.subr.mxu0 0.0
      %531 = vmatpush1.msra.mxu0 %v504
      %532 = vmatprep.subr.mxu0 0.0
      %533 = vmatpush1.msra.mxu0 %v503
      %534 = vmatprep.subr.mxu0 0.0
      %535 = vmatpush1.msra.mxu0 %v502
      %536 = vmatprep.subr.mxu0 0.0
      %537 = vmatpush1.msra.mxu0 %v501
      %538 = vmatprep.subr.mxu0 0.0
      %539 = vmatpush1.msra.mxu0 %v500
      %540 = vmatprep.subr.mxu0 0.0
      %541 = vmatpush1.msra.mxu0 %v499
      %542 = vmatprep.subr.mxu0 0.0
      %543 = vmatpush1.msra.mxu0 %v498
      %544 = vmatprep.subr.mxu0 0.0
      %545 = vmatpush1.msra.mxu0 %v497
      %546 = vmatprep.subr.mxu0 0.0
      %547 = vmatpush1.msra.mxu0 %v496
      %548 = vmatprep.subr.mxu0 0.0
      %549 = vmatpush1.msra.mxu0 %v495
      %550 = vmatprep.subr.mxu0 0.0
      %551 = vmatpush1.msra.mxu0 %v494
      %552 = vmatprep.subr.mxu0 0.0
      %553 = vmatpush1.msra.mxu0 %v493
      %554 = vmatprep.subr.mxu0 0.0
      %555 = vmatpush1.msra.mxu0 %v492
      %556 = vmatprep.subr.mxu0 0.0
      %557 = vmatpush1.msra.mxu0 %v491
      %558 = vmatprep.subr.mxu0 0.0
      %559 = vmatpush1.msra.mxu0 %v490
      %560 = vmatprep.subr.mxu0 0.0
      %561 = vmatpush1.msra.mxu0 %v489
      %562 = vmatprep.subr.mxu0 0.0
      %563 = vmatpush2.msra.mxu0 0.0
      %564 = vmatprep.subr.mxu0 0.0
      %565 = vmatpush2.msra.mxu0 0.0
      %566 = vmatprep.subr.mxu0 0.0
      %567 = vmatpush2.msra.mxu0 0.0
      %568 = vmatprep.subr.mxu0 0.0
      %569 = vmatpush2.msra.mxu0 0.0
      %570 = vmatprep.subr.mxu0 0.0
      %571 = vmatpush2.msra.mxu0 0.0
      %572 = vmatprep.subr.mxu0 0.0
      %573 = vmatpush2.msra.mxu0 0.0
      %574 = vmatprep.subr.mxu0 0.0
      %575 = vmatpush2.msra.mxu0 0.0
      %576 = vmatprep.subr.mxu0 0.0
      %577 = vmatpush2.msra.mxu0 0.0
      %578 = vmatprep.subr.mxu0 0.0
      %579 = vmatpush2.msra.mxu0 0.0
      %580 = vmatprep.subr.mxu0 0.0
      %581 = vmatpush2.msra.mxu0 0.0
      %582 = vmatprep.subr.mxu0 0.0
      %583 = vmatpush2.msra.mxu0 0.0
      %584 = vmatprep.subr.mxu0 0.0
      %585 = vmatpush2.msra.mxu0 0.0
      %586 = vmatprep.subr.mxu0 0.0
      %587 = vmatpush2.msra.mxu0 0.0
      %588 = vmatprep.subr.mxu0 0.0
      %589 = vmatpush2.msra.mxu0 0.0
      %590 = vmatprep.subr.mxu0 0.0
      %591 = vmatpush2.msra.mxu0 %v506
      %592 = vmatprep.subr.mxu0 0.0
      %593 = vmatpush2.msra.mxu0 %v505
      %594 = vmatprep.mubr.f32.mxu0 %v526
      %595 = vmatmul.mubr.f32.gmra.mxu0 %v516
      %v596 = vpop.f32.mrf.mxu0
      %v597 = vadd.f32 0.0, %v596
      %v598 = vpop.f32.mrf.mxu0
      %599 = vmatprep.mubr.f32.mxu0 %v528
      %600 = vmatmul.mubr.f32.gmra.mxu0 %v521
      %v601 = vpop.f32.mrf.mxu0
      %v602 = vadd.f32 0.0, %v601
      %v603 = vpop.f32.mrf.mxu0
      %604 = vdwg.mxu0
      %v606 = vsel %vm426, %v463, 0
      %v608 = vsel %vm426, %v465, 0
      %610 = vmatprep.subr.mxu0 0.0
      %611 = vmatpush1.msra.mxu0 %v481
      %612 = vmatprep.subr.mxu0 0.0
      %613 = vmatpush1.msra.mxu0 %v480
      %614 = vmatprep.subr.mxu0 0.0
      %615 = vmatpush1.msra.mxu0 %v479
      %616 = vmatprep.subr.mxu0 0.0
      %617 = vmatpush1.msra.mxu0 %v478
      %618 = vmatprep.subr.mxu0 0.0
      %619 = vmatpush1.msra.mxu0 %v477
      %620 = vmatprep.subr.mxu0 0.0
      %621 = vmatpush1.msra.mxu0 %v476
      %622 = vmatprep.subr.mxu0 0.0
      %623 = vmatpush1.msra.mxu0 %v475
      %624 = vmatprep.subr.mxu0 0.0
      %625 = vmatpush1.msra.mxu0 %v474
      %626 = vmatprep.subr.mxu0 0.0
      %627 = vmatpush1.msra.mxu0 %v473
      %628 = vmatprep.subr.mxu0 0.0
      %629 = vmatpush1.msra.mxu0 %v472
      %630 = vmatprep.subr.mxu0 0.0
      %631 = vmatpush1.msra.mxu0 %v471
      %632 = vmatprep.subr.mxu0 0.0
      %633 = vmatpush1.msra.mxu0 %v470
      %634 = vmatprep.subr.mxu0 0.0
      %635 = vmatpush1.msra.mxu0 %v469
      %636 = vmatprep.subr.mxu0 0.0
      %637 = vmatpush1.msra.mxu0 %v468
      %638 = vmatprep.subr.mxu0 0.0
      %639 = vmatpush1.msra.mxu0 %v467
      %640 = vmatprep.subr.mxu0 0.0
      %641 = vmatpush1.msra.mxu0 %v466
      %642 = vmatprep.subr.mxu0 0.0
      %643 = vmatpush2.msra.mxu0 0.0
      %644 = vmatprep.subr.mxu0 0.0
      %645 = vmatpush2.msra.mxu0 0.0
      %646 = vmatprep.subr.mxu0 0.0
      %647 = vmatpush2.msra.mxu0 0.0
      %648 = vmatprep.subr.mxu0 0.0
      %649 = vmatpush2.msra.mxu0 0.0
      %650 = vmatprep.subr.mxu0 0.0
      %651 = vmatpush2.msra.mxu0 0.0
      %652 = vmatprep.subr.mxu0 0.0
      %653 = vmatpush2.msra.mxu0 0.0
      %654 = vmatprep.subr.mxu0 0.0
      %655 = vmatpush2.msra.mxu0 0.0
      %656 = vmatprep.subr.mxu0 0.0
      %657 = vmatpush2.msra.mxu0 0.0
      %658 = vmatprep.subr.mxu0 0.0
      %659 = vmatpush2.msra.mxu0 0.0
      %660 = vmatprep.subr.mxu0 0.0
      %661 = vmatpush2.msra.mxu0 0.0
      %662 = vmatprep.subr.mxu0 0.0
      %663 = vmatpush2.msra.mxu0 0.0
      %664 = vmatprep.subr.mxu0 0.0
      %665 = vmatpush2.msra.mxu0 0.0
      %666 = vmatprep.subr.mxu0 0.0
      %667 = vmatpush2.msra.mxu0 0.0
      %668 = vmatprep.subr.mxu0 0.0
      %669 = vmatpush2.msra.mxu0 0.0
      %670 = vmatprep.subr.mxu0 0.0
      %671 = vmatpush2.msra.mxu0 %v483
      %672 = vmatprep.subr.mxu0 0.0
      %673 = vmatpush2.msra.mxu0 %v482
      %674 = vmatprep.mubr.f32.mxu0 %v606
      %675 = vmatmul.mubr.f32.gmra.mxu0 %v462
      %v676 = vpop.f32.mrf.mxu0
      %v677 = vadd.f32 %v597, %v676
      %v678 = vpop.f32.mrf.mxu0
      %679 = vmatprep.mubr.f32.mxu0 %v608
      %680 = vmatmul.mubr.f32.gmra.mxu0 %v464
      %v681 = vpop.f32.mrf.mxu0
      %v682 = vadd.f32 %v602, %v681
      %v683 = vpop.f32.mrf.mxu0
      %684 = vdwg.mxu0
      %v685 = vld [vmem:[#allocation2] sm:$0xfc]
      %v686 = vld [vmem:[#allocation2 + $0x8] sm:$0xfc]
      %v687 = vld [vmem:[#allocation2 + $0x20] sm:$0x3]
      %v688 = vld [vmem:[#allocation2 + $0x28] sm:$0x3]
      %s689 = scalar_lea.vmem %s1, 288
      %v690 = vld [vmem:[%s689] sm:$0xff]
      %v691 = vld [vmem:[%s689 + $0x8] sm:$0xff]
      %v692 = vld [vmem:[%s689 + $0x10] sm:$0xff]
      %v693 = vld [vmem:[%s689 + $0x18] sm:$0xff]
      %v694 = vld [vmem:[%s689 + $0x20] sm:$0xff]
      %v695 = vld [vmem:[%s689 + $0x28] sm:$0xff]
      %v696 = vld [vmem:[%s689 + $0x30] sm:$0xff]
      %v697 = vld [vmem:[%s689 + $0x38] sm:$0xff]
      %v698 = vld [vmem:[%s689 + $0x40] sm:$0xff]
      %v699 = vld [vmem:[%s689 + $0x48] sm:$0xff]
      %v700 = vld [vmem:[%s689 + $0x50] sm:$0xff]
      %v701 = vld [vmem:[%s689 + $0x58] sm:$0xff]
      %v702 = vld [vmem:[%s689 + $0x60] sm:$0xff]
      %v703 = vld [vmem:[%s689 + $0x68] sm:$0xff]
      %v704 = vld [vmem:[%s689 + $0x70] sm:$0xff]
      %v705 = vld [vmem:[%s689 + $0x78] sm:$0xff]
      %v706 = vld [vmem:[%s689 + $0x80] sm:$0xff]
      %v707 = vld [vmem:[%s689 + $0x88] sm:$0xff]
      %vm712 = vcmask 1045504
      %v713 = vrot.slane %v685, 2
      %v714 = vrot.slane %v464, 2
      %v715 = vsel %vm712, %v713, %v714
      %v716 = vrot.slane %v686, 2
      %v717 = vrot.slane %v465, 2
      %v718 = vsel %vm712, %v716, %v717
      %v719 = vrot.slane %v687, 2
      %v720 = vsel %vm712, %v714, %v719
      %v721 = vrot.slane %v688, 2
      %v722 = vsel %vm712, %v717, %v721
      %v725 = vsel %vm426, %v718, 0
      %v727 = vsel %vm426, %v722, 0
      %729 = vmatprep.subr.mxu0 0.0
      %730 = vmatpush1.msra.mxu0 %v705
      %731 = vmatprep.subr.mxu0 0.0
      %732 = vmatpush1.msra.mxu0 %v704
      %733 = vmatprep.subr.mxu0 0.0
      %734 = vmatpush1.msra.mxu0 %v703
      %735 = vmatprep.subr.mxu0 0.0
      %736 = vmatpush1.msra.mxu0 %v702
      %737 = vmatprep.subr.mxu0 0.0
      %738 = vmatpush1.msra.mxu0 %v701
      %739 = vmatprep.subr.mxu0 0.0
      %740 = vmatpush1.msra.mxu0 %v700
      %741 = vmatprep.subr.mxu0 0.0
      %742 = vmatpush1.msra.mxu0 %v699
      %743 = vmatprep.subr.mxu0 0.0
      %744 = vmatpush1.msra.mxu0 %v698
      %745 = vmatprep.subr.mxu0 0.0
      %746 = vmatpush1.msra.mxu0 %v697
      %747 = vmatprep.subr.mxu0 0.0
      %748 = vmatpush1.msra.mxu0 %v696
      %749 = vmatprep.subr.mxu0 0.0
      %750 = vmatpush1.msra.mxu0 %v695
      %751 = vmatprep.subr.mxu0 0.0
      %752 = vmatpush1.msra.mxu0 %v694
      %753 = vmatprep.subr.mxu0 0.0
      %754 = vmatpush1.msra.mxu0 %v693
      %755 = vmatprep.subr.mxu0 0.0
      %756 = vmatpush1.msra.mxu0 %v692
      %757 = vmatprep.subr.mxu0 0.0
      %758 = vmatpush1.msra.mxu0 %v691
      %759 = vmatprep.subr.mxu0 0.0
      %760 = vmatpush1.msra.mxu0 %v690
      %761 = vmatprep.subr.mxu0 0.0
      %762 = vmatpush2.msra.mxu0 0.0
      %763 = vmatprep.subr.mxu0 0.0
      %764 = vmatpush2.msra.mxu0 0.0
      %765 = vmatprep.subr.mxu0 0.0
      %766 = vmatpush2.msra.mxu0 0.0
      %767 = vmatprep.subr.mxu0 0.0
      %768 = vmatpush2.msra.mxu0 0.0
      %769 = vmatprep.subr.mxu0 0.0
      %770 = vmatpush2.msra.mxu0 0.0
      %771 = vmatprep.subr.mxu0 0.0
      %772 = vmatpush2.msra.mxu0 0.0
      %773 = vmatprep.subr.mxu0 0.0
      %774 = vmatpush2.msra.mxu0 0.0
      %775 = vmatprep.subr.mxu0 0.0
      %776 = vmatpush2.msra.mxu0 0.0
      %777 = vmatprep.subr.mxu0 0.0
      %778 = vmatpush2.msra.mxu0 0.0
      %779 = vmatprep.subr.mxu0 0.0
      %780 = vmatpush2.msra.mxu0 0.0
      %781 = vmatprep.subr.mxu0 0.0
      %782 = vmatpush2.msra.mxu0 0.0
      %783 = vmatprep.subr.mxu0 0.0
      %784 = vmatpush2.msra.mxu0 0.0
      %785 = vmatprep.subr.mxu0 0.0
      %786 = vmatpush2.msra.mxu0 0.0
      %787 = vmatprep.subr.mxu0 0.0
      %788 = vmatpush2.msra.mxu0 0.0
      %789 = vmatprep.subr.mxu0 0.0
      %790 = vmatpush2.msra.mxu0 %v707
      %791 = vmatprep.subr.mxu0 0.0
      %792 = vmatpush2.msra.mxu0 %v706
      %793 = vmatprep.mubr.f32.mxu0 %v725
      %794 = vmatmul.mubr.f32.gmra.mxu0 %v715
      %v795 = vpop.f32.mrf.mxu0
      %v796 = vadd.f32 0.0, %v795
      %v797 = vpop.f32.mrf.mxu0
      %798 = vmatprep.mubr.f32.mxu0 %v727
      %799 = vmatmul.mubr.f32.gmra.mxu0 %v720
      %v800 = vpop.f32.mrf.mxu0
      %v801 = vadd.f32 0.0, %v800
      %v802 = vpop.f32.mrf.mxu0
      %803 = vdwg.mxu0
      %v804 = vadd.f32 %v677, %v796
      %v805 = vadd.f32 %v682, %v801
      %v806 = vld [vmem:[%s2] sm:$0x1]
      %v808 = vlaneseq
      %v809 = vshrl.u32 %v808, 7
      %v810 = vsub.s32 0, %v809
      %v811 = vrot.slane %v806, %v810
      %v813 = vadd.f32 %v804, %v811
      %v814 = vadd.f32 %v805, %v811
      %v815 = vmax.f32 %v813, 0.0
      %v816 = vmax.f32 %v814, 0.0
      %v817 = vld [vmem:[%s3] sm:$0xff]
      %v818 = vld [vmem:[%s3 + $0x8] sm:$0xff]
      %v819 = vld [vmem:[%s3 + $0x10] sm:$0xff]
      %v820 = vld [vmem:[%s3 + $0x18] sm:$0xff]
      %v821 = vld [vmem:[%s3 + $0x20] sm:$0xff]
      %v822 = vld [vmem:[%s3 + $0x28] sm:$0xff]
      %v823 = vld [vmem:[%s3 + $0x30] sm:$0xff]
      %v824 = vld [vmem:[%s3 + $0x38] sm:$0xff]
      %v825 = vld [vmem:[%s3 + $0x40] sm:$0xff]
      %v826 = vld [vmem:[%s3 + $0x48] sm:$0xff]
      %v827 = vld [vmem:[%s3 + $0x50] sm:$0xff]
      %v828 = vld [vmem:[%s3 + $0x58] sm:$0xff]
      %v829 = vld [vmem:[%s3 + $0x60] sm:$0xff]
      %v830 = vld [vmem:[%s3 + $0x68] sm:$0xff]
      %v831 = vld [vmem:[%s3 + $0x70] sm:$0xff]
      %v832 = vld [vmem:[%s3 + $0x78] sm:$0xff]
      %v833 = vld [vmem:[%s4] sm:$0x1]
      %v835 = vlaneseq
      %v836 = vshrl.u32 %v835, 7
      %v837 = vsub.s32 0, %v836
      %v838 = vrot.slane %v833, %v837
      %840 = vmatprep.subr.mxu0 0.0
      %841 = vmatpush1.msra.mxu0 %v832
      %842 = vmatprep.subr.mxu0 0.0
      %843 = vmatpush1.msra.mxu0 %v831
      %844 = vmatprep.subr.mxu0 0.0
      %845 = vmatpush1.msra.mxu0 %v830
      %846 = vmatprep.subr.mxu0 0.0
      %847 = vmatpush1.msra.mxu0 %v829
      %848 = vmatprep.subr.mxu0 0.0
      %849 = vmatpush1.msra.mxu0 %v828
      %850 = vmatprep.subr.mxu0 0.0
      %851 = vmatpush1.msra.mxu0 %v827
      %852 = vmatprep.subr.mxu0 0.0
      %853 = vmatpush1.msra.mxu0 %v826
      %854 = vmatprep.subr.mxu0 0.0
      %855 = vmatpush1.msra.mxu0 %v825
      %856 = vmatprep.subr.mxu0 0.0
      %857 = vmatpush1.msra.mxu0 %v824
      %858 = vmatprep.subr.mxu0 0.0
      %859 = vmatpush1.msra.mxu0 %v823
      %860 = vmatprep.subr.mxu0 0.0
      %861 = vmatpush1.msra.mxu0 %v822
      %862 = vmatprep.subr.mxu0 0.0
      %863 = vmatpush1.msra.mxu0 %v821
      %864 = vmatprep.subr.mxu0 0.0
      %865 = vmatpush1.msra.mxu0 %v820
      %866 = vmatprep.subr.mxu0 0.0
      %867 = vmatpush1.msra.mxu0 %v819
      %868 = vmatprep.subr.mxu0 0.0
      %869 = vmatpush1.msra.mxu0 %v818
      %870 = vmatprep.subr.mxu0 0.0
      %871 = vmatpush1.msra.mxu0 %v817
      %872 = vmatprep.subr.mxu0 0.0
      %873 = vmatpush2.msra.mxu0 0.0
      %874 = vmatprep.subr.mxu0 0.0
      %875 = vmatpush2.msra.mxu0 0.0
      %876 = vmatprep.subr.mxu0 0.0
      %877 = vmatpush2.msra.mxu0 0.0
      %878 = vmatprep.subr.mxu0 0.0
      %879 = vmatpush2.msra.mxu0 0.0
      %880 = vmatprep.subr.mxu0 0.0
      %881 = vmatpush2.msra.mxu0 0.0
      %882 = vmatprep.subr.mxu0 0.0
      %883 = vmatpush2.msra.mxu0 0.0
      %884 = vmatprep.subr.mxu0 0.0
      %885 = vmatpush2.msra.mxu0 0.0
      %886 = vmatprep.subr.mxu0 0.0
      %887 = vmatpush2.msra.mxu0 0.0
      %888 = vmatprep.subr.mxu0 0.0
      %889 = vmatpush2.msra.mxu0 0.0
      %890 = vmatprep.subr.mxu0 0.0
      %891 = vmatpush2.msra.mxu0 0.0
      %892 = vmatprep.subr.mxu0 0.0
      %893 = vmatpush2.msra.mxu0 0.0
      %894 = vmatprep.subr.mxu0 0.0
      %895 = vmatpush2.msra.mxu0 0.0
      %896 = vmatprep.subr.mxu0 0.0
      %897 = vmatpush2.msra.mxu0 0.0
      %898 = vmatprep.subr.mxu0 0.0
      %899 = vmatpush2.msra.mxu0 0.0
      %900 = vmatprep.subr.mxu0 0.0
      %901 = vmatpush2.msra.mxu0 0.0
      %902 = vmatprep.subr.mxu0 0.0
      %903 = vmatpush2.msra.mxu0 0.0
      %904 = vmatprep.mubr.f32.mxu0 0.0
      %905 = vmatmul.mubr.f32.gmra.mxu0 %v433
      %v906 = vpop.f32.mrf.mxu0
      %v907 = vadd.f32 %v838, %v906
      %v908 = vpop.f32.mrf.mxu0
      %909 = vmatprep.mubr.f32.mxu0 0.0
      %910 = vmatmul.mubr.f32.gmra.mxu0 %v434
      %v911 = vpop.f32.mrf.mxu0
      %v912 = vadd.f32 %v838, %v911
      %v913 = vpop.f32.mrf.mxu0
      %914 = vdwg.mxu0
      %v915 = vadd.f32 %v815, %v907
      %v916 = vadd.f32 %v816, %v912
      %v917 = vmax.f32 %v915, 0.0
      %v918 = vmax.f32 %v916, 0.0
      %v921 = vrot.slane %v917, 7
      %v922 = vrot.slane %v918, 7
      %v923 = vsel %vm437, %v921, %v922
      %924 = vrot.lane.b32.xlu0 %v921, 8
      %v925 = vpop.permute.xlu0 %924
      %926 = vrot.lane.b32.xlu0 %v923, 8
      %v927 = vpop.permute.xlu0 %926
      %928 = vrot.lane.b32.xlu0 %v922, 8
      %v929 = vpop.permute.xlu0 %928
      %933 = vst.msk [vmem:[#allocation2] sm:$0xfe] %vm450, %v925
      %934 = vst.msk [vmem:[#allocation2 + $0x8] sm:$0xfe] %vm452, %v925
      %935 = vst.msk [vmem:[#allocation2 + $0x10] sm:$0xff] %vm454, %v927
      %936 = vst.msk [vmem:[#allocation2 + $0x18] sm:$0xff] %vm456, %v927
      %937 = vst.msk [vmem:[#allocation2 + $0x20] sm:$0x1] %vm458, %v929
      %938 = vst.msk [vmem:[#allocation2 + $0x28] sm:$0x1] %vm460, %v929
      %v939 = vld [vmem:[#allocation2] sm:$0xff]
      %v940 = vld [vmem:[#allocation2 + $0x8] sm:$0xff]
      %v941 = vld [vmem:[#allocation2 + $0x10] sm:$0xff]
      %v942 = vld [vmem:[#allocation2 + $0x18] sm:$0xff]
      %v943 = vld [vmem:[%s1] sm:$0xff]
      %v944 = vld [vmem:[%s1 + $0x8] sm:$0xff]
      %v945 = vld [vmem:[%s1 + $0x10] sm:$0xff]
      %v946 = vld [vmem:[%s1 + $0x18] sm:$0xff]
      %v947 = vld [vmem:[%s1 + $0x20] sm:$0xff]
      %v948 = vld [vmem:[%s1 + $0x28] sm:$0xff]
      %v949 = vld [vmem:[%s1 + $0x30] sm:$0xff]
      %v950 = vld [vmem:[%s1 + $0x38] sm:$0xff]
      %v951 = vld [vmem:[%s1 + $0x40] sm:$0xff]
      %v952 = vld [vmem:[%s1 + $0x48] sm:$0xff]
      %v953 = vld [vmem:[%s1 + $0x50] sm:$0xff]
      %v954 = vld [vmem:[%s1 + $0x58] sm:$0xff]
      %v955 = vld [vmem:[%s1 + $0x60] sm:$0xff]
      %v956 = vld [vmem:[%s1 + $0x68] sm:$0xff]
      %v957 = vld [vmem:[%s1 + $0x70] sm:$0xff]
      %v958 = vld [vmem:[%s1 + $0x78] sm:$0xff]
      %v959 = vld [vmem:[%s1 + $0x80] sm:$0xff]
      %v960 = vld [vmem:[%s1 + $0x88] sm:$0xff]
      %v961 = vld [vmem:[#allocation2] sm:$0xfe]
      %v962 = vld [vmem:[#allocation2 + $0x8] sm:$0xfe]
      %v963 = vld [vmem:[#allocation2 + $0x20] sm:$0x1]
      %v964 = vld [vmem:[#allocation2 + $0x28] sm:$0x1]
      %v965 = vld [vmem:[%s488] sm:$0xff]
      %v966 = vld [vmem:[%s488 + $0x8] sm:$0xff]
      %v967 = vld [vmem:[%s488 + $0x10] sm:$0xff]
      %v968 = vld [vmem:[%s488 + $0x18] sm:$0xff]
      %v969 = vld [vmem:[%s488 + $0x20] sm:$0xff]
      %v970 = vld [vmem:[%s488 + $0x28] sm:$0xff]
      %v971 = vld [vmem:[%s488 + $0x30] sm:$0xff]
      %v972 = vld [vmem:[%s488 + $0x38] sm:$0xff]
      %v973 = vld [vmem:[%s488 + $0x40] sm:$0xff]
      %v974 = vld [vmem:[%s488 + $0x48] sm:$0xff]
      %v975 = vld [vmem:[%s488 + $0x50] sm:$0xff]
      %v976 = vld [vmem:[%s488 + $0x58] sm:$0xff]
      %v977 = vld [vmem:[%s488 + $0x60] sm:$0xff]
      %v978 = vld [vmem:[%s488 + $0x68] sm:$0xff]
      %v979 = vld [vmem:[%s488 + $0x70] sm:$0xff]
      %v980 = vld [vmem:[%s488 + $0x78] sm:$0xff]
      %v981 = vld [vmem:[%s488 + $0x80] sm:$0xff]
      %v982 = vld [vmem:[%s488 + $0x88] sm:$0xff]
      %v989 = vrot.slane %v961, 1
      %v990 = vrot.slane %v941, 1
      %v991 = vsel %vm513, %v989, %v990
      %v992 = vrot.slane %v962, 1
      %v993 = vrot.slane %v942, 1
      %v994 = vsel %vm513, %v992, %v993
      %v995 = vrot.slane %v963, 1
      %v996 = vsel %vm513, %v990, %v995
      %v997 = vrot.slane %v964, 1
      %v998 = vsel %vm513, %v993, %v997
      %v1001 = vsel %vm426, %v994, 0
      %v1003 = vsel %vm426, %v998, 0
      %1005 = vmatprep.subr.mxu0 0.0
      %1006 = vmatpush1.msra.mxu0 %v980
      %1007 = vmatprep.subr.mxu0 0.0
      %1008 = vmatpush1.msra.mxu0 %v979
      %1009 = vmatprep.subr.mxu0 0.0
      %1010 = vmatpush1.msra.mxu0 %v978
      %1011 = vmatprep.subr.mxu0 0.0
      %1012 = vmatpush1.msra.mxu0 %v977
      %1013 = vmatprep.subr.mxu0 0.0
      %1014 = vmatpush1.msra.mxu0 %v976
      %1015 = vmatprep.subr.mxu0 0.0
      %1016 = vmatpush1.msra.mxu0 %v975
      %1017 = vmatprep.subr.mxu0 0.0
      %1018 = vmatpush1.msra.mxu0 %v974
      %1019 = vmatprep.subr.mxu0 0.0
      %1020 = vmatpush1.msra.mxu0 %v973
      %1021 = vmatprep.subr.mxu0 0.0
      %1022 = vmatpush1.msra.mxu0 %v972
      %1023 = vmatprep.subr.mxu0 0.0
      %1024 = vmatpush1.msra.mxu0 %v971
      %1025 = vmatprep.subr.mxu0 0.0
      %1026 = vmatpush1.msra.mxu0 %v970
      %1027 = vmatprep.subr.mxu0 0.0
      %1028 = vmatpush1.msra.mxu0 %v969
      %1029 = vmatprep.subr.mxu0 0.0
      %1030 = vmatpush1.msra.mxu0 %v968
      %1031 = vmatprep.subr.mxu0 0.0
      %1032 = vmatpush1.msra.mxu0 %v967
      %1033 = vmatprep.subr.mxu0 0.0
      %1034 = vmatpush1.msra.mxu0 %v966
      %1035 = vmatprep.subr.mxu0 0.0
      %1036 = vmatpush1.msra.mxu0 %v965
      %1037 = vmatprep.subr.mxu0 0.0
      %1038 = vmatpush2.msra.mxu0 0.0
      %1039 = vmatprep.subr.mxu0 0.0
      %1040 = vmatpush2.msra.mxu0 0.0
      %1041 = vmatprep.subr.mxu0 0.0
      %1042 = vmatpush2.msra.mxu0 0.0
      %1043 = vmatprep.subr.mxu0 0.0
      %1044 = vmatpush2.msra.mxu0 0.0
      %1045 = vmatprep.subr.mxu0 0.0
      %1046 = vmatpush2.msra.mxu0 0.0
      %1047 = vmatprep.subr.mxu0 0.0
      %1048 = vmatpush2.msra.mxu0 0.0
      %1049 = vmatprep.subr.mxu0 0.0
      %1050 = vmatpush2.msra.mxu0 0.0
      %1051 = vmatprep.subr.mxu0 0.0
      %1052 = vmatpush2.msra.mxu0 0.0
      %1053 = vmatprep.subr.mxu0 0.0
      %1054 = vmatpush2.msra.mxu0 0.0
      %1055 = vmatprep.subr.mxu0 0.0
      %1056 = vmatpush2.msra.mxu0 0.0
      %1057 = vmatprep.subr.mxu0 0.0
      %1058 = vmatpush2.msra.mxu0 0.0
      %1059 = vmatprep.subr.mxu0 0.0
      %1060 = vmatpush2.msra.mxu0 0.0
      %1061 = vmatprep.subr.mxu0 0.0
      %1062 = vmatpush2.msra.mxu0 0.0
      %1063 = vmatprep.subr.mxu0 0.0
      %1064 = vmatpush2.msra.mxu0 0.0
      %1065 = vmatprep.subr.mxu0 0.0
      %1066 = vmatpush2.msra.mxu0 %v982
      %1067 = vmatprep.subr.mxu0 0.0
      %1068 = vmatpush2.msra.mxu0 %v981
      %1069 = vmatprep.mubr.f32.mxu0 %v1001
      %1070 = vmatmul.mubr.f32.gmra.mxu0 %v991
      %v1071 = vpop.f32.mrf.mxu0
      %v1072 = vadd.f32 0.0, %v1071
      %v1073 = vpop.f32.mrf.mxu0
      %1074 = vmatprep.mubr.f32.mxu0 %v1003
      %1075 = vmatmul.mubr.f32.gmra.mxu0 %v996
      %v1076 = vpop.f32.mrf.mxu0
      %v1077 = vadd.f32 0.0, %v1076
      %v1078 = vpop.f32.mrf.mxu0
      %1079 = vdwg.mxu0
      %v1081 = vsel %vm426, %v940, 0
      %v1083 = vsel %vm426, %v942, 0
      %1085 = vmatprep.subr.mxu0 0.0
      %1086 = vmatpush1.msra.mxu0 %v958
      %1087 = vmatprep.subr.mxu0 0.0
      %1088 = vmatpush1.msra.mxu0 %v957
      %1089 = vmatprep.subr.mxu0 0.0
      %1090 = vmatpush1.msra.mxu0 %v956
      %1091 = vmatprep.subr.mxu0 0.0
      %1092 = vmatpush1.msra.mxu0 %v955
      %1093 = vmatprep.subr.mxu0 0.0
      %1094 = vmatpush1.msra.mxu0 %v954
      %1095 = vmatprep.subr.mxu0 0.0
      %1096 = vmatpush1.msra.mxu0 %v953
      %1097 = vmatprep.subr.mxu0 0.0
      %1098 = vmatpush1.msra.mxu0 %v952
      %1099 = vmatprep.subr.mxu0 0.0
      %1100 = vmatpush1.msra.mxu0 %v951
      %1101 = vmatprep.subr.mxu0 0.0
      %1102 = vmatpush1.msra.mxu0 %v950
      %1103 = vmatprep.subr.mxu0 0.0
      %1104 = vmatpush1.msra.mxu0 %v949
      %1105 = vmatprep.subr.mxu0 0.0
      %1106 = vmatpush1.msra.mxu0 %v948
      %1107 = vmatprep.subr.mxu0 0.0
      %1108 = vmatpush1.msra.mxu0 %v947
      %1109 = vmatprep.subr.mxu0 0.0
      %1110 = vmatpush1.msra.mxu0 %v946
      %1111 = vmatprep.subr.mxu0 0.0
      %1112 = vmatpush1.msra.mxu0 %v945
      %1113 = vmatprep.subr.mxu0 0.0
      %1114 = vmatpush1.msra.mxu0 %v944
      %1115 = vmatprep.subr.mxu0 0.0
      %1116 = vmatpush1.msra.mxu0 %v943
      %1117 = vmatprep.subr.mxu0 0.0
      %1118 = vmatpush2.msra.mxu0 0.0
      %1119 = vmatprep.subr.mxu0 0.0
      %1120 = vmatpush2.msra.mxu0 0.0
      %1121 = vmatprep.subr.mxu0 0.0
      %1122 = vmatpush2.msra.mxu0 0.0
      %1123 = vmatprep.subr.mxu0 0.0
      %1124 = vmatpush2.msra.mxu0 0.0
      %1125 = vmatprep.subr.mxu0 0.0
      %1126 = vmatpush2.msra.mxu0 0.0
      %1127 = vmatprep.subr.mxu0 0.0
      %1128 = vmatpush2.msra.mxu0 0.0
      %1129 = vmatprep.subr.mxu0 0.0
      %1130 = vmatpush2.msra.mxu0 0.0
      %1131 = vmatprep.subr.mxu0 0.0
      %1132 = vmatpush2.msra.mxu0 0.0
      %1133 = vmatprep.subr.mxu0 0.0
      %1134 = vmatpush2.msra.mxu0 0.0
      %1135 = vmatprep.subr.mxu0 0.0
      %1136 = vmatpush2.msra.mxu0 0.0
      %1137 = vmatprep.subr.mxu0 0.0
      %1138 = vmatpush2.msra.mxu0 0.0
      %1139 = vmatprep.subr.mxu0 0.0
      %1140 = vmatpush2.msra.mxu0 0.0
      %1141 = vmatprep.subr.mxu0 0.0
      %1142 = vmatpush2.msra.mxu0 0.0
      %1143 = vmatprep.subr.mxu0 0.0
      %1144 = vmatpush2.msra.mxu0 0.0
      %1145 = vmatprep.subr.mxu0 0.0
      %1146 = vmatpush2.msra.mxu0 %v960
      %1147 = vmatprep.subr.mxu0 0.0
      %1148 = vmatpush2.msra.mxu0 %v959
      %1149 = vmatprep.mubr.f32.mxu0 %v1081
      %1150 = vmatmul.mubr.f32.gmra.mxu0 %v939
      %v1151 = vpop.f32.mrf.mxu0
      %v1152 = vadd.f32 %v1072, %v1151
      %v1153 = vpop.f32.mrf.mxu0
      %1154 = vmatprep.mubr.f32.mxu0 %v1083
      %1155 = vmatmul.mubr.f32.gmra.mxu0 %v941
      %v1156 = vpop.f32.mrf.mxu0
      %v1157 = vadd.f32 %v1077, %v1156
      %v1158 = vpop.f32.mrf.mxu0
      %1159 = vdwg.mxu0
      %v1160 = vld [vmem:[#allocation2] sm:$0xfc]
      %v1161 = vld [vmem:[#allocation2 + $0x8] sm:$0xfc]
      %v1162 = vld [vmem:[#allocation2 + $0x20] sm:$0x3]
      %v1163 = vld [vmem:[#allocation2 + $0x28] sm:$0x3]
      %v1164 = vld [vmem:[%s689] sm:$0xff]
      %v1165 = vld [vmem:[%s689 + $0x8] sm:$0xff]
      %v1166 = vld [vmem:[%s689 + $0x10] sm:$0xff]
      %v1167 = vld [vmem:[%s689 + $0x18] sm:$0xff]
      %v1168 = vld [vmem:[%s689 + $0x20] sm:$0xff]
      %v1169 = vld [vmem:[%s689 + $0x28] sm:$0xff]
      %v1170 = vld [vmem:[%s689 + $0x30] sm:$0xff]
      %v1171 = vld [vmem:[%s689 + $0x38] sm:$0xff]
      %v1172 = vld [vmem:[%s689 + $0x40] sm:$0xff]
      %v1173 = vld [vmem:[%s689 + $0x48] sm:$0xff]
      %v1174 = vld [vmem:[%s689 + $0x50] sm:$0xff]
      %v1175 = vld [vmem:[%s689 + $0x58] sm:$0xff]
      %v1176 = vld [vmem:[%s689 + $0x60] sm:$0xff]
      %v1177 = vld [vmem:[%s689 + $0x68] sm:$0xff]
      %v1178 = vld [vmem:[%s689 + $0x70] sm:$0xff]
      %v1179 = vld [vmem:[%s689 + $0x78] sm:$0xff]
      %v1180 = vld [vmem:[%s689 + $0x80] sm:$0xff]
      %v1181 = vld [vmem:[%s689 + $0x88] sm:$0xff]
      %v1186 = vrot.slane %v1160, 2
      %v1187 = vrot.slane %v941, 2
      %v1188 = vsel %vm712, %v1186, %v1187
      %v1189 = vrot.slane %v1161, 2
      %v1190 = vrot.slane %v942, 2
      %v1191 = vsel %vm712, %v1189, %v1190
      %v1192 = vrot.slane %v1162, 2
      %v1193 = vsel %vm712, %v1187, %v1192
      %v1194 = vrot.slane %v1163, 2
      %v1195 = vsel %vm712, %v1190, %v1194
      %v1198 = vsel %vm426, %v1191, 0
      %v1200 = vsel %vm426, %v1195, 0
      %1202 = vmatprep.subr.mxu0 0.0
      %1203 = vmatpush1.msra.mxu0 %v1179
      %1204 = vmatprep.subr.mxu0 0.0
      %1205 = vmatpush1.msra.mxu0 %v1178
      %1206 = vmatprep.subr.mxu0 0.0
      %1207 = vmatpush1.msra.mxu0 %v1177
      %1208 = vmatprep.subr.mxu0 0.0
      %1209 = vmatpush1.msra.mxu0 %v1176
      %1210 = vmatprep.subr.mxu0 0.0
      %1211 = vmatpush1.msra.mxu0 %v1175
      %1212 = vmatprep.subr.mxu0 0.0
      %1213 = vmatpush1.msra.mxu0 %v1174
      %1214 = vmatprep.subr.mxu0 0.0
      %1215 = vmatpush1.msra.mxu0 %v1173
      %1216 = vmatprep.subr.mxu0 0.0
      %1217 = vmatpush1.msra.mxu0 %v1172
      %1218 = vmatprep.subr.mxu0 0.0
      %1219 = vmatpush1.msra.mxu0 %v1171
      %1220 = vmatprep.subr.mxu0 0.0
      %1221 = vmatpush1.msra.mxu0 %v1170
      %1222 = vmatprep.subr.mxu0 0.0
      %1223 = vmatpush1.msra.mxu0 %v1169
      %1224 = vmatprep.subr.mxu0 0.0
      %1225 = vmatpush1.msra.mxu0 %v1168
      %1226 = vmatprep.subr.mxu0 0.0
      %1227 = vmatpush1.msra.mxu0 %v1167
      %1228 = vmatprep.subr.mxu0 0.0
      %1229 = vmatpush1.msra.mxu0 %v1166
      %1230 = vmatprep.subr.mxu0 0.0
      %1231 = vmatpush1.msra.mxu0 %v1165
      %1232 = vmatprep.subr.mxu0 0.0
      %1233 = vmatpush1.msra.mxu0 %v1164
      %1234 = vmatprep.subr.mxu0 0.0
      %1235 = vmatpush2.msra.mxu0 0.0
      %1236 = vmatprep.subr.mxu0 0.0
      %1237 = vmatpush2.msra.mxu0 0.0
      %1238 = vmatprep.subr.mxu0 0.0
      %1239 = vmatpush2.msra.mxu0 0.0
      %1240 = vmatprep.subr.mxu0 0.0
      %1241 = vmatpush2.msra.mxu0 0.0
      %1242 = vmatprep.subr.mxu0 0.0
      %1243 = vmatpush2.msra.mxu0 0.0
      %1244 = vmatprep.subr.mxu0 0.0
      %1245 = vmatpush2.msra.mxu0 0.0
      %1246 = vmatprep.subr.mxu0 0.0
      %1247 = vmatpush2.msra.mxu0 0.0
      %1248 = vmatprep.subr.mxu0 0.0
      %1249 = vmatpush2.msra.mxu0 0.0
      %1250 = vmatprep.subr.mxu0 0.0
      %1251 = vmatpush2.msra.mxu0 0.0
      %1252 = vmatprep.subr.mxu0 0.0
      %1253 = vmatpush2.msra.mxu0 0.0
      %1254 = vmatprep.subr.mxu0 0.0
      %1255 = vmatpush2.msra.mxu0 0.0
      %1256 = vmatprep.subr.mxu0 0.0
      %1257 = vmatpush2.msra.mxu0 0.0
      %1258 = vmatprep.subr.mxu0 0.0
      %1259 = vmatpush2.msra.mxu0 0.0
      %1260 = vmatprep.subr.mxu0 0.0
      %1261 = vmatpush2.msra.mxu0 0.0
      %1262 = vmatprep.subr.mxu0 0.0
      %1263 = vmatpush2.msra.mxu0 %v1181
      %1264 = vmatprep.subr.mxu0 0.0
      %1265 = vmatpush2.msra.mxu0 %v1180
      %1266 = vmatprep.mubr.f32.mxu0 %v1198
      %1267 = vmatmul.mubr.f32.gmra.mxu0 %v1188
      %v1268 = vpop.f32.mrf.mxu0
      %v1269 = vadd.f32 0.0, %v1268
      %v1270 = vpop.f32.mrf.mxu0
      %1271 = vmatprep.mubr.f32.mxu0 %v1200
      %1272 = vmatmul.mubr.f32.gmra.mxu0 %v1193
      %v1273 = vpop.f32.mrf.mxu0
      %v1274 = vadd.f32 0.0, %v1273
      %v1275 = vpop.f32.mrf.mxu0
      %1276 = vdwg.mxu0
      %v1277 = vadd.f32 %v1152, %v1269
      %v1278 = vadd.f32 %v1157, %v1274
      %v1279 = vld [vmem:[%s2] sm:$0x1]
      %v1281 = vlaneseq
      %v1282 = vshrl.u32 %v1281, 7
      %v1283 = vsub.s32 0, %v1282
      %v1284 = vrot.slane %v1279, %v1283
      %v1286 = vadd.f32 %v1277, %v1284
      %v1287 = vadd.f32 %v1278, %v1284
      %v1288 = vmax.f32 %v1286, 0.0
      %v1289 = vmax.f32 %v1287, 0.0
      %v1290 = vadd.f32 %v1288, %v907
      %v1291 = vadd.f32 %v1289, %v912
      %v1292 = vmax.f32 %v1290, 0.0
      %v1293 = vmax.f32 %v1291, 0.0
      %v1296 = vrot.slane %v1292, 7
      %v1297 = vrot.slane %v1293, 7
      %v1298 = vsel %vm437, %v1296, %v1297
      %1299 = vrot.lane.b32.xlu0 %v1296, 8
      %v1300 = vpop.permute.xlu0 %1299
      %1301 = vrot.lane.b32.xlu0 %v1298, 8
      %v1302 = vpop.permute.xlu0 %1301
      %1303 = vrot.lane.b32.xlu0 %v1297, 8
      %v1304 = vpop.permute.xlu0 %1303
      %1308 = vst.msk [vmem:[#allocation2] sm:$0xfe] %vm450, %v1300
      %1309 = vst.msk [vmem:[#allocation2 + $0x8] sm:$0xfe] %vm452, %v1300
      %1310 = vst.msk [vmem:[#allocation2 + $0x10] sm:$0xff] %vm454, %v1302
      %1311 = vst.msk [vmem:[#allocation2 + $0x18] sm:$0xff] %vm456, %v1302
      %1312 = vst.msk [vmem:[#allocation2 + $0x20] sm:$0x1] %vm458, %v1304
      %1313 = vst.msk [vmem:[#allocation2 + $0x28] sm:$0x1] %vm460, %v1304
      %v1314 = vld [vmem:[#allocation2] sm:$0xff]
      %v1315 = vld [vmem:[#allocation2 + $0x8] sm:$0xff]
      %v1316 = vld [vmem:[#allocation2 + $0x10] sm:$0xff]
      %v1317 = vld [vmem:[#allocation2 + $0x18] sm:$0xff]
      %v1318 = vld [vmem:[%s1] sm:$0xff]
      %v1319 = vld [vmem:[%s1 + $0x8] sm:$0xff]
      %v1320 = vld [vmem:[%s1 + $0x10] sm:$0xff]
      %v1321 = vld [vmem:[%s1 + $0x18] sm:$0xff]
      %v1322 = vld [vmem:[%s1 + $0x20] sm:$0xff]
      %v1323 = vld [vmem:[%s1 + $0x28] sm:$0xff]
      %v1324 = vld [vmem:[%s1 + $0x30] sm:$0xff]
      %v1325 = vld [vmem:[%s1 + $0x38] sm:$0xff]
      %v1326 = vld [vmem:[%s1 + $0x40] sm:$0xff]
      %v1327 = vld [vmem:[%s1 + $0x48] sm:$0xff]
      %v1328 = vld [vmem:[%s1 + $0x50] sm:$0xff]
      %v1329 = vld [vmem:[%s1 + $0x58] sm:$0xff]
      %v1330 = vld [vmem:[%s1 + $0x60] sm:$0xff]
      %v1331 = vld [vmem:[%s1 + $0x68] sm:$0xff]
      %v1332 = vld [vmem:[%s1 + $0x70] sm:$0xff]
      %v1333 = vld [vmem:[%s1 + $0x78] sm:$0xff]
      %v1334 = vld [vmem:[%s1 + $0x80] sm:$0xff]
      %v1335 = vld [vmem:[%s1 + $0x88] sm:$0xff]
      %v1336 = vld [vmem:[#allocation2] sm:$0xfe]
      %v1337 = vld [vmem:[#allocation2 + $0x8] sm:$0xfe]
      %v1338 = vld [vmem:[#allocation2 + $0x20] sm:$0x1]
      %v1339 = vld [vmem:[#allocation2 + $0x28] sm:$0x1]
      %v1340 = vld [vmem:[%s488] sm:$0xff]
      %v1341 = vld [vmem:[%s488 + $0x8] sm:$0xff]
      %v1342 = vld [vmem:[%s488 + $0x10] sm:$0xff]
      %v1343 = vld [vmem:[%s488 + $0x18] sm:$0xff]
      %v1344 = vld [vmem:[%s488 + $0x20] sm:$0xff]
      %v1345 = vld [vmem:[%s488 + $0x28] sm:$0xff]
      %v1346 = vld [vmem:[%s488 + $0x30] sm:$0xff]
      %v1347 = vld [vmem:[%s488 + $0x38] sm:$0xff]
      %v1348 = vld [vmem:[%s488 + $0x40] sm:$0xff]
      %v1349 = vld [vmem:[%s488 + $0x48] sm:$0xff]
      %v1350 = vld [vmem:[%s488 + $0x50] sm:$0xff]
      %v1351 = vld [vmem:[%s488 + $0x58] sm:$0xff]
      %v1352 = vld [vmem:[%s488 + $0x60] sm:$0xff]
      %v1353 = vld [vmem:[%s488 + $0x68] sm:$0xff]
      %v1354 = vld [vmem:[%s488 + $0x70] sm:$0xff]
      %v1355 = vld [vmem:[%s488 + $0x78] sm:$0xff]
      %v1356 = vld [vmem:[%s488 + $0x80] sm:$0xff]
      %v1357 = vld [vmem:[%s488 + $0x88] sm:$0xff]
      %v1364 = vrot.slane %v1336, 1
      %v1365 = vrot.slane %v1316, 1
      %v1366 = vsel %vm513, %v1364, %v1365
      %v1367 = vrot.slane %v1337, 1
      %v1368 = vrot.slane %v1317, 1
      %v1369 = vsel %vm513, %v1367, %v1368
      %v1370 = vrot.slane %v1338, 1
      %v1371 = vsel %vm513, %v1365, %v1370
      %v1372 = vrot.slane %v1339, 1
      %v1373 = vsel %vm513, %v1368, %v1372
      %v1376 = vsel %vm426, %v1369, 0
      %v1378 = vsel %vm426, %v1373, 0
      %1380 = vmatprep.subr.mxu0 0.0
      %1381 = vmatpush1.msra.mxu0 %v1355
      %1382 = vmatprep.subr.mxu0 0.0
      %1383 = vmatpush1.msra.mxu0 %v1354
      %1384 = vmatprep.subr.mxu0 0.0
      %1385 = vmatpush1.msra.mxu0 %v1353
      %1386 = vmatprep.subr.mxu0 0.0
      %1387 = vmatpush1.msra.mxu0 %v1352
      %1388 = vmatprep.subr.mxu0 0.0
      %1389 = vmatpush1.msra.mxu0 %v1351
      %1390 = vmatprep.subr.mxu0 0.0
      %1391 = vmatpush1.msra.mxu0 %v1350
      %1392 = vmatprep.subr.mxu0 0.0
      %1393 = vmatpush1.msra.mxu0 %v1349
      %1394 = vmatprep.subr.mxu0 0.0
      %1395 = vmatpush1.msra.mxu0 %v1348
      %1396 = vmatprep.subr.mxu0 0.0
      %1397 = vmatpush1.msra.mxu0 %v1347
      %1398 = vmatprep.subr.mxu0 0.0
      %1399 = vmatpush1.msra.mxu0 %v1346
      %1400 = vmatprep.subr.mxu0 0.0
      %1401 = vmatpush1.msra.mxu0 %v1345
      %1402 = vmatprep.subr.mxu0 0.0
      %1403 = vmatpush1.msra.mxu0 %v1344
      %1404 = vmatprep.subr.mxu0 0.0
      %1405 = vmatpush1.msra.mxu0 %v1343
      %1406 = vmatprep.subr.mxu0 0.0
      %1407 = vmatpush1.msra.mxu0 %v1342
      %1408 = vmatprep.subr.mxu0 0.0
      %1409 = vmatpush1.msra.mxu0 %v1341
      %1410 = vmatprep.subr.mxu0 0.0
      %1411 = vmatpush1.msra.mxu0 %v1340
      %1412 = vmatprep.subr.mxu0 0.0
      %1413 = vmatpush2.msra.mxu0 0.0
      %1414 = vmatprep.subr.mxu0 0.0
      %1415 = vmatpush2.msra.mxu0 0.0
      %1416 = vmatprep.subr.mxu0 0.0
      %1417 = vmatpush2.msra.mxu0 0.0
      %1418 = vmatprep.subr.mxu0 0.0
      %1419 = vmatpush2.msra.mxu0 0.0
      %1420 = vmatprep.subr.mxu0 0.0
      %1421 = vmatpush2.msra.mxu0 0.0
      %1422 = vmatprep.subr.mxu0 0.0
      %1423 = vmatpush2.msra.mxu0 0.0
      %1424 = vmatprep.subr.mxu0 0.0
      %1425 = vmatpush2.msra.mxu0 0.0
      %1426 = vmatprep.subr.mxu0 0.0
      %1427 = vmatpush2.msra.mxu0 0.0
      %1428 = vmatprep.subr.mxu0 0.0
      %1429 = vmatpush2.msra.mxu0 0.0
      %1430 = vmatprep.subr.mxu0 0.0
      %1431 = vmatpush2.msra.mxu0 0.0
      %1432 = vmatprep.subr.mxu0 0.0
      %1433 = vmatpush2.msra.mxu0 0.0
      %1434 = vmatprep.subr.mxu0 0.0
      %1435 = vmatpush2.msra.mxu0 0.0
      %1436 = vmatprep.subr.mxu0 0.0
      %1437 = vmatpush2.msra.mxu0 0.0
      %1438 = vmatprep.subr.mxu0 0.0
      %1439 = vmatpush2.msra.mxu0 0.0
      %1440 = vmatprep.subr.mxu0 0.0
      %1441 = vmatpush2.msra.mxu0 %v1357
      %1442 = vmatprep.subr.mxu0 0.0
      %1443 = vmatpush2.msra.mxu0 %v1356
      %1444 = vmatprep.mubr.f32.mxu0 %v1376
      %1445 = vmatmul.mubr.f32.gmra.mxu0 %v1366
      %v1446 = vpop.f32.mrf.mxu0
      %v1447 = vadd.f32 0.0, %v1446
      %v1448 = vpop.f32.mrf.mxu0
      %1449 = vmatprep.mubr.f32.mxu0 %v1378
      %1450 = vmatmul.mubr.f32.gmra.mxu0 %v1371
      %v1451 = vpop.f32.mrf.mxu0
      %v1452 = vadd.f32 0.0, %v1451
      %v1453 = vpop.f32.mrf.mxu0
      %1454 = vdwg.mxu0
      %v1456 = vsel %vm426, %v1315, 0
      %v1458 = vsel %vm426, %v1317, 0
      %1460 = vmatprep.subr.mxu0 0.0
      %1461 = vmatpush1.msra.mxu0 %v1333
      %1462 = vmatprep.subr.mxu0 0.0
      %1463 = vmatpush1.msra.mxu0 %v1332
      %1464 = vmatprep.subr.mxu0 0.0
      %1465 = vmatpush1.msra.mxu0 %v1331
      %1466 = vmatprep.subr.mxu0 0.0
      %1467 = vmatpush1.msra.mxu0 %v1330
      %1468 = vmatprep.subr.mxu0 0.0
      %1469 = vmatpush1.msra.mxu0 %v1329
      %1470 = vmatprep.subr.mxu0 0.0
      %1471 = vmatpush1.msra.mxu0 %v1328
      %1472 = vmatprep.subr.mxu0 0.0
      %1473 = vmatpush1.msra.mxu0 %v1327
      %1474 = vmatprep.subr.mxu0 0.0
      %1475 = vmatpush1.msra.mxu0 %v1326
      %1476 = vmatprep.subr.mxu0 0.0
      %1477 = vmatpush1.msra.mxu0 %v1325
      %1478 = vmatprep.subr.mxu0 0.0
      %1479 = vmatpush1.msra.mxu0 %v1324
      %1480 = vmatprep.subr.mxu0 0.0
      %1481 = vmatpush1.msra.mxu0 %v1323
      %1482 = vmatprep.subr.mxu0 0.0
      %1483 = vmatpush1.msra.mxu0 %v1322
      %1484 = vmatprep.subr.mxu0 0.0
      %1485 = vmatpush1.msra.mxu0 %v1321
      %1486 = vmatprep.subr.mxu0 0.0
      %1487 = vmatpush1.msra.mxu0 %v1320
      %1488 = vmatprep.subr.mxu0 0.0
      %1489 = vmatpush1.msra.mxu0 %v1319
      %1490 = vmatprep.subr.mxu0 0.0
      %1491 = vmatpush1.msra.mxu0 %v1318
      %1492 = vmatprep.subr.mxu0 0.0
      %1493 = vmatpush2.msra.mxu0 0.0
      %1494 = vmatprep.subr.mxu0 0.0
      %1495 = vmatpush2.msra.mxu0 0.0
      %1496 = vmatprep.subr.mxu0 0.0
      %1497 = vmatpush2.msra.mxu0 0.0
      %1498 = vmatprep.subr.mxu0 0.0
      %1499 = vmatpush2.msra.mxu0 0.0
      %1500 = vmatprep.subr.mxu0 0.0
      %1501 = vmatpush2.msra.mxu0 0.0
      %1502 = vmatprep.subr.mxu0 0.0
      %1503 = vmatpush2.msra.mxu0 0.0
      %1504 = vmatprep.subr.mxu0 0.0
      %1505 = vmatpush2.msra.mxu0 0.0
      %1506 = vmatprep.subr.mxu0 0.0
      %1507 = vmatpush2.msra.mxu0 0.0
      %1508 = vmatprep.subr.mxu0 0.0
      %1509 = vmatpush2.msra.mxu0 0.0
      %1510 = vmatprep.subr.mxu0 0.0
      %1511 = vmatpush2.msra.mxu0 0.0
      %1512 = vmatprep.subr.mxu0 0.0
      %1513 = vmatpush2.msra.mxu0 0.0
      %1514 = vmatprep.subr.mxu0 0.0
      %1515 = vmatpush2.msra.mxu0 0.0
      %1516 = vmatprep.subr.mxu0 0.0
      %1517 = vmatpush2.msra.mxu0 0.0
      %1518 = vmatprep.subr.mxu0 0.0
      %1519 = vmatpush2.msra.mxu0 0.0
      %1520 = vmatprep.subr.mxu0 0.0
      %1521 = vmatpush2.msra.mxu0 %v1335
      %1522 = vmatprep.subr.mxu0 0.0
      %1523 = vmatpush2.msra.mxu0 %v1334
      %1524 = vmatprep.mubr.f32.mxu0 %v1456
      %1525 = vmatmul.mubr.f32.gmra.mxu0 %v1314
      %v1526 = vpop.f32.mrf.mxu0
      %v1527 = vadd.f32 %v1447, %v1526
      %v1528 = vpop.f32.mrf.mxu0
      %1529 = vmatprep.mubr.f32.mxu0 %v1458
      %1530 = vmatmul.mubr.f32.gmra.mxu0 %v1316
      %v1531 = vpop.f32.mrf.mxu0
      %v1532 = vadd.f32 %v1452, %v1531
      %v1533 = vpop.f32.mrf.mxu0
      %1534 = vdwg.mxu0
      %v1535 = vld [vmem:[#allocation2] sm:$0xfc]
      %v1536 = vld [vmem:[#allocation2 + $0x8] sm:$0xfc]
      %v1537 = vld [vmem:[#allocation2 + $0x20] sm:$0x3]
      %v1538 = vld [vmem:[#allocation2 + $0x28] sm:$0x3]
      %v1539 = vld [vmem:[%s689] sm:$0xff]
      %v1540 = vld [vmem:[%s689 + $0x8] sm:$0xff]
      %v1541 = vld [vmem:[%s689 + $0x10] sm:$0xff]
      %v1542 = vld [vmem:[%s689 + $0x18] sm:$0xff]
      %v1543 = vld [vmem:[%s689 + $0x20] sm:$0xff]
      %v1544 = vld [vmem:[%s689 + $0x28] sm:$0xff]
      %v1545 = vld [vmem:[%s689 + $0x30] sm:$0xff]
      %v1546 = vld [vmem:[%s689 + $0x38] sm:$0xff]
      %v1547 = vld [vmem:[%s689 + $0x40] sm:$0xff]
      %v1548 = vld [vmem:[%s689 + $0x48] sm:$0xff]
      %v1549 = vld [vmem:[%s689 + $0x50] sm:$0xff]
      %v1550 = vld [vmem:[%s689 + $0x58] sm:$0xff]
      %v1551 = vld [vmem:[%s689 + $0x60] sm:$0xff]
      %v1552 = vld [vmem:[%s689 + $0x68] sm:$0xff]
      %v1553 = vld [vmem:[%s689 + $0x70] sm:$0xff]
      %v1554 = vld [vmem:[%s689 + $0x78] sm:$0xff]
      %v1555 = vld [vmem:[%s689 + $0x80] sm:$0xff]
      %v1556 = vld [vmem:[%s689 + $0x88] sm:$0xff]
      %v1561 = vrot.slane %v1535, 2
      %v1562 = vrot.slane %v1316, 2
      %v1563 = vsel %vm712, %v1561, %v1562
      %v1564 = vrot.slane %v1536, 2
      %v1565 = vrot.slane %v1317, 2
      %v1566 = vsel %vm712, %v1564, %v1565
      %v1567 = vrot.slane %v1537, 2
      %v1568 = vsel %vm712, %v1562, %v1567
      %v1569 = vrot.slane %v1538, 2
      %v1570 = vsel %vm712, %v1565, %v1569
      %v1573 = vsel %vm426, %v1566, 0
      %v1575 = vsel %vm426, %v1570, 0
      %1577 = vmatprep.subr.mxu0 0.0
      %1578 = vmatpush1.msra.mxu0 %v1554
      %1579 = vmatprep.subr.mxu0 0.0
      %1580 = vmatpush1.msra.mxu0 %v1553
      %1581 = vmatprep.subr.mxu0 0.0
      %1582 = vmatpush1.msra.mxu0 %v1552
      %1583 = vmatprep.subr.mxu0 0.0
      %1584 = vmatpush1.msra.mxu0 %v1551
      %1585 = vmatprep.subr.mxu0 0.0
      %1586 = vmatpush1.msra.mxu0 %v1550
      %1587 = vmatprep.subr.mxu0 0.0
      %1588 = vmatpush1.msra.mxu0 %v1549
      %1589 = vmatprep.subr.mxu0 0.0
      %1590 = vmatpush1.msra.mxu0 %v1548
      %1591 = vmatprep.subr.mxu0 0.0
      %1592 = vmatpush1.msra.mxu0 %v1547
      %1593 = vmatprep.subr.mxu0 0.0
      %1594 = vmatpush1.msra.mxu0 %v1546
      %1595 = vmatprep.subr.mxu0 0.0
      %1596 = vmatpush1.msra.mxu0 %v1545
      %1597 = vmatprep.subr.mxu0 0.0
      %1598 = vmatpush1.msra.mxu0 %v1544
      %1599 = vmatprep.subr.mxu0 0.0
      %1600 = vmatpush1.msra.mxu0 %v1543
      %1601 = vmatprep.subr.mxu0 0.0
      %1602 = vmatpush1.msra.mxu0 %v1542
      %1603 = vmatprep.subr.mxu0 0.0
      %1604 = vmatpush1.msra.mxu0 %v1541
      %1605 = vmatprep.subr.mxu0 0.0
      %1606 = vmatpush1.msra.mxu0 %v1540
      %1607 = vmatprep.subr.mxu0 0.0
      %1608 = vmatpush1.msra.mxu0 %v1539
      %1609 = vmatprep.subr.mxu0 0.0
      %1610 = vmatpush2.msra.mxu0 0.0
      %1611 = vmatprep.subr.mxu0 0.0
      %1612 = vmatpush2.msra.mxu0 0.0
      %1613 = vmatprep.subr.mxu0 0.0
      %1614 = vmatpush2.msra.mxu0 0.0
      %1615 = vmatprep.subr.mxu0 0.0
      %1616 = vmatpush2.msra.mxu0 0.0
      %1617 = vmatprep.subr.mxu0 0.0
      %1618 = vmatpush2.msra.mxu0 0.0
      %1619 = vmatprep.subr.mxu0 0.0
      %1620 = vmatpush2.msra.mxu0 0.0
      %1621 = vmatprep.subr.mxu0 0.0
      %1622 = vmatpush2.msra.mxu0 0.0
      %1623 = vmatprep.subr.mxu0 0.0
      %1624 = vmatpush2.msra.mxu0 0.0
      %1625 = vmatprep.subr.mxu0 0.0
      %1626 = vmatpush2.msra.mxu0 0.0
      %1627 = vmatprep.subr.mxu0 0.0
      %1628 = vmatpush2.msra.mxu0 0.0
      %1629 = vmatprep.subr.mxu0 0.0
      %1630 = vmatpush2.msra.mxu0 0.0
      %1631 = vmatprep.subr.mxu0 0.0
      %1632 = vmatpush2.msra.mxu0 0.0
      %1633 = vmatprep.subr.mxu0 0.0
      %1634 = vmatpush2.msra.mxu0 0.0
      %1635 = vmatprep.subr.mxu0 0.0
      %1636 = vmatpush2.msra.mxu0 0.0
      %1637 = vmatprep.subr.mxu0 0.0
      %1638 = vmatpush2.msra.mxu0 %v1556
      %1639 = vmatprep.subr.mxu0 0.0
      %1640 = vmatpush2.msra.mxu0 %v1555
      %1641 = vmatprep.mubr.f32.mxu0 %v1573
      %1642 = vmatmul.mubr.f32.gmra.mxu0 %v1563
      %v1643 = vpop.f32.mrf.mxu0
      %v1644 = vadd.f32 0.0, %v1643
      %v1645 = vpop.f32.mrf.mxu0
      %1646 = vmatprep.mubr.f32.mxu0 %v1575
      %1647 = vmatmul.mubr.f32.gmra.mxu0 %v1568
      %v1648 = vpop.f32.mrf.mxu0
      %v1649 = vadd.f32 0.0, %v1648
      %v1650 = vpop.f32.mrf.mxu0
      %1651 = vdwg.mxu0
      %v1652 = vadd.f32 %v1527, %v1644
      %v1653 = vadd.f32 %v1532, %v1649
      %v1654 = vld [vmem:[%s2] sm:$0x1]
      %v1656 = vlaneseq
      %v1657 = vshrl.u32 %v1656, 7
      %v1658 = vsub.s32 0, %v1657
      %v1659 = vrot.slane %v1654, %v1658
      %v1661 = vadd.f32 %v1652, %v1659
      %v1662 = vadd.f32 %v1653, %v1659
      %v1663 = vmax.f32 %v1661, 0.0
      %v1664 = vmax.f32 %v1662, 0.0
      %v1667 = vrot.slane %v1663, 7
      %v1668 = vrot.slane %v1664, 7
      %v1669 = vsel %vm437, %v1667, %v1668
      %1670 = vrot.lane.b32.xlu0 %v1667, 8
      %v1671 = vpop.permute.xlu0 %1670
      %1672 = vrot.lane.b32.xlu0 %v1669, 8
      %v1673 = vpop.permute.xlu0 %1672
      %1674 = vrot.lane.b32.xlu0 %v1668, 8
      %v1675 = vpop.permute.xlu0 %1674
      %1679 = vst.msk [vmem:[#allocation2] sm:$0xfe] %vm450, %v1671
      %1680 = vst.msk [vmem:[#allocation2 + $0x8] sm:$0xfe] %vm452, %v1671
      %1681 = vst.msk [vmem:[#allocation2 + $0x10] sm:$0xff] %vm454, %v1673
      %1682 = vst.msk [vmem:[#allocation2 + $0x18] sm:$0xff] %vm456, %v1673
      %1683 = vst.msk [vmem:[#allocation2 + $0x20] sm:$0x1] %vm458, %v1675
      %1684 = vst.msk [vmem:[#allocation2 + $0x28] sm:$0x1] %vm460, %v1675
      %v1685 = vld [vmem:[#allocation2] sm:$0xff]
      %v1686 = vld [vmem:[#allocation2 + $0x8] sm:$0xff]
      %v1687 = vld [vmem:[#allocation2 + $0x10] sm:$0xff]
      %v1688 = vld [vmem:[#allocation2 + $0x18] sm:$0xff]
      %v1689 = vld [vmem:[%s1] sm:$0xff]
      %v1690 = vld [vmem:[%s1 + $0x8] sm:$0xff]
      %v1691 = vld [vmem:[%s1 + $0x10] sm:$0xff]
      %v1692 = vld [vmem:[%s1 + $0x18] sm:$0xff]
      %v1693 = vld [vmem:[%s1 + $0x20] sm:$0xff]
      %v1694 = vld [vmem:[%s1 + $0x28] sm:$0xff]
      %v1695 = vld [vmem:[%s1 + $0x30] sm:$0xff]
      %v1696 = vld [vmem:[%s1 + $0x38] sm:$0xff]
      %v1697 = vld [vmem:[%s1 + $0x40] sm:$0xff]
      %v1698 = vld [vmem:[%s1 + $0x48] sm:$0xff]
      %v1699 = vld [vmem:[%s1 + $0x50] sm:$0xff]
      %v1700 = vld [vmem:[%s1 + $0x58] sm:$0xff]
      %v1701 = vld [vmem:[%s1 + $0x60] sm:$0xff]
      %v1702 = vld [vmem:[%s1 + $0x68] sm:$0xff]
      %v1703 = vld [vmem:[%s1 + $0x70] sm:$0xff]
      %v1704 = vld [vmem:[%s1 + $0x78] sm:$0xff]
      %v1705 = vld [vmem:[%s1 + $0x80] sm:$0xff]
      %v1706 = vld [vmem:[%s1 + $0x88] sm:$0xff]
      %v1707 = vld [vmem:[#allocation2] sm:$0xfe]
      %v1708 = vld [vmem:[#allocation2 + $0x8] sm:$0xfe]
      %v1709 = vld [vmem:[#allocation2 + $0x20] sm:$0x1]
      %v1710 = vld [vmem:[#allocation2 + $0x28] sm:$0x1]
      %v1711 = vld [vmem:[%s488] sm:$0xff]
      %v1712 = vld [vmem:[%s488 + $0x8] sm:$0xff]
      %v1713 = vld [vmem:[%s488 + $0x10] sm:$0xff]
      %v1714 = vld [vmem:[%s488 + $0x18] sm:$0xff]
      %v1715 = vld [vmem:[%s488 + $0x20] sm:$0xff]
      %v1716 = vld [vmem:[%s488 + $0x28] sm:$0xff]
      %v1717 = vld [vmem:[%s488 + $0x30] sm:$0xff]
      %v1718 = vld [vmem:[%s488 + $0x38] sm:$0xff]
      %v1719 = vld [vmem:[%s488 + $0x40] sm:$0xff]
      %v1720 = vld [vmem:[%s488 + $0x48] sm:$0xff]
      %v1721 = vld [vmem:[%s488 + $0x50] sm:$0xff]
      %v1722 = vld [vmem:[%s488 + $0x58] sm:$0xff]
      %v1723 = vld [vmem:[%s488 + $0x60] sm:$0xff]
      %v1724 = vld [vmem:[%s488 + $0x68] sm:$0xff]
      %v1725 = vld [vmem:[%s488 + $0x70] sm:$0xff]
      %v1726 = vld [vmem:[%s488 + $0x78] sm:$0xff]
      %v1727 = vld [vmem:[%s488 + $0x80] sm:$0xff]
      %v1728 = vld [vmem:[%s488 + $0x88] sm:$0xff]
      %v1735 = vrot.slane %v1707, 1
      %v1736 = vrot.slane %v1687, 1
      %v1737 = vsel %vm513, %v1735, %v1736
      %v1738 = vrot.slane %v1708, 1
      %v1739 = vrot.slane %v1688, 1
      %v1740 = vsel %vm513, %v1738, %v1739
      %v1741 = vrot.slane %v1709, 1
      %v1742 = vsel %vm513, %v1736, %v1741
      %v1743 = vrot.slane %v1710, 1
      %v1744 = vsel %vm513, %v1739, %v1743
      %v1747 = vsel %vm426, %v1740, 0
      %v1749 = vsel %vm426, %v1744, 0
      %1751 = vmatprep.subr.mxu0 0.0
      %1752 = vmatpush1.msra.mxu0 %v1726
      %1753 = vmatprep.subr.mxu0 0.0
      %1754 = vmatpush1.msra.mxu0 %v1725
      %1755 = vmatprep.subr.mxu0 0.0
      %1756 = vmatpush1.msra.mxu0 %v1724
      %1757 = vmatprep.subr.mxu0 0.0
      %1758 = vmatpush1.msra.mxu0 %v1723
      %1759 = vmatprep.subr.mxu0 0.0
      %1760 = vmatpush1.msra.mxu0 %v1722
      %1761 = vmatprep.subr.mxu0 0.0
      %1762 = vmatpush1.msra.mxu0 %v1721
      %1763 = vmatprep.subr.mxu0 0.0
      %1764 = vmatpush1.msra.mxu0 %v1720
      %1765 = vmatprep.subr.mxu0 0.0
      %1766 = vmatpush1.msra.mxu0 %v1719
      %1767 = vmatprep.subr.mxu0 0.0
      %1768 = vmatpush1.msra.mxu0 %v1718
      %1769 = vmatprep.subr.mxu0 0.0
      %1770 = vmatpush1.msra.mxu0 %v1717
      %1771 = vmatprep.subr.mxu0 0.0
      %1772 = vmatpush1.msra.mxu0 %v1716
      %1773 = vmatprep.subr.mxu0 0.0
      %1774 = vmatpush1.msra.mxu0 %v1715
      %1775 = vmatprep.subr.mxu0 0.0
      %1776 = vmatpush1.msra.mxu0 %v1714
      %1777 = vmatprep.subr.mxu0 0.0
      %1778 = vmatpush1.msra.mxu0 %v1713
      %1779 = vmatprep.subr.mxu0 0.0
      %1780 = vmatpush1.msra.mxu0 %v1712
      %1781 = vmatprep.subr.mxu0 0.0
      %1782 = vmatpush1.msra.mxu0 %v1711
      %1783 = vmatprep.subr.mxu0 0.0
      %1784 = vmatpush2.msra.mxu0 0.0
      %1785 = vmatprep.subr.mxu0 0.0
      %1786 = vmatpush2.msra.mxu0 0.0
      %1787 = vmatprep.subr.mxu0 0.0
      %1788 = vmatpush2.msra.mxu0 0.0
      %1789 = vmatprep.subr.mxu0 0.0
      %1790 = vmatpush2.msra.mxu0 0.0
      %1791 = vmatprep.subr.mxu0 0.0
      %1792 = vmatpush2.msra.mxu0 0.0
      %1793 = vmatprep.subr.mxu0 0.0
      %1794 = vmatpush2.msra.mxu0 0.0
      %1795 = vmatprep.subr.mxu0 0.0
      %1796 = vmatpush2.msra.mxu0 0.0
      %1797 = vmatprep.subr.mxu0 0.0
      %1798 = vmatpush2.msra.mxu0 0.0
      %1799 = vmatprep.subr.mxu0 0.0
      %1800 = vmatpush2.msra.mxu0 0.0
      %1801 = vmatprep.subr.mxu0 0.0
      %1802 = vmatpush2.msra.mxu0 0.0
      %1803 = vmatprep.subr.mxu0 0.0
      %1804 = vmatpush2.msra.mxu0 0.0
      %1805 = vmatprep.subr.mxu0 0.0
      %1806 = vmatpush2.msra.mxu0 0.0
      %1807 = vmatprep.subr.mxu0 0.0
      %1808 = vmatpush2.msra.mxu0 0.0
      %1809 = vmatprep.subr.mxu0 0.0
      %1810 = vmatpush2.msra.mxu0 0.0
      %1811 = vmatprep.subr.mxu0 0.0
      %1812 = vmatpush2.msra.mxu0 %v1728
      %1813 = vmatprep.subr.mxu0 0.0
      %1814 = vmatpush2.msra.mxu0 %v1727
      %1815 = vmatprep.mubr.f32.mxu0 %v1747
      %1816 = vmatmul.mubr.f32.gmra.mxu0 %v1737
      %v1817 = vpop.f32.mrf.mxu0
      %v1818 = vadd.f32 0.0, %v1817
      %v1819 = vpop.f32.mrf.mxu0
      %1820 = vmatprep.mubr.f32.mxu0 %v1749
      %1821 = vmatmul.mubr.f32.gmra.mxu0 %v1742
      %v1822 = vpop.f32.mrf.mxu0
      %v1823 = vadd.f32 0.0, %v1822
      %v1824 = vpop.f32.mrf.mxu0
      %1825 = vdwg.mxu0
      %v1827 = vsel %vm426, %v1686, 0
      %v1829 = vsel %vm426, %v1688, 0
      %1831 = vmatprep.subr.mxu0 0.0
      %1832 = vmatpush1.msra.mxu0 %v1704
      %1833 = vmatprep.subr.mxu0 0.0
      %1834 = vmatpush1.msra.mxu0 %v1703
      %1835 = vmatprep.subr.mxu0 0.0
      %1836 = vmatpush1.msra.mxu0 %v1702
      %1837 = vmatprep.subr.mxu0 0.0
      %1838 = vmatpush1.msra.mxu0 %v1701
      %1839 = vmatprep.subr.mxu0 0.0
      %1840 = vmatpush1.msra.mxu0 %v1700
      %1841 = vmatprep.subr.mxu0 0.0
      %1842 = vmatpush1.msra.mxu0 %v1699
      %1843 = vmatprep.subr.mxu0 0.0
      %1844 = vmatpush1.msra.mxu0 %v1698
      %1845 = vmatprep.subr.mxu0 0.0
      %1846 = vmatpush1.msra.mxu0 %v1697
      %1847 = vmatprep.subr.mxu0 0.0
      %1848 = vmatpush1.msra.mxu0 %v1696
      %1849 = vmatprep.subr.mxu0 0.0
      %1850 = vmatpush1.msra.mxu0 %v1695
      %1851 = vmatprep.subr.mxu0 0.0
      %1852 = vmatpush1.msra.mxu0 %v1694
      %1853 = vmatprep.subr.mxu0 0.0
      %1854 = vmatpush1.msra.mxu0 %v1693
      %1855 = vmatprep.subr.mxu0 0.0
      %1856 = vmatpush1.msra.mxu0 %v1692
      %1857 = vmatprep.subr.mxu0 0.0
      %1858 = vmatpush1.msra.mxu0 %v1691
      %1859 = vmatprep.subr.mxu0 0.0
      %1860 = vmatpush1.msra.mxu0 %v1690
      %1861 = vmatprep.subr.mxu0 0.0
      %1862 = vmatpush1.msra.mxu0 %v1689
      %1863 = vmatprep.subr.mxu0 0.0
      %1864 = vmatpush2.msra.mxu0 0.0
      %1865 = vmatprep.subr.mxu0 0.0
      %1866 = vmatpush2.msra.mxu0 0.0
      %1867 = vmatprep.subr.mxu0 0.0
      %1868 = vmatpush2.msra.mxu0 0.0
      %1869 = vmatprep.subr.mxu0 0.0
      %1870 = vmatpush2.msra.mxu0 0.0
      %1871 = vmatprep.subr.mxu0 0.0
      %1872 = vmatpush2.msra.mxu0 0.0
      %1873 = vmatprep.subr.mxu0 0.0
      %1874 = vmatpush2.msra.mxu0 0.0
      %1875 = vmatprep.subr.mxu0 0.0
      %1876 = vmatpush2.msra.mxu0 0.0
      %1877 = vmatprep.subr.mxu0 0.0
      %1878 = vmatpush2.msra.mxu0 0.0
      %1879 = vmatprep.subr.mxu0 0.0
      %1880 = vmatpush2.msra.mxu0 0.0
      %1881 = vmatprep.subr.mxu0 0.0
      %1882 = vmatpush2.msra.mxu0 0.0
      %1883 = vmatprep.subr.mxu0 0.0
      %1884 = vmatpush2.msra.mxu0 0.0
      %1885 = vmatprep.subr.mxu0 0.0
      %1886 = vmatpush2.msra.mxu0 0.0
      %1887 = vmatprep.subr.mxu0 0.0
      %1888 = vmatpush2.msra.mxu0 0.0
      %1889 = vmatprep.subr.mxu0 0.0
      %1890 = vmatpush2.msra.mxu0 0.0
      %1891 = vmatprep.subr.mxu0 0.0
      %1892 = vmatpush2.msra.mxu0 %v1706
      %1893 = vmatprep.subr.mxu0 0.0
      %1894 = vmatpush2.msra.mxu0 %v1705
      %1895 = vmatprep.mubr.f32.mxu0 %v1827
      %1896 = vmatmul.mubr.f32.gmra.mxu0 %v1685
      %v1897 = vpop.f32.mrf.mxu0
      %v1898 = vadd.f32 %v1818, %v1897
      %v1899 = vpop.f32.mrf.mxu0
      %1900 = vmatprep.mubr.f32.mxu0 %v1829
      %1901 = vmatmul.mubr.f32.gmra.mxu0 %v1687
      %v1902 = vpop.f32.mrf.mxu0
      %v1903 = vadd.f32 %v1823, %v1902
      %v1904 = vpop.f32.mrf.mxu0
      %1905 = vdwg.mxu0
      %v1906 = vld [vmem:[#allocation2] sm:$0xfc]
      %v1907 = vld [vmem:[#allocation2 + $0x8] sm:$0xfc]
      %v1908 = vld [vmem:[#allocation2 + $0x20] sm:$0x3]
      %v1909 = vld [vmem:[#allocation2 + $0x28] sm:$0x3]
      %v1910 = vld [vmem:[%s689] sm:$0xff]
      %v1911 = vld [vmem:[%s689 + $0x8] sm:$0xff]
      %v1912 = vld [vmem:[%s689 + $0x10] sm:$0xff]
      %v1913 = vld [vmem:[%s689 + $0x18] sm:$0xff]
      %v1914 = vld [vmem:[%s689 + $0x20] sm:$0xff]
      %v1915 = vld [vmem:[%s689 + $0x28] sm:$0xff]
      %v1916 = vld [vmem:[%s689 + $0x30] sm:$0xff]
      %v1917 = vld [vmem:[%s689 + $0x38] sm:$0xff]
      %v1918 = vld [vmem:[%s689 + $0x40] sm:$0xff]
      %v1919 = vld [vmem:[%s689 + $0x48] sm:$0xff]
      %v1920 = vld [vmem:[%s689 + $0x50] sm:$0xff]
      %v1921 = vld [vmem:[%s689 + $0x58] sm:$0xff]
      %v1922 = vld [vmem:[%s689 + $0x60] sm:$0xff]
      %v1923 = vld [vmem:[%s689 + $0x68] sm:$0xff]
      %v1924 = vld [vmem:[%s689 + $0x70] sm:$0xff]
      %v1925 = vld [vmem:[%s689 + $0x78] sm:$0xff]
      %v1926 = vld [vmem:[%s689 + $0x80] sm:$0xff]
      %v1927 = vld [vmem:[%s689 + $0x88] sm:$0xff]
      %v1932 = vrot.slane %v1906, 2
      %v1933 = vrot.slane %v1687, 2
      %v1934 = vsel %vm712, %v1932, %v1933
      %v1935 = vrot.slane %v1907, 2
      %v1936 = vrot.slane %v1688, 2
      %v1937 = vsel %vm712, %v1935, %v1936
      %v1938 = vrot.slane %v1908, 2
      %v1939 = vsel %vm712, %v1933, %v1938
      %v1940 = vrot.slane %v1909, 2
      %v1941 = vsel %vm712, %v1936, %v1940
      %v1944 = vsel %vm426, %v1937, 0
      %v1946 = vsel %vm426, %v1941, 0
      %1948 = vmatprep.subr.mxu0 0.0
      %1949 = vmatpush1.msra.mxu0 %v1925
      %1950 = vmatprep.subr.mxu0 0.0
      %1951 = vmatpush1.msra.mxu0 %v1924
      %1952 = vmatprep.subr.mxu0 0.0
      %1953 = vmatpush1.msra.mxu0 %v1923
      %1954 = vmatprep.subr.mxu0 0.0
      %1955 = vmatpush1.msra.mxu0 %v1922
      %1956 = vmatprep.subr.mxu0 0.0
      %1957 = vmatpush1.msra.mxu0 %v1921
      %1958 = vmatprep.subr.mxu0 0.0
      %1959 = vmatpush1.msra.mxu0 %v1920
      %1960 = vmatprep.subr.mxu0 0.0
      %1961 = vmatpush1.msra.mxu0 %v1919
      %1962 = vmatprep.subr.mxu0 0.0
      %1963 = vmatpush1.msra.mxu0 %v1918
      %1964 = vmatprep.subr.mxu0 0.0
      %1965 = vmatpush1.msra.mxu0 %v1917
      %1966 = vmatprep.subr.mxu0 0.0
      %1967 = vmatpush1.msra.mxu0 %v1916
      %1968 = vmatprep.subr.mxu0 0.0
      %1969 = vmatpush1.msra.mxu0 %v1915
      %1970 = vmatprep.subr.mxu0 0.0
      %1971 = vmatpush1.msra.mxu0 %v1914
      %1972 = vmatprep.subr.mxu0 0.0
      %1973 = vmatpush1.msra.mxu0 %v1913
      %1974 = vmatprep.subr.mxu0 0.0
      %1975 = vmatpush1.msra.mxu0 %v1912
      %1976 = vmatprep.subr.mxu0 0.0
      %1977 = vmatpush1.msra.mxu0 %v1911
      %1978 = vmatprep.subr.mxu0 0.0
      %1979 = vmatpush1.msra.mxu0 %v1910
      %1980 = vmatprep.subr.mxu0 0.0
      %1981 = vmatpush2.msra.mxu0 0.0
      %1982 = vmatprep.subr.mxu0 0.0
      %1983 = vmatpush2.msra.mxu0 0.0
      %1984 = vmatprep.subr.mxu0 0.0
      %1985 = vmatpush2.msra.mxu0 0.0
      %1986 = vmatprep.subr.mxu0 0.0
      %1987 = vmatpush2.msra.mxu0 0.0
      %1988 = vmatprep.subr.mxu0 0.0
      %1989 = vmatpush2.msra.mxu0 0.0
      %1990 = vmatprep.subr.mxu0 0.0
      %1991 = vmatpush2.msra.mxu0 0.0
      %1992 = vmatprep.subr.mxu0 0.0
      %1993 = vmatpush2.msra.mxu0 0.0
      %1994 = vmatprep.subr.mxu0 0.0
      %1995 = vmatpush2.msra.mxu0 0.0
      %1996 = vmatprep.subr.mxu0 0.0
      %1997 = vmatpush2.msra.mxu0 0.0
      %1998 = vmatprep.subr.mxu0 0.0
      %1999 = vmatpush2.msra.mxu0 0.0
      %2000 = vmatprep.subr.mxu0 0.0
      %2001 = vmatpush2.msra.mxu0 0.0
      %2002 = vmatprep.subr.mxu0 0.0
      %2003 = vmatpush2.msra.mxu0 0.0
      %2004 = vmatprep.subr.mxu0 0.0
      %2005 = vmatpush2.msra.mxu0 0.0
      %2006 = vmatprep.subr.mxu0 0.0
      %2007 = vmatpush2.msra.mxu0 0.0
      %2008 = vmatprep.subr.mxu0 0.0
      %2009 = vmatpush2.msra.mxu0 %v1927
      %2010 = vmatprep.subr.mxu0 0.0
      %2011 = vmatpush2.msra.mxu0 %v1926
      %2012 = vmatprep.mubr.f32.mxu0 %v1944
      %2013 = vmatmul.mubr.f32.gmra.mxu0 %v1934
      %v2014 = vpop.f32.mrf.mxu0
      %v2015 = vadd.f32 0.0, %v2014
      %v2016 = vpop.f32.mrf.mxu0
      %2017 = vmatprep.mubr.f32.mxu0 %v1946
      %2018 = vmatmul.mubr.f32.gmra.mxu0 %v1939
      %v2019 = vpop.f32.mrf.mxu0
      %v2020 = vadd.f32 0.0, %v2019
      %v2021 = vpop.f32.mrf.mxu0
      %2022 = vdwg.mxu0
      %v2023 = vadd.f32 %v1898, %v2015
      %v2024 = vadd.f32 %v1903, %v2020
      %v2025 = vld [vmem:[%s2] sm:$0x1]
      %v2027 = vlaneseq
      %v2028 = vshrl.u32 %v2027, 7
      %v2029 = vsub.s32 0, %v2028
      %v2030 = vrot.slane %v2025, %v2029
      %v2032 = vadd.f32 %v2023, %v2030
      %v2033 = vadd.f32 %v2024, %v2030
      %v2034 = vmax.f32 %v2032, 0.0
      %v2035 = vmax.f32 %v2033, 0.0
      %v2036 = vld [vmem:[%s3] sm:$0xff]
      %v2037 = vld [vmem:[%s3 + $0x8] sm:$0xff]
      %v2038 = vld [vmem:[%s3 + $0x10] sm:$0xff]
      %v2039 = vld [vmem:[%s3 + $0x18] sm:$0xff]
      %v2040 = vld [vmem:[%s3 + $0x20] sm:$0xff]
      %v2041 = vld [vmem:[%s3 + $0x28] sm:$0xff]
      %v2042 = vld [vmem:[%s3 + $0x30] sm:$0xff]
      %v2043 = vld [vmem:[%s3 + $0x38] sm:$0xff]
      %v2044 = vld [vmem:[%s3 + $0x40] sm:$0xff]
      %v2045 = vld [vmem:[%s3 + $0x48] sm:$0xff]
      %v2046 = vld [vmem:[%s3 + $0x50] sm:$0xff]
      %v2047 = vld [vmem:[%s3 + $0x58] sm:$0xff]
      %v2048 = vld [vmem:[%s3 + $0x60] sm:$0xff]
      %v2049 = vld [vmem:[%s3 + $0x68] sm:$0xff]
      %v2050 = vld [vmem:[%s3 + $0x70] sm:$0xff]
      %v2051 = vld [vmem:[%s3 + $0x78] sm:$0xff]
      %v2052 = vld [vmem:[%s4] sm:$0x1]
      %v2054 = vlaneseq
      %v2055 = vshrl.u32 %v2054, 7
      %v2056 = vsub.s32 0, %v2055
      %v2057 = vrot.slane %v2052, %v2056
      %2059 = vmatprep.subr.mxu0 0.0
      %2060 = vmatpush1.msra.mxu0 %v2051
      %2061 = vmatprep.subr.mxu0 0.0
      %2062 = vmatpush1.msra.mxu0 %v2050
      %2063 = vmatprep.subr.mxu0 0.0
      %2064 = vmatpush1.msra.mxu0 %v2049
      %2065 = vmatprep.subr.mxu0 0.0
      %2066 = vmatpush1.msra.mxu0 %v2048
      %2067 = vmatprep.subr.mxu0 0.0
      %2068 = vmatpush1.msra.mxu0 %v2047
      %2069 = vmatprep.subr.mxu0 0.0
      %2070 = vmatpush1.msra.mxu0 %v2046
      %2071 = vmatprep.subr.mxu0 0.0
      %2072 = vmatpush1.msra.mxu0 %v2045
      %2073 = vmatprep.subr.mxu0 0.0
      %2074 = vmatpush1.msra.mxu0 %v2044
      %2075 = vmatprep.subr.mxu0 0.0
      %2076 = vmatpush1.msra.mxu0 %v2043
      %2077 = vmatprep.subr.mxu0 0.0
      %2078 = vmatpush1.msra.mxu0 %v2042
      %2079 = vmatprep.subr.mxu0 0.0
      %2080 = vmatpush1.msra.mxu0 %v2041
      %2081 = vmatprep.subr.mxu0 0.0
      %2082 = vmatpush1.msra.mxu0 %v2040
      %2083 = vmatprep.subr.mxu0 0.0
      %2084 = vmatpush1.msra.mxu0 %v2039
      %2085 = vmatprep.subr.mxu0 0.0
      %2086 = vmatpush1.msra.mxu0 %v2038
      %2087 = vmatprep.subr.mxu0 0.0
      %2088 = vmatpush1.msra.mxu0 %v2037
      %2089 = vmatprep.subr.mxu0 0.0
      %2090 = vmatpush1.msra.mxu0 %v2036
      %2091 = vmatprep.subr.mxu0 0.0
      %2092 = vmatpush2.msra.mxu0 0.0
      %2093 = vmatprep.subr.mxu0 0.0
      %2094 = vmatpush2.msra.mxu0 0.0
      %2095 = vmatprep.subr.mxu0 0.0
      %2096 = vmatpush2.msra.mxu0 0.0
      %2097 = vmatprep.subr.mxu0 0.0
      %2098 = vmatpush2.msra.mxu0 0.0
      %2099 = vmatprep.subr.mxu0 0.0
      %2100 = vmatpush2.msra.mxu0 0.0
      %2101 = vmatprep.subr.mxu0 0.0
      %2102 = vmatpush2.msra.mxu0 0.0
      %2103 = vmatprep.subr.mxu0 0.0
      %2104 = vmatpush2.msra.mxu0 0.0
      %2105 = vmatprep.subr.mxu0 0.0
      %2106 = vmatpush2.msra.mxu0 0.0
      %2107 = vmatprep.subr.mxu0 0.0
      %2108 = vmatpush2.msra.mxu0 0.0
      %2109 = vmatprep.subr.mxu0 0.0
      %2110 = vmatpush2.msra.mxu0 0.0
      %2111 = vmatprep.subr.mxu0 0.0
      %2112 = vmatpush2.msra.mxu0 0.0
      %2113 = vmatprep.subr.mxu0 0.0
      %2114 = vmatpush2.msra.mxu0 0.0
      %2115 = vmatprep.subr.mxu0 0.0
      %2116 = vmatpush2.msra.mxu0 0.0
      %2117 = vmatprep.subr.mxu0 0.0
      %2118 = vmatpush2.msra.mxu0 0.0
      %2119 = vmatprep.subr.mxu0 0.0
      %2120 = vmatpush2.msra.mxu0 0.0
      %2121 = vmatprep.subr.mxu0 0.0
      %2122 = vmatpush2.msra.mxu0 0.0
      %2123 = vmatprep.mubr.f32.mxu0 0.0
      %2124 = vmatmul.mubr.f32.gmra.mxu0 %v1663
      %v2125 = vpop.f32.mrf.mxu0
      %v2126 = vadd.f32 %v2057, %v2125
      %v2127 = vpop.f32.mrf.mxu0
      %2128 = vmatprep.mubr.f32.mxu0 0.0
      %2129 = vmatmul.mubr.f32.gmra.mxu0 %v1664
      %v2130 = vpop.f32.mrf.mxu0
      %v2131 = vadd.f32 %v2057, %v2130
      %v2132 = vpop.f32.mrf.mxu0
      %2133 = vdwg.mxu0
      %v2134 = vadd.f32 %v2034, %v2126
      %v2135 = vadd.f32 %v2035, %v2131
      %v2136 = vmax.f32 %v2134, 0.0
      %v2137 = vmax.f32 %v2135, 0.0
      %v2140 = vrot.slane %v2136, 7
      %v2141 = vrot.slane %v2137, 7
      %v2142 = vsel %vm437, %v2140, %v2141
      %2143 = vrot.lane.b32.xlu0 %v2140, 8
      %v2144 = vpop.permute.xlu0 %2143
      %2145 = vrot.lane.b32.xlu0 %v2142, 8
      %v2146 = vpop.permute.xlu0 %2145
      %2147 = vrot.lane.b32.xlu0 %v2141, 8
      %v2148 = vpop.permute.xlu0 %2147
      %2152 = vst.msk [vmem:[#allocation2] sm:$0xfe] %vm450, %v2144
      %2153 = vst.msk [vmem:[#allocation2 + $0x8] sm:$0xfe] %vm452, %v2144
      %2154 = vst.msk [vmem:[#allocation2 + $0x10] sm:$0xff] %vm454, %v2146
      %2155 = vst.msk [vmem:[#allocation2 + $0x18] sm:$0xff] %vm456, %v2146
      %2156 = vst.msk [vmem:[#allocation2 + $0x20] sm:$0x1] %vm458, %v2148
      %2157 = vst.msk [vmem:[#allocation2 + $0x28] sm:$0x1] %vm460, %v2148
      %v2158 = vld [vmem:[#allocation2] sm:$0xff]
      %v2159 = vld [vmem:[#allocation2 + $0x8] sm:$0xff]
      %v2160 = vld [vmem:[#allocation2 + $0x10] sm:$0xff]
      %v2161 = vld [vmem:[#allocation2 + $0x18] sm:$0xff]
      %v2162 = vld [vmem:[%s1] sm:$0xff]
      %v2163 = vld [vmem:[%s1 + $0x8] sm:$0xff]
      %v2164 = vld [vmem:[%s1 + $0x10] sm:$0xff]
      %v2165 = vld [vmem:[%s1 + $0x18] sm:$0xff]
      %v2166 = vld [vmem:[%s1 + $0x20] sm:$0xff]
      %v2167 = vld [vmem:[%s1 + $0x28] sm:$0xff]
      %v2168 = vld [vmem:[%s1 + $0x30] sm:$0xff]
      %v2169 = vld [vmem:[%s1 + $0x38] sm:$0xff]
      %v2170 = vld [vmem:[%s1 + $0x40] sm:$0xff]
      %v2171 = vld [vmem:[%s1 + $0x48] sm:$0xff]
      %v2172 = vld [vmem:[%s1 + $0x50] sm:$0xff]
      %v2173 = vld [vmem:[%s1 + $0x58] sm:$0xff]
      %v2174 = vld [vmem:[%s1 + $0x60] sm:$0xff]
      %v2175 = vld [vmem:[%s1 + $0x68] sm:$0xff]
      %v2176 = vld [vmem:[%s1 + $0x70] sm:$0xff]
      %v2177 = vld [vmem:[%s1 + $0x78] sm:$0xff]
      %v2178 = vld [vmem:[%s1 + $0x80] sm:$0xff]
      %v2179 = vld [vmem:[%s1 + $0x88] sm:$0xff]
      %v2180 = vld [vmem:[#allocation2] sm:$0xfe]
      %v2181 = vld [vmem:[#allocation2 + $0x8] sm:$0xfe]
      %v2182 = vld [vmem:[#allocation2 + $0x20] sm:$0x1]
      %v2183 = vld [vmem:[#allocation2 + $0x28] sm:$0x1]
      %v2184 = vld [vmem:[%s488] sm:$0xff]
      %v2185 = vld [vmem:[%s488 + $0x8] sm:$0xff]
      %v2186 = vld [vmem:[%s488 + $0x10] sm:$0xff]
      %v2187 = vld [vmem:[%s488 + $0x18] sm:$0xff]
      %v2188 = vld [vmem:[%s488 + $0x20] sm:$0xff]
      %v2189 = vld [vmem:[%s488 + $0x28] sm:$0xff]
      %v2190 = vld [vmem:[%s488 + $0x30] sm:$0xff]
      %v2191 = vld [vmem:[%s488 + $0x38] sm:$0xff]
      %v2192 = vld [vmem:[%s488 + $0x40] sm:$0xff]
      %v2193 = vld [vmem:[%s488 + $0x48] sm:$0xff]
      %v2194 = vld [vmem:[%s488 + $0x50] sm:$0xff]
      %v2195 = vld [vmem:[%s488 + $0x58] sm:$0xff]
      %v2196 = vld [vmem:[%s488 + $0x60] sm:$0xff]
      %v2197 = vld [vmem:[%s488 + $0x68] sm:$0xff]
      %v2198 = vld [vmem:[%s488 + $0x70] sm:$0xff]
      %v2199 = vld [vmem:[%s488 + $0x78] sm:$0xff]
      %v2200 = vld [vmem:[%s488 + $0x80] sm:$0xff]
      %v2201 = vld [vmem:[%s488 + $0x88] sm:$0xff]
      %v2208 = vrot.slane %v2180, 1
      %v2209 = vrot.slane %v2160, 1
      %v2210 = vsel %vm513, %v2208, %v2209
      %v2211 = vrot.slane %v2181, 1
      %v2212 = vrot.slane %v2161, 1
      %v2213 = vsel %vm513, %v2211, %v2212
      %v2214 = vrot.slane %v2182, 1
      %v2215 = vsel %vm513, %v2209, %v2214
      %v2216 = vrot.slane %v2183, 1
      %v2217 = vsel %vm513, %v2212, %v2216
      %v2220 = vsel %vm426, %v2213, 0
      %v2222 = vsel %vm426, %v2217, 0
      %2224 = vmatprep.subr.mxu0 0.0
      %2225 = vmatpush1.msra.mxu0 %v2199
      %2226 = vmatprep.subr.mxu0 0.0
      %2227 = vmatpush1.msra.mxu0 %v2198
      %2228 = vmatprep.subr.mxu0 0.0
      %2229 = vmatpush1.msra.mxu0 %v2197
      %2230 = vmatprep.subr.mxu0 0.0
      %2231 = vmatpush1.msra.mxu0 %v2196
      %2232 = vmatprep.subr.mxu0 0.0
      %2233 = vmatpush1.msra.mxu0 %v2195
      %2234 = vmatprep.subr.mxu0 0.0
      %2235 = vmatpush1.msra.mxu0 %v2194
      %2236 = vmatprep.subr.mxu0 0.0
      %2237 = vmatpush1.msra.mxu0 %v2193
      %2238 = vmatprep.subr.mxu0 0.0
      %2239 = vmatpush1.msra.mxu0 %v2192
      %2240 = vmatprep.subr.mxu0 0.0
      %2241 = vmatpush1.msra.mxu0 %v2191
      %2242 = vmatprep.subr.mxu0 0.0
      %2243 = vmatpush1.msra.mxu0 %v2190
      %2244 = vmatprep.subr.mxu0 0.0
      %2245 = vmatpush1.msra.mxu0 %v2189
      %2246 = vmatprep.subr.mxu0 0.0
      %2247 = vmatpush1.msra.mxu0 %v2188
      %2248 = vmatprep.subr.mxu0 0.0
      %2249 = vmatpush1.msra.mxu0 %v2187
      %2250 = vmatprep.subr.mxu0 0.0
      %2251 = vmatpush1.msra.mxu0 %v2186
      %2252 = vmatprep.subr.mxu0 0.0
      %2253 = vmatpush1.msra.mxu0 %v2185
      %2254 = vmatprep.subr.mxu0 0.0
      %2255 = vmatpush1.msra.mxu0 %v2184
      %2256 = vmatprep.subr.mxu0 0.0
      %2257 = vmatpush2.msra.mxu0 0.0
      %2258 = vmatprep.subr.mxu0 0.0
      %2259 = vmatpush2.msra.mxu0 0.0
      %2260 = vmatprep.subr.mxu0 0.0
      %2261 = vmatpush2.msra.mxu0 0.0
      %2262 = vmatprep.subr.mxu0 0.0
      %2263 = vmatpush2.msra.mxu0 0.0
      %2264 = vmatprep.subr.mxu0 0.0
      %2265 = vmatpush2.msra.mxu0 0.0
      %2266 = vmatprep.subr.mxu0 0.0
      %2267 = vmatpush2.msra.mxu0 0.0
      %2268 = vmatprep.subr.mxu0 0.0
      %2269 = vmatpush2.msra.mxu0 0.0
      %2270 = vmatprep.subr.mxu0 0.0
      %2271 = vmatpush2.msra.mxu0 0.0
      %2272 = vmatprep.subr.mxu0 0.0
      %2273 = vmatpush2.msra.mxu0 0.0
      %2274 = vmatprep.subr.mxu0 0.0
      %2275 = vmatpush2.msra.mxu0 0.0
      %2276 = vmatprep.subr.mxu0 0.0
      %2277 = vmatpush2.msra.mxu0 0.0
      %2278 = vmatprep.subr.mxu0 0.0
      %2279 = vmatpush2.msra.mxu0 0.0
      %2280 = vmatprep.subr.mxu0 0.0
      %2281 = vmatpush2.msra.mxu0 0.0
      %2282 = vmatprep.subr.mxu0 0.0
      %2283 = vmatpush2.msra.mxu0 0.0
      %2284 = vmatprep.subr.mxu0 0.0
      %2285 = vmatpush2.msra.mxu0 %v2201
      %2286 = vmatprep.subr.mxu0 0.0
      %2287 = vmatpush2.msra.mxu0 %v2200
      %2288 = vmatprep.mubr.f32.mxu0 %v2220
      %2289 = vmatmul.mubr.f32.gmra.mxu0 %v2210
      %v2290 = vpop.f32.mrf.mxu0
      %v2291 = vadd.f32 0.0, %v2290
      %v2292 = vpop.f32.mrf.mxu0
      %2293 = vmatprep.mubr.f32.mxu0 %v2222
      %2294 = vmatmul.mubr.f32.gmra.mxu0 %v2215
      %v2295 = vpop.f32.mrf.mxu0
      %v2296 = vadd.f32 0.0, %v2295
      %v2297 = vpop.f32.mrf.mxu0
      %2298 = vdwg.mxu0
      %v2300 = vsel %vm426, %v2159, 0
      %v2302 = vsel %vm426, %v2161, 0
      %2304 = vmatprep.subr.mxu0 0.0
      %2305 = vmatpush1.msra.mxu0 %v2177
      %2306 = vmatprep.subr.mxu0 0.0
      %2307 = vmatpush1.msra.mxu0 %v2176
      %2308 = vmatprep.subr.mxu0 0.0
      %2309 = vmatpush1.msra.mxu0 %v2175
      %2310 = vmatprep.subr.mxu0 0.0
      %2311 = vmatpush1.msra.mxu0 %v2174
      %2312 = vmatprep.subr.mxu0 0.0
      %2313 = vmatpush1.msra.mxu0 %v2173
      %2314 = vmatprep.subr.mxu0 0.0
      %2315 = vmatpush1.msra.mxu0 %v2172
      %2316 = vmatprep.subr.mxu0 0.0
      %2317 = vmatpush1.msra.mxu0 %v2171
      %2318 = vmatprep.subr.mxu0 0.0
      %2319 = vmatpush1.msra.mxu0 %v2170
      %2320 = vmatprep.subr.mxu0 0.0
      %2321 = vmatpush1.msra.mxu0 %v2169
      %2322 = vmatprep.subr.mxu0 0.0
      %2323 = vmatpush1.msra.mxu0 %v2168
      %2324 = vmatprep.subr.mxu0 0.0
      %2325 = vmatpush1.msra.mxu0 %v2167
      %2326 = vmatprep.subr.mxu0 0.0
      %2327 = vmatpush1.msra.mxu0 %v2166
      %2328 = vmatprep.subr.mxu0 0.0
      %2329 = vmatpush1.msra.mxu0 %v2165
      %2330 = vmatprep.subr.mxu0 0.0
      %2331 = vmatpush1.msra.mxu0 %v2164
      %2332 = vmatprep.subr.mxu0 0.0
      %2333 = vmatpush1.msra.mxu0 %v2163
      %2334 = vmatprep.subr.mxu0 0.0
      %2335 = vmatpush1.msra.mxu0 %v2162
      %2336 = vmatprep.subr.mxu0 0.0
      %2337 = vmatpush2.msra.mxu0 0.0
      %2338 = vmatprep.subr.mxu0 0.0
      %2339 = vmatpush2.msra.mxu0 0.0
      %2340 = vmatprep.subr.mxu0 0.0
      %2341 = vmatpush2.msra.mxu0 0.0
      %2342 = vmatprep.subr.mxu0 0.0
      %2343 = vmatpush2.msra.mxu0 0.0
      %2344 = vmatprep.subr.mxu0 0.0
      %2345 = vmatpush2.msra.mxu0 0.0
      %2346 = vmatprep.subr.mxu0 0.0
      %2347 = vmatpush2.msra.mxu0 0.0
      %2348 = vmatprep.subr.mxu0 0.0
      %2349 = vmatpush2.msra.mxu0 0.0
      %2350 = vmatprep.subr.mxu0 0.0
      %2351 = vmatpush2.msra.mxu0 0.0
      %2352 = vmatprep.subr.mxu0 0.0
      %2353 = vmatpush2.msra.mxu0 0.0
      %2354 = vmatprep.subr.mxu0 0.0
      %2355 = vmatpush2.msra.mxu0 0.0
      %2356 = vmatprep.subr.mxu0 0.0
      %2357 = vmatpush2.msra.mxu0 0.0
      %2358 = vmatprep.subr.mxu0 0.0
      %2359 = vmatpush2.msra.mxu0 0.0
      %2360 = vmatprep.subr.mxu0 0.0
      %2361 = vmatpush2.msra.mxu0 0.0
      %2362 = vmatprep.subr.mxu0 0.0
      %2363 = vmatpush2.msra.mxu0 0.0
      %2364 = vmatprep.subr.mxu0 0.0
      %2365 = vmatpush2.msra.mxu0 %v2179
      %2366 = vmatprep.subr.mxu0 0.0
      %2367 = vmatpush2.msra.mxu0 %v2178
      %2368 = vmatprep.mubr.f32.mxu0 %v2300
      %2369 = vmatmul.mubr.f32.gmra.mxu0 %v2158
      %v2370 = vpop.f32.mrf.mxu0
      %v2371 = vadd.f32 %v2291, %v2370
      %v2372 = vpop.f32.mrf.mxu0
      %2373 = vmatprep.mubr.f32.mxu0 %v2302
      %2374 = vmatmul.mubr.f32.gmra.mxu0 %v2160
      %v2375 = vpop.f32.mrf.mxu0
      %v2376 = vadd.f32 %v2296, %v2375
      %v2377 = vpop.f32.mrf.mxu0
      %2378 = vdwg.mxu0
      %v2379 = vld [vmem:[#allocation2] sm:$0xfc]
      %v2380 = vld [vmem:[#allocation2 + $0x8] sm:$0xfc]
      %v2381 = vld [vmem:[#allocation2 + $0x20] sm:$0x3]
      %v2382 = vld [vmem:[#allocation2 + $0x28] sm:$0x3]
      %v2383 = vld [vmem:[%s689] sm:$0xff]
      %v2384 = vld [vmem:[%s689 + $0x8] sm:$0xff]
      %v2385 = vld [vmem:[%s689 + $0x10] sm:$0xff]
      %v2386 = vld [vmem:[%s689 + $0x18] sm:$0xff]
      %v2387 = vld [vmem:[%s689 + $0x20] sm:$0xff]
      %v2388 = vld [vmem:[%s689 + $0x28] sm:$0xff]
      %v2389 = vld [vmem:[%s689 + $0x30] sm:$0xff]
      %v2390 = vld [vmem:[%s689 + $0x38] sm:$0xff]
      %v2391 = vld [vmem:[%s689 + $0x40] sm:$0xff]
      %v2392 = vld [vmem:[%s689 + $0x48] sm:$0xff]
      %v2393 = vld [vmem:[%s689 + $0x50] sm:$0xff]
      %v2394 = vld [vmem:[%s689 + $0x58] sm:$0xff]
      %v2395 = vld [vmem:[%s689 + $0x60] sm:$0xff]
      %v2396 = vld [vmem:[%s689 + $0x68] sm:$0xff]
      %v2397 = vld [vmem:[%s689 + $0x70] sm:$0xff]
      %v2398 = vld [vmem:[%s689 + $0x78] sm:$0xff]
      %v2399 = vld [vmem:[%s689 + $0x80] sm:$0xff]
      %v2400 = vld [vmem:[%s689 + $0x88] sm:$0xff]
      %v2405 = vrot.slane %v2379, 2
      %v2406 = vrot.slane %v2160, 2
      %v2407 = vsel %vm712, %v2405, %v2406
      %v2408 = vrot.slane %v2380, 2
      %v2409 = vrot.slane %v2161, 2
      %v2410 = vsel %vm712, %v2408, %v2409
      %v2411 = vrot.slane %v2381, 2
      %v2412 = vsel %vm712, %v2406, %v2411
      %v2413 = vrot.slane %v2382, 2
      %v2414 = vsel %vm712, %v2409, %v2413
      %v2417 = vsel %vm426, %v2410, 0
      %v2419 = vsel %vm426, %v2414, 0
      %2421 = vmatprep.subr.mxu0 0.0
      %2422 = vmatpush1.msra.mxu0 %v2398
      %2423 = vmatprep.subr.mxu0 0.0
      %2424 = vmatpush1.msra.mxu0 %v2397
      %2425 = vmatprep.subr.mxu0 0.0
      %2426 = vmatpush1.msra.mxu0 %v2396
      %2427 = vmatprep.subr.mxu0 0.0
      %2428 = vmatpush1.msra.mxu0 %v2395
      %2429 = vmatprep.subr.mxu0 0.0
      %2430 = vmatpush1.msra.mxu0 %v2394
      %2431 = vmatprep.subr.mxu0 0.0
      %2432 = vmatpush1.msra.mxu0 %v2393
      %2433 = vmatprep.subr.mxu0 0.0
      %2434 = vmatpush1.msra.mxu0 %v2392
      %2435 = vmatprep.subr.mxu0 0.0
      %2436 = vmatpush1.msra.mxu0 %v2391
      %2437 = vmatprep.subr.mxu0 0.0
      %2438 = vmatpush1.msra.mxu0 %v2390
      %2439 = vmatprep.subr.mxu0 0.0
      %2440 = vmatpush1.msra.mxu0 %v2389
      %2441 = vmatprep.subr.mxu0 0.0
      %2442 = vmatpush1.msra.mxu0 %v2388
      %2443 = vmatprep.subr.mxu0 0.0
      %2444 = vmatpush1.msra.mxu0 %v2387
      %2445 = vmatprep.subr.mxu0 0.0
      %2446 = vmatpush1.msra.mxu0 %v2386
      %2447 = vmatprep.subr.mxu0 0.0
      %2448 = vmatpush1.msra.mxu0 %v2385
      %2449 = vmatprep.subr.mxu0 0.0
      %2450 = vmatpush1.msra.mxu0 %v2384
      %2451 = vmatprep.subr.mxu0 0.0
      %2452 = vmatpush1.msra.mxu0 %v2383
      %2453 = vmatprep.subr.mxu0 0.0
      %2454 = vmatpush2.msra.mxu0 0.0
      %2455 = vmatprep.subr.mxu0 0.0
      %2456 = vmatpush2.msra.mxu0 0.0
      %2457 = vmatprep.subr.mxu0 0.0
      %2458 = vmatpush2.msra.mxu0 0.0
      %2459 = vmatprep.subr.mxu0 0.0
      %2460 = vmatpush2.msra.mxu0 0.0
      %2461 = vmatprep.subr.mxu0 0.0
      %2462 = vmatpush2.msra.mxu0 0.0
      %2463 = vmatprep.subr.mxu0 0.0
      %2464 = vmatpush2.msra.mxu0 0.0
      %2465 = vmatprep.subr.mxu0 0.0
      %2466 = vmatpush2.msra.mxu0 0.0
      %2467 = vmatprep.subr.mxu0 0.0
      %2468 = vmatpush2.msra.mxu0 0.0
      %2469 = vmatprep.subr.mxu0 0.0
      %2470 = vmatpush2.msra.mxu0 0.0
      %2471 = vmatprep.subr.mxu0 0.0
      %2472 = vmatpush2.msra.mxu0 0.0
      %2473 = vmatprep.subr.mxu0 0.0
      %2474 = vmatpush2.msra.mxu0 0.0
      %2475 = vmatprep.subr.mxu0 0.0
      %2476 = vmatpush2.msra.mxu0 0.0
      %2477 = vmatprep.subr.mxu0 0.0
      %2478 = vmatpush2.msra.mxu0 0.0
      %2479 = vmatprep.subr.mxu0 0.0
      %2480 = vmatpush2.msra.mxu0 0.0
      %2481 = vmatprep.subr.mxu0 0.0
      %2482 = vmatpush2.msra.mxu0 %v2400
      %2483 = vmatprep.subr.mxu0 0.0
      %2484 = vmatpush2.msra.mxu0 %v2399
      %2485 = vmatprep.mubr.f32.mxu0 %v2417
      %2486 = vmatmul.mubr.f32.gmra.mxu0 %v2407
      %v2487 = vpop.f32.mrf.mxu0
      %v2488 = vadd.f32 0.0, %v2487
      %v2489 = vpop.f32.mrf.mxu0
      %2490 = vmatprep.mubr.f32.mxu0 %v2419
      %2491 = vmatmul.mubr.f32.gmra.mxu0 %v2412
      %v2492 = vpop.f32.mrf.mxu0
      %v2493 = vadd.f32 0.0, %v2492
      %v2494 = vpop.f32.mrf.mxu0
      %2495 = vdwg.mxu0
      %v2496 = vadd.f32 %v2371, %v2488
      %v2497 = vadd.f32 %v2376, %v2493
      %v2498 = vld [vmem:[%s2] sm:$0x1]
      %v2500 = vlaneseq
      %v2501 = vshrl.u32 %v2500, 7
      %v2502 = vsub.s32 0, %v2501
      %v2503 = vrot.slane %v2498, %v2502
      %v2505 = vadd.f32 %v2496, %v2503
      %v2506 = vadd.f32 %v2497, %v2503
      %v2507 = vmax.f32 %v2505, 0.0
      %v2508 = vmax.f32 %v2506, 0.0
      %v2509 = vadd.f32 %v2507, %v2126
      %v2510 = vadd.f32 %v2508, %v2131
      %v2511 = vmax.f32 %v2509, 0.0
      %v2512 = vmax.f32 %v2510, 0.0
      %v2515 = vrot.slane %v2511, 7
      %v2516 = vrot.slane %v2512, 7
      %v2517 = vsel %vm437, %v2515, %v2516
      %2518 = vrot.lane.b32.xlu0 %v2515, 8
      %v2519 = vpop.permute.xlu0 %2518
      %2520 = vrot.lane.b32.xlu0 %v2517, 8
      %v2521 = vpop.permute.xlu0 %2520
      %2522 = vrot.lane.b32.xlu0 %v2516, 8
      %v2523 = vpop.permute.xlu0 %2522
      %2527 = vst.msk [vmem:[#allocation2] sm:$0xfe] %vm450, %v2519
      %2528 = vst.msk [vmem:[#allocation2 + $0x8] sm:$0xfe] %vm452, %v2519
      %2529 = vst.msk [vmem:[#allocation2 + $0x10] sm:$0xff] %vm454, %v2521
      %2530 = vst.msk [vmem:[#allocation2 + $0x18] sm:$0xff] %vm456, %v2521
      %2531 = vst.msk [vmem:[#allocation2 + $0x20] sm:$0x1] %vm458, %v2523
      %2532 = vst.msk [vmem:[#allocation2 + $0x28] sm:$0x1] %vm460, %v2523
      %v2533 = vld [vmem:[#allocation2] sm:$0xff]
      %v2534 = vld [vmem:[#allocation2 + $0x8] sm:$0xff]
      %v2535 = vld [vmem:[#allocation2 + $0x10] sm:$0xff]
      %v2536 = vld [vmem:[#allocation2 + $0x18] sm:$0xff]
      %v2537 = vld [vmem:[%s1] sm:$0xff]
      %v2538 = vld [vmem:[%s1 + $0x8] sm:$0xff]
      %v2539 = vld [vmem:[%s1 + $0x10] sm:$0xff]
      %v2540 = vld [vmem:[%s1 + $0x18] sm:$0xff]
      %v2541 = vld [vmem:[%s1 + $0x20] sm:$0xff]
      %v2542 = vld [vmem:[%s1 + $0x28] sm:$0xff]
      %v2543 = vld [vmem:[%s1 + $0x30] sm:$0xff]
      %v2544 = vld [vmem:[%s1 + $0x38] sm:$0xff]
      %v2545 = vld [vmem:[%s1 + $0x40] sm:$0xff]
      %v2546 = vld [vmem:[%s1 + $0x48] sm:$0xff]
      %v2547 = vld [vmem:[%s1 + $0x50] sm:$0xff]
      %v2548 = vld [vmem:[%s1 + $0x58] sm:$0xff]
      %v2549 = vld [vmem:[%s1 + $0x60] sm:$0xff]
      %v2550 = vld [vmem:[%s1 + $0x68] sm:$0xff]
      %v2551 = vld [vmem:[%s1 + $0x70] sm:$0xff]
      %v2552 = vld [vmem:[%s1 + $0x78] sm:$0xff]
      %v2553 = vld [vmem:[%s1 + $0x80] sm:$0xff]
      %v2554 = vld [vmem:[%s1 + $0x88] sm:$0xff]
      %v2555 = vld [vmem:[#allocation2] sm:$0xfe]
      %v2556 = vld [vmem:[#allocation2 + $0x8] sm:$0xfe]
      %v2557 = vld [vmem:[#allocation2 + $0x20] sm:$0x1]
      %v2558 = vld [vmem:[#allocation2 + $0x28] sm:$0x1]
      %v2559 = vld [vmem:[%s488] sm:$0xff]
      %v2560 = vld [vmem:[%s488 + $0x8] sm:$0xff]
      %v2561 = vld [vmem:[%s488 + $0x10] sm:$0xff]
      %v2562 = vld [vmem:[%s488 + $0x18] sm:$0xff]
      %v2563 = vld [vmem:[%s488 + $0x20] sm:$0xff]
      %v2564 = vld [vmem:[%s488 + $0x28] sm:$0xff]
      %v2565 = vld [vmem:[%s488 + $0x30] sm:$0xff]
      %v2566 = vld [vmem:[%s488 + $0x38] sm:$0xff]
      %v2567 = vld [vmem:[%s488 + $0x40] sm:$0xff]
      %v2568 = vld [vmem:[%s488 + $0x48] sm:$0xff]
      %v2569 = vld [vmem:[%s488 + $0x50] sm:$0xff]
      %v2570 = vld [vmem:[%s488 + $0x58] sm:$0xff]
      %v2571 = vld [vmem:[%s488 + $0x60] sm:$0xff]
      %v2572 = vld [vmem:[%s488 + $0x68] sm:$0xff]
      %v2573 = vld [vmem:[%s488 + $0x70] sm:$0xff]
      %v2574 = vld [vmem:[%s488 + $0x78] sm:$0xff]
      %v2575 = vld [vmem:[%s488 + $0x80] sm:$0xff]
      %v2576 = vld [vmem:[%s488 + $0x88] sm:$0xff]
      %v2583 = vrot.slane %v2555, 1
      %v2584 = vrot.slane %v2535, 1
      %v2585 = vsel %vm513, %v2583, %v2584
      %v2586 = vrot.slane %v2556, 1
      %v2587 = vrot.slane %v2536, 1
      %v2588 = vsel %vm513, %v2586, %v2587
      %v2589 = vrot.slane %v2557, 1
      %v2590 = vsel %vm513, %v2584, %v2589
      %v2591 = vrot.slane %v2558, 1
      %v2592 = vsel %vm513, %v2587, %v2591
      %v2595 = vsel %vm426, %v2588, 0
      %v2597 = vsel %vm426, %v2592, 0
      %2599 = vmatprep.subr.mxu0 0.0
      %2600 = vmatpush1.msra.mxu0 %v2574
      %2601 = vmatprep.subr.mxu0 0.0
      %2602 = vmatpush1.msra.mxu0 %v2573
      %2603 = vmatprep.subr.mxu0 0.0
      %2604 = vmatpush1.msra.mxu0 %v2572
      %2605 = vmatprep.subr.mxu0 0.0
      %2606 = vmatpush1.msra.mxu0 %v2571
      %2607 = vmatprep.subr.mxu0 0.0
      %2608 = vmatpush1.msra.mxu0 %v2570
      %2609 = vmatprep.subr.mxu0 0.0
      %2610 = vmatpush1.msra.mxu0 %v2569
      %2611 = vmatprep.subr.mxu0 0.0
      %2612 = vmatpush1.msra.mxu0 %v2568
      %2613 = vmatprep.subr.mxu0 0.0
      %2614 = vmatpush1.msra.mxu0 %v2567
      %2615 = vmatprep.subr.mxu0 0.0
      %2616 = vmatpush1.msra.mxu0 %v2566
      %2617 = vmatprep.subr.mxu0 0.0
      %2618 = vmatpush1.msra.mxu0 %v2565
      %2619 = vmatprep.subr.mxu0 0.0
      %2620 = vmatpush1.msra.mxu0 %v2564
      %2621 = vmatprep.subr.mxu0 0.0
      %2622 = vmatpush1.msra.mxu0 %v2563
      %2623 = vmatprep.subr.mxu0 0.0
      %2624 = vmatpush1.msra.mxu0 %v2562
      %2625 = vmatprep.subr.mxu0 0.0
      %2626 = vmatpush1.msra.mxu0 %v2561
      %2627 = vmatprep.subr.mxu0 0.0
      %2628 = vmatpush1.msra.mxu0 %v2560
      %2629 = vmatprep.subr.mxu0 0.0
      %2630 = vmatpush1.msra.mxu0 %v2559
      %2631 = vmatprep.subr.mxu0 0.0
      %2632 = vmatpush2.msra.mxu0 0.0
      %2633 = vmatprep.subr.mxu0 0.0
      %2634 = vmatpush2.msra.mxu0 0.0
      %2635 = vmatprep.subr.mxu0 0.0
      %2636 = vmatpush2.msra.mxu0 0.0
      %2637 = vmatprep.subr.mxu0 0.0
      %2638 = vmatpush2.msra.mxu0 0.0
      %2639 = vmatprep.subr.mxu0 0.0
      %2640 = vmatpush2.msra.mxu0 0.0
      %2641 = vmatprep.subr.mxu0 0.0
      %2642 = vmatpush2.msra.mxu0 0.0
      %2643 = vmatprep.subr.mxu0 0.0
      %2644 = vmatpush2.msra.mxu0 0.0
      %2645 = vmatprep.subr.mxu0 0.0
      %2646 = vmatpush2.msra.mxu0 0.0
      %2647 = vmatprep.subr.mxu0 0.0
      %2648 = vmatpush2.msra.mxu0 0.0
      %2649 = vmatprep.subr.mxu0 0.0
      %2650 = vmatpush2.msra.mxu0 0.0
      %2651 = vmatprep.subr.mxu0 0.0
      %2652 = vmatpush2.msra.mxu0 0.0
      %2653 = vmatprep.subr.mxu0 0.0
      %2654 = vmatpush2.msra.mxu0 0.0
      %2655 = vmatprep.subr.mxu0 0.0
      %2656 = vmatpush2.msra.mxu0 0.0
      %2657 = vmatprep.subr.mxu0 0.0
      %2658 = vmatpush2.msra.mxu0 0.0
      %2659 = vmatprep.subr.mxu0 0.0
      %2660 = vmatpush2.msra.mxu0 %v2576
      %2661 = vmatprep.subr.mxu0 0.0
      %2662 = vmatpush2.msra.mxu0 %v2575
      %2663 = vmatprep.mubr.f32.mxu0 %v2595
      %2664 = vmatmul.mubr.f32.gmra.mxu0 %v2585
      %v2665 = vpop.f32.mrf.mxu0
      %v2666 = vadd.f32 0.0, %v2665
      %v2667 = vpop.f32.mrf.mxu0
      %2668 = vmatprep.mubr.f32.mxu0 %v2597
      %2669 = vmatmul.mubr.f32.gmra.mxu0 %v2590
      %v2670 = vpop.f32.mrf.mxu0
      %v2671 = vadd.f32 0.0, %v2670
      %v2672 = vpop.f32.mrf.mxu0
      %2673 = vdwg.mxu0
      %v2675 = vsel %vm426, %v2534, 0
      %v2677 = vsel %vm426, %v2536, 0
      %2679 = vmatprep.subr.mxu0 0.0
      %2680 = vmatpush1.msra.mxu0 %v2552
      %2681 = vmatprep.subr.mxu0 0.0
      %2682 = vmatpush1.msra.mxu0 %v2551
      %2683 = vmatprep.subr.mxu0 0.0
      %2684 = vmatpush1.msra.mxu0 %v2550
      %2685 = vmatprep.subr.mxu0 0.0
      %2686 = vmatpush1.msra.mxu0 %v2549
      %2687 = vmatprep.subr.mxu0 0.0
      %2688 = vmatpush1.msra.mxu0 %v2548
      %2689 = vmatprep.subr.mxu0 0.0
      %2690 = vmatpush1.msra.mxu0 %v2547
      %2691 = vmatprep.subr.mxu0 0.0
      %2692 = vmatpush1.msra.mxu0 %v2546
      %2693 = vmatprep.subr.mxu0 0.0
      %2694 = vmatpush1.msra.mxu0 %v2545
      %2695 = vmatprep.subr.mxu0 0.0
      %2696 = vmatpush1.msra.mxu0 %v2544
      %2697 = vmatprep.subr.mxu0 0.0
      %2698 = vmatpush1.msra.mxu0 %v2543
      %2699 = vmatprep.subr.mxu0 0.0
      %2700 = vmatpush1.msra.mxu0 %v2542
      %2701 = vmatprep.subr.mxu0 0.0
      %2702 = vmatpush1.msra.mxu0 %v2541
      %2703 = vmatprep.subr.mxu0 0.0
      %2704 = vmatpush1.msra.mxu0 %v2540
      %2705 = vmatprep.subr.mxu0 0.0
      %2706 = vmatpush1.msra.mxu0 %v2539
      %2707 = vmatprep.subr.mxu0 0.0
      %2708 = vmatpush1.msra.mxu0 %v2538
      %2709 = vmatprep.subr.mxu0 0.0
      %2710 = vmatpush1.msra.mxu0 %v2537
      %2711 = vmatprep.subr.mxu0 0.0
      %2712 = vmatpush2.msra.mxu0 0.0
      %2713 = vmatprep.subr.mxu0 0.0
      %2714 = vmatpush2.msra.mxu0 0.0
      %2715 = vmatprep.subr.mxu0 0.0
      %2716 = vmatpush2.msra.mxu0 0.0
      %2717 = vmatprep.subr.mxu0 0.0
      %2718 = vmatpush2.msra.mxu0 0.0
      %2719 = vmatprep.subr.mxu0 0.0
      %2720 = vmatpush2.msra.mxu0 0.0
      %2721 = vmatprep.subr.mxu0 0.0
      %2722 = vmatpush2.msra.mxu0 0.0
      %2723 = vmatprep.subr.mxu0 0.0
      %2724 = vmatpush2.msra.mxu0 0.0
      %2725 = vmatprep.subr.mxu0 0.0
      %2726 = vmatpush2.msra.mxu0 0.0
      %2727 = vmatprep.subr.mxu0 0.0
      %2728 = vmatpush2.msra.mxu0 0.0
      %2729 = vmatprep.subr.mxu0 0.0
      %2730 = vmatpush2.msra.mxu0 0.0
      %2731 = vmatprep.subr.mxu0 0.0
      %2732 = vmatpush2.msra.mxu0 0.0
      %2733 = vmatprep.subr.mxu0 0.0
      %2734 = vmatpush2.msra.mxu0 0.0
      %2735 = vmatprep.subr.mxu0 0.0
      %2736 = vmatpush2.msra.mxu0 0.0
      %2737 = vmatprep.subr.mxu0 0.0
      %2738 = vmatpush2.msra.mxu0 0.0
      %2739 = vmatprep.subr.mxu0 0.0
      %2740 = vmatpush2.msra.mxu0 %v2554
      %2741 = vmatprep.subr.mxu0 0.0
      %2742 = vmatpush2.msra.mxu0 %v2553
      %2743 = vmatprep.mubr.f32.mxu0 %v2675
      %2744 = vmatmul.mubr.f32.gmra.mxu0 %v2533
      %v2745 = vpop.f32.mrf.mxu0
      %v2746 = vadd.f32 %v2666, %v2745
      %v2747 = vpop.f32.mrf.mxu0
      %2748 = vmatprep.mubr.f32.mxu0 %v2677
      %2749 = vmatmul.mubr.f32.gmra.mxu0 %v2535
      %v2750 = vpop.f32.mrf.mxu0
      %v2751 = vadd.f32 %v2671, %v2750
      %v2752 = vpop.f32.mrf.mxu0
      %2753 = vdwg.mxu0
      %v2754 = vld [vmem:[#allocation2] sm:$0xfc]
      %v2755 = vld [vmem:[#allocation2 + $0x8] sm:$0xfc]
      %v2756 = vld [vmem:[#allocation2 + $0x20] sm:$0x3]
      %v2757 = vld [vmem:[#allocation2 + $0x28] sm:$0x3]
      %v2758 = vld [vmem:[%s689] sm:$0xff]
      %v2759 = vld [vmem:[%s689 + $0x8] sm:$0xff]
      %v2760 = vld [vmem:[%s689 + $0x10] sm:$0xff]
      %v2761 = vld [vmem:[%s689 + $0x18] sm:$0xff]
      %v2762 = vld [vmem:[%s689 + $0x20] sm:$0xff]
      %v2763 = vld [vmem:[%s689 + $0x28] sm:$0xff]
      %v2764 = vld [vmem:[%s689 + $0x30] sm:$0xff]
      %v2765 = vld [vmem:[%s689 + $0x38] sm:$0xff]
      %v2766 = vld [vmem:[%s689 + $0x40] sm:$0xff]
      %v2767 = vld [vmem:[%s689 + $0x48] sm:$0xff]
      %v2768 = vld [vmem:[%s689 + $0x50] sm:$0xff]
      %v2769 = vld [vmem:[%s689 + $0x58] sm:$0xff]
      %v2770 = vld [vmem:[%s689 + $0x60] sm:$0xff]
      %v2771 = vld [vmem:[%s689 + $0x68] sm:$0xff]
      %v2772 = vld [vmem:[%s689 + $0x70] sm:$0xff]
      %v2773 = vld [vmem:[%s689 + $0x78] sm:$0xff]
      %v2774 = vld [vmem:[%s689 + $0x80] sm:$0xff]
      %v2775 = vld [vmem:[%s689 + $0x88] sm:$0xff]
      %v2780 = vrot.slane %v2754, 2
      %v2781 = vrot.slane %v2535, 2
      %v2782 = vsel %vm712, %v2780, %v2781
      %v2783 = vrot.slane %v2755, 2
      %v2784 = vrot.slane %v2536, 2
      %v2785 = vsel %vm712, %v2783, %v2784
      %v2786 = vrot.slane %v2756, 2
      %v2787 = vsel %vm712, %v2781, %v2786
      %v2788 = vrot.slane %v2757, 2
      %v2789 = vsel %vm712, %v2784, %v2788
      %v2792 = vsel %vm426, %v2785, 0
      %v2794 = vsel %vm426, %v2789, 0
      %2796 = vmatprep.subr.mxu0 0.0
      %2797 = vmatpush1.msra.mxu0 %v2773
      %2798 = vmatprep.subr.mxu0 0.0
      %2799 = vmatpush1.msra.mxu0 %v2772
      %2800 = vmatprep.subr.mxu0 0.0
      %2801 = vmatpush1.msra.mxu0 %v2771
      %2802 = vmatprep.subr.mxu0 0.0
      %2803 = vmatpush1.msra.mxu0 %v2770
      %2804 = vmatprep.subr.mxu0 0.0
      %2805 = vmatpush1.msra.mxu0 %v2769
      %2806 = vmatprep.subr.mxu0 0.0
      %2807 = vmatpush1.msra.mxu0 %v2768
      %2808 = vmatprep.subr.mxu0 0.0
      %2809 = vmatpush1.msra.mxu0 %v2767
      %2810 = vmatprep.subr.mxu0 0.0
      %2811 = vmatpush1.msra.mxu0 %v2766
      %2812 = vmatprep.subr.mxu0 0.0
      %2813 = vmatpush1.msra.mxu0 %v2765
      %2814 = vmatprep.subr.mxu0 0.0
      %2815 = vmatpush1.msra.mxu0 %v2764
      %2816 = vmatprep.subr.mxu0 0.0
      %2817 = vmatpush1.msra.mxu0 %v2763
      %2818 = vmatprep.subr.mxu0 0.0
      %2819 = vmatpush1.msra.mxu0 %v2762
      %2820 = vmatprep.subr.mxu0 0.0
      %2821 = vmatpush1.msra.mxu0 %v2761
      %2822 = vmatprep.subr.mxu0 0.0
      %2823 = vmatpush1.msra.mxu0 %v2760
      %2824 = vmatprep.subr.mxu0 0.0
      %2825 = vmatpush1.msra.mxu0 %v2759
      %2826 = vmatprep.subr.mxu0 0.0
      %2827 = vmatpush1.msra.mxu0 %v2758
      %2828 = vmatprep.subr.mxu0 0.0
      %2829 = vmatpush2.msra.mxu0 0.0
      %2830 = vmatprep.subr.mxu0 0.0
      %2831 = vmatpush2.msra.mxu0 0.0
      %2832 = vmatprep.subr.mxu0 0.0
      %2833 = vmatpush2.msra.mxu0 0.0
      %2834 = vmatprep.subr.mxu0 0.0
      %2835 = vmatpush2.msra.mxu0 0.0
      %2836 = vmatprep.subr.mxu0 0.0
      %2837 = vmatpush2.msra.mxu0 0.0
      %2838 = vmatprep.subr.mxu0 0.0
      %2839 = vmatpush2.msra.mxu0 0.0
      %2840 = vmatprep.subr.mxu0 0.0
      %2841 = vmatpush2.msra.mxu0 0.0
      %2842 = vmatprep.subr.mxu0 0.0
      %2843 = vmatpush2.msra.mxu0 0.0
      %2844 = vmatprep.subr.mxu0 0.0
      %2845 = vmatpush2.msra.mxu0 0.0
      %2846 = vmatprep.subr.mxu0 0.0
      %2847 = vmatpush2.msra.mxu0 0.0
      %2848 = vmatprep.subr.mxu0 0.0
      %2849 = vmatpush2.msra.mxu0 0.0
      %2850 = vmatprep.subr.mxu0 0.0
      %2851 = vmatpush2.msra.mxu0 0.0
      %2852 = vmatprep.subr.mxu0 0.0
      %2853 = vmatpush2.msra.mxu0 0.0
      %2854 = vmatprep.subr.mxu0 0.0
      %2855 = vmatpush2.msra.mxu0 0.0
      %2856 = vmatprep.subr.mxu0 0.0
      %2857 = vmatpush2.msra.mxu0 %v2775
      %2858 = vmatprep.subr.mxu0 0.0
      %2859 = vmatpush2.msra.mxu0 %v2774
      %2860 = vmatprep.mubr.f32.mxu0 %v2792
      %2861 = vmatmul.mubr.f32.gmra.mxu0 %v2782
      %v2862 = vpop.f32.mrf.mxu0
      %v2863 = vadd.f32 0.0, %v2862
      %v2864 = vpop.f32.mrf.mxu0
      %2865 = vmatprep.mubr.f32.mxu0 %v2794
      %2866 = vmatmul.mubr.f32.gmra.mxu0 %v2787
      %v2867 = vpop.f32.mrf.mxu0
      %v2868 = vadd.f32 0.0, %v2867
      %v2869 = vpop.f32.mrf.mxu0
      %2870 = vdwg.mxu0
      %v2871 = vadd.f32 %v2746, %v2863
      %v2872 = vadd.f32 %v2751, %v2868
      %v2873 = vld [vmem:[%s2] sm:$0x1]
      %v2875 = vlaneseq
      %v2876 = vshrl.u32 %v2875, 7
      %v2877 = vsub.s32 0, %v2876
      %v2878 = vrot.slane %v2873, %v2877
      %v2880 = vadd.f32 %v2871, %v2878
      %v2881 = vadd.f32 %v2872, %v2878
      %v2882 = vmax.f32 %v2880, 0.0
      %v2883 = vmax.f32 %v2881, 0.0
      %2884 = vst [vmem:[%s424] sm:$0xff] %v2882
      %2885 = vst [vmem:[%s424 + $0x8] sm:$0xff] %v2883
      %v2886 = vld [vmem:[%s5] sm:$0xff]
      %v2887 = vld [vmem:[%s5 + $0x8] sm:$0xff]
      %v2888 = vld [vmem:[%s5 + $0x10] sm:$0xff]
      %v2889 = vld [vmem:[%s5 + $0x18] sm:$0xff]
      %v2890 = vld [vmem:[%s5 + $0x20] sm:$0xff]
      %v2891 = vld [vmem:[%s5 + $0x28] sm:$0xff]
      %v2892 = vld [vmem:[%s5 + $0x30] sm:$0xff]
      %v2893 = vld [vmem:[%s5 + $0x38] sm:$0xff]
      %v2894 = vld [vmem:[%s5 + $0x40] sm:$0xff]
      %v2895 = vld [vmem:[%s5 + $0x48] sm:$0xff]
      %v2896 = vld [vmem:[%s5 + $0x50] sm:$0xff]
      %v2897 = vld [vmem:[%s5 + $0x58] sm:$0xff]
      %v2898 = vld [vmem:[%s5 + $0x60] sm:$0xff]
      %v2899 = vld [vmem:[%s5 + $0x68] sm:$0xff]
      %v2900 = vld [vmem:[%s5 + $0x70] sm:$0xff]
      %v2901 = vld [vmem:[%s5 + $0x78] sm:$0xff]
      %v2902 = vld [vmem:[%s6] sm:$0x1]
      %v2904 = vlaneseq
      %v2905 = vshrl.u32 %v2904, 7
      %v2906 = vsub.s32 0, %v2905
      %v2907 = vrot.slane %v2902, %v2906
      %2909 = vmatprep.subr.mxu0 0.0
      %2910 = vmatpush1.msra.mxu0 %v2901
      %2911 = vmatprep.subr.mxu0 0.0
      %2912 = vmatpush1.msra.mxu0 %v2900
      %2913 = vmatprep.subr.mxu0 0.0
      %2914 = vmatpush1.msra.mxu0 %v2899
      %2915 = vmatprep.subr.mxu0 0.0
      %2916 = vmatpush1.msra.mxu0 %v2898
      %2917 = vmatprep.subr.mxu0 0.0
      %2918 = vmatpush1.msra.mxu0 %v2897
      %2919 = vmatprep.subr.mxu0 0.0
      %2920 = vmatpush1.msra.mxu0 %v2896
      %2921 = vmatprep.subr.mxu0 0.0
      %2922 = vmatpush1.msra.mxu0 %v2895
      %2923 = vmatprep.subr.mxu0 0.0
      %2924 = vmatpush1.msra.mxu0 %v2894
      %2925 = vmatprep.subr.mxu0 0.0
      %2926 = vmatpush1.msra.mxu0 %v2893
      %2927 = vmatprep.subr.mxu0 0.0
      %2928 = vmatpush1.msra.mxu0 %v2892
      %2929 = vmatprep.subr.mxu0 0.0
      %2930 = vmatpush1.msra.mxu0 %v2891
      %2931 = vmatprep.subr.mxu0 0.0
      %2932 = vmatpush1.msra.mxu0 %v2890
      %2933 = vmatprep.subr.mxu0 0.0
      %2934 = vmatpush1.msra.mxu0 %v2889
      %2935 = vmatprep.subr.mxu0 0.0
      %2936 = vmatpush1.msra.mxu0 %v2888
      %2937 = vmatprep.subr.mxu0 0.0
      %2938 = vmatpush1.msra.mxu0 %v2887
      %2939 = vmatprep.subr.mxu0 0.0
      %2940 = vmatpush1.msra.mxu0 %v2886
      %2941 = vmatprep.subr.mxu0 0.0
      %2942 = vmatpush2.msra.mxu0 0.0
      %2943 = vmatprep.subr.mxu0 0.0
      %2944 = vmatpush2.msra.mxu0 0.0
      %2945 = vmatprep.subr.mxu0 0.0
      %2946 = vmatpush2.msra.mxu0 0.0
      %2947 = vmatprep.subr.mxu0 0.0
      %2948 = vmatpush2.msra.mxu0 0.0
      %2949 = vmatprep.subr.mxu0 0.0
      %2950 = vmatpush2.msra.mxu0 0.0
      %2951 = vmatprep.subr.mxu0 0.0
      %2952 = vmatpush2.msra.mxu0 0.0
      %2953 = vmatprep.subr.mxu0 0.0
      %2954 = vmatpush2.msra.mxu0 0.0
      %2955 = vmatprep.subr.mxu0 0.0
      %2956 = vmatpush2.msra.mxu0 0.0
      %2957 = vmatprep.subr.mxu0 0.0
      %2958 = vmatpush2.msra.mxu0 0.0
      %2959 = vmatprep.subr.mxu0 0.0
      %2960 = vmatpush2.msra.mxu0 0.0
      %2961 = vmatprep.subr.mxu0 0.0
      %2962 = vmatpush2.msra.mxu0 0.0
      %2963 = vmatprep.subr.mxu0 0.0
      %2964 = vmatpush2.msra.mxu0 0.0
      %2965 = vmatprep.subr.mxu0 0.0
      %2966 = vmatpush2.msra.mxu0 0.0
      %2967 = vmatprep.subr.mxu0 0.0
      %2968 = vmatpush2.msra.mxu0 0.0
      %2969 = vmatprep.subr.mxu0 0.0
      %2970 = vmatpush2.msra.mxu0 0.0
      %2971 = vmatprep.subr.mxu0 0.0
      %2972 = vmatpush2.msra.mxu0 0.0
      %2973 = vmatprep.mubr.f32.mxu0 0.0
      %2974 = vmatmul.mubr.f32.gmra.mxu0 %v433
      %v2975 = vpop.f32.mrf.mxu0
      %v2976 = vadd.f32 %v2907, %v2975
      %v2977 = vpop.f32.mrf.mxu0
      %2978 = vmatprep.mubr.f32.mxu0 0.0
      %2979 = vmatmul.mubr.f32.gmra.mxu0 %v434
      %v2980 = vpop.f32.mrf.mxu0
      %v2981 = vadd.f32 %v2907, %v2980
      %v2982 = vpop.f32.mrf.mxu0
      %2983 = vdwg.mxu0
      %v2984 = vadd.f32 %v2976, %v2882
      %v2985 = vadd.f32 %v2981, %v2883
      %v2986 = vmax.f32 %v2984, 0.0
      %v2987 = vmax.f32 %v2985, 0.0
      %v2988 = vld [vmem:[%s7] sm:$0xff]
      %v2989 = vld [vmem:[%s7 + $0x8] sm:$0xff]
      %v2990 = vld [vmem:[%s7 + $0x10] sm:$0xff]
      %v2991 = vld [vmem:[%s7 + $0x18] sm:$0xff]
      %v2992 = vld [vmem:[%s7 + $0x20] sm:$0xff]
      %v2993 = vld [vmem:[%s7 + $0x28] sm:$0xff]
      %v2994 = vld [vmem:[%s7 + $0x30] sm:$0xff]
      %v2995 = vld [vmem:[%s7 + $0x38] sm:$0xff]
      %v2996 = vld [vmem:[%s7 + $0x40] sm:$0xff]
      %v2997 = vld [vmem:[%s7 + $0x48] sm:$0xff]
      %v2998 = vld [vmem:[%s7 + $0x50] sm:$0xff]
      %v2999 = vld [vmem:[%s7 + $0x58] sm:$0xff]
      %v3000 = vld [vmem:[%s7 + $0x60] sm:$0xff]
      %v3001 = vld [vmem:[%s7 + $0x68] sm:$0xff]
      %v3002 = vld [vmem:[%s7 + $0x70] sm:$0xff]
      %v3003 = vld [vmem:[%s7 + $0x78] sm:$0xff]
      %3004 = vmatprep.subr.mxu0 0.0
      %3005 = vmatpush1.msra.mxu0 %v3003
      %3006 = vmatprep.subr.mxu0 0.0
      %3007 = vmatpush1.msra.mxu0 %v3002
      %3008 = vmatprep.subr.mxu0 0.0
      %3009 = vmatpush1.msra.mxu0 %v3001
      %3010 = vmatprep.subr.mxu0 0.0
      %3011 = vmatpush1.msra.mxu0 %v3000
      %3012 = vmatprep.subr.mxu0 0.0
      %3013 = vmatpush1.msra.mxu0 %v2999
      %3014 = vmatprep.subr.mxu0 0.0
      %3015 = vmatpush1.msra.mxu0 %v2998
      %3016 = vmatprep.subr.mxu0 0.0
      %3017 = vmatpush1.msra.mxu0 %v2997
      %3018 = vmatprep.subr.mxu0 0.0
      %3019 = vmatpush1.msra.mxu0 %v2996
      %3020 = vmatprep.subr.mxu0 0.0
      %3021 = vmatpush1.msra.mxu0 %v2995
      %3022 = vmatprep.subr.mxu0 0.0
      %3023 = vmatpush1.msra.mxu0 %v2994
      %3024 = vmatprep.subr.mxu0 0.0
      %3025 = vmatpush1.msra.mxu0 %v2993
      %3026 = vmatprep.subr.mxu0 0.0
      %3027 = vmatpush1.msra.mxu0 %v2992
      %3028 = vmatprep.subr.mxu0 0.0
      %3029 = vmatpush1.msra.mxu0 %v2991
      %3030 = vmatprep.subr.mxu0 0.0
      %3031 = vmatpush1.msra.mxu0 %v2990
      %3032 = vmatprep.subr.mxu0 0.0
      %3033 = vmatpush1.msra.mxu0 %v2989
      %3034 = vmatprep.subr.mxu0 0.0
      %3035 = vmatpush1.msra.mxu0 %v2988
      %3036 = vmatprep.subr.mxu0 0.0
      %3037 = vmatpush2.msra.mxu0 0.0
      %3038 = vmatprep.subr.mxu0 0.0
      %3039 = vmatpush2.msra.mxu0 0.0
      %3040 = vmatprep.subr.mxu0 0.0
      %3041 = vmatpush2.msra.mxu0 0.0
      %3042 = vmatprep.subr.mxu0 0.0
      %3043 = vmatpush2.msra.mxu0 0.0
      %3044 = vmatprep.subr.mxu0 0.0
      %3045 = vmatpush2.msra.mxu0 0.0
      %3046 = vmatprep.subr.mxu0 0.0
      %3047 = vmatpush2.msra.mxu0 0.0
      %3048 = vmatprep.subr.mxu0 0.0
      %3049 = vmatpush2.msra.mxu0 0.0
      %3050 = vmatprep.subr.mxu0 0.0
      %3051 = vmatpush2.msra.mxu0 0.0
      %3052 = vmatprep.subr.mxu0 0.0
      %3053 = vmatpush2.msra.mxu0 0.0
      %3054 = vmatprep.subr.mxu0 0.0
      %3055 = vmatpush2.msra.mxu0 0.0
      %3056 = vmatprep.subr.mxu0 0.0
      %3057 = vmatpush2.msra.mxu0 0.0
      %3058 = vmatprep.subr.mxu0 0.0
      %3059 = vmatpush2.msra.mxu0 0.0
      %3060 = vmatprep.subr.mxu0 0.0
      %3061 = vmatpush2.msra.mxu0 0.0
      %3062 = vmatprep.subr.mxu0 0.0
      %3063 = vmatpush2.msra.mxu0 0.0
      %3064 = vmatprep.subr.mxu0 0.0
      %3065 = vmatpush2.msra.mxu0 0.0
      %3066 = vmatprep.subr.mxu0 0.0
      %3067 = vmatpush2.msra.mxu0 0.0
      %3068 = vmatprep.mubr.f32.mxu0 0.0
      %3069 = vmatmul.mubr.f32.gmra.mxu0 %v2986
      %v3070 = vpop.f32.mrf.mxu0
      %v3071 = vadd.f32 0.0, %v3070
      %v3072 = vpop.f32.mrf.mxu0
      %3073 = vmatprep.mubr.f32.mxu0 0.0
      %3074 = vmatmul.mubr.f32.gmra.mxu0 %v2987
      %v3075 = vpop.f32.mrf.mxu0
      %v3076 = vadd.f32 0.0, %v3075
      %v3077 = vpop.f32.mrf.mxu0
      %3078 = vdwg.mxu0
      %v3079 = vld [vmem:[%s8] sm:$0xff]
      %v3080 = vld [vmem:[%s8 + $0x8] sm:$0xff]
      %v3081 = vld [vmem:[%s8 + $0x10] sm:$0xff]
      %v3082 = vld [vmem:[%s8 + $0x18] sm:$0xff]
      %v3083 = vld [vmem:[%s8 + $0x20] sm:$0xff]
      %v3084 = vld [vmem:[%s8 + $0x28] sm:$0xff]
      %v3085 = vld [vmem:[%s8 + $0x30] sm:$0xff]
      %v3086 = vld [vmem:[%s8 + $0x38] sm:$0xff]
      %v3087 = vld [vmem:[%s8 + $0x40] sm:$0xff]
      %v3088 = vld [vmem:[%s8 + $0x48] sm:$0xff]
      %v3089 = vld [vmem:[%s8 + $0x50] sm:$0xff]
      %v3090 = vld [vmem:[%s8 + $0x58] sm:$0xff]
      %v3091 = vld [vmem:[%s8 + $0x60] sm:$0xff]
      %v3092 = vld [vmem:[%s8 + $0x68] sm:$0xff]
      %v3093 = vld [vmem:[%s8 + $0x70] sm:$0xff]
      %v3094 = vld [vmem:[%s8 + $0x78] sm:$0xff]
      %3095 = vmatprep.subr.mxu0 0.0
      %3096 = vmatpush1.msra.mxu0 %v3094
      %3097 = vmatprep.subr.mxu0 0.0
      %3098 = vmatpush1.msra.mxu0 %v3093
      %3099 = vmatprep.subr.mxu0 0.0
      %3100 = vmatpush1.msra.mxu0 %v3092
      %3101 = vmatprep.subr.mxu0 0.0
      %3102 = vmatpush1.msra.mxu0 %v3091
      %3103 = vmatprep.subr.mxu0 0.0
      %3104 = vmatpush1.msra.mxu0 %v3090
      %3105 = vmatprep.subr.mxu0 0.0
      %3106 = vmatpush1.msra.mxu0 %v3089
      %3107 = vmatprep.subr.mxu0 0.0
      %3108 = vmatpush1.msra.mxu0 %v3088
      %3109 = vmatprep.subr.mxu0 0.0
      %3110 = vmatpush1.msra.mxu0 %v3087
      %3111 = vmatprep.subr.mxu0 0.0
      %3112 = vmatpush1.msra.mxu0 %v3086
      %3113 = vmatprep.subr.mxu0 0.0
      %3114 = vmatpush1.msra.mxu0 %v3085
      %3115 = vmatprep.subr.mxu0 0.0
      %3116 = vmatpush1.msra.mxu0 %v3084
      %3117 = vmatprep.subr.mxu0 0.0
      %3118 = vmatpush1.msra.mxu0 %v3083
      %3119 = vmatprep.subr.mxu0 0.0
      %3120 = vmatpush1.msra.mxu0 %v3082
      %3121 = vmatprep.subr.mxu0 0.0
      %3122 = vmatpush1.msra.mxu0 %v3081
      %3123 = vmatprep.subr.mxu0 0.0
      %3124 = vmatpush1.msra.mxu0 %v3080
      %3125 = vmatprep.subr.mxu0 0.0
      %3126 = vmatpush1.msra.mxu0 %v3079
      %3127 = vmatprep.subr.mxu0 0.0
      %3128 = vmatpush2.msra.mxu0 0.0
      %3129 = vmatprep.subr.mxu0 0.0
      %3130 = vmatpush2.msra.mxu0 0.0
      %3131 = vmatprep.subr.mxu0 0.0
      %3132 = vmatpush2.msra.mxu0 0.0
      %3133 = vmatprep.subr.mxu0 0.0
      %3134 = vmatpush2.msra.mxu0 0.0
      %3135 = vmatprep.subr.mxu0 0.0
      %3136 = vmatpush2.msra.mxu0 0.0
      %3137 = vmatprep.subr.mxu0 0.0
      %3138 = vmatpush2.msra.mxu0 0.0
      %3139 = vmatprep.subr.mxu0 0.0
      %3140 = vmatpush2.msra.mxu0 0.0
      %3141 = vmatprep.subr.mxu0 0.0
      %3142 = vmatpush2.msra.mxu0 0.0
      %3143 = vmatprep.subr.mxu0 0.0
      %3144 = vmatpush2.msra.mxu0 0.0
      %3145 = vmatprep.subr.mxu0 0.0
      %3146 = vmatpush2.msra.mxu0 0.0
      %3147 = vmatprep.subr.mxu0 0.0
      %3148 = vmatpush2.msra.mxu0 0.0
      %3149 = vmatprep.subr.mxu0 0.0
      %3150 = vmatpush2.msra.mxu0 0.0
      %3151 = vmatprep.subr.mxu0 0.0
      %3152 = vmatpush2.msra.mxu0 0.0
      %3153 = vmatprep.subr.mxu0 0.0
      %3154 = vmatpush2.msra.mxu0 0.0
      %3155 = vmatprep.subr.mxu0 0.0
      %3156 = vmatpush2.msra.mxu0 0.0
      %3157 = vmatprep.subr.mxu0 0.0
      %3158 = vmatpush2.msra.mxu0 0.0
      %3159 = vmatprep.mubr.f32.mxu0 0.0
      %3160 = vmatmul.mubr.f32.gmra.mxu0 %v2986
      %v3161 = vpop.f32.mrf.mxu0
      %v3162 = vadd.f32 0.0, %v3161
      %v3163 = vpop.f32.mrf.mxu0
      %3164 = vmatprep.mubr.f32.mxu0 0.0
      %3165 = vmatmul.mubr.f32.gmra.mxu0 %v2987
      %v3166 = vpop.f32.mrf.mxu0
      %v3167 = vadd.f32 0.0, %v3166
      %v3168 = vpop.f32.mrf.mxu0
      %3169 = vdwg.mxu0
      %v3170 = vmax.f32 %v3071, %v3162
      %v3171 = vmax.f32 %v3076, %v3167
      %v3172 = vld [vmem:[%s9] sm:$0xff]
      %v3174 = vsel %vm426, %v3172, 0
      %3176 = vmatprep.subr.mxu0 0.0
      %3177 = vmatpush1.msra.mxu0 0.0
      %3178 = vmatprep.subr.mxu0 0.0
      %3179 = vmatpush1.msra.mxu0 0.0
      %3180 = vmatprep.subr.mxu0 0.0
      %3181 = vmatpush1.msra.mxu0 0.0
      %3182 = vmatprep.subr.mxu0 0.0
      %3183 = vmatpush1.msra.mxu0 0.0
      %3184 = vmatprep.subr.mxu0 0.0
      %3185 = vmatpush1.msra.mxu0 0.0
      %3186 = vmatprep.subr.mxu0 0.0
      %3187 = vmatpush1.msra.mxu0 0.0
      %3188 = vmatprep.subr.mxu0 0.0
      %3189 = vmatpush1.msra.mxu0 0.0
      %3190 = vmatprep.subr.mxu0 0.0
      %3191 = vmatpush1.msra.mxu0 0.0
      %3192 = vmatprep.subr.mxu0 0.0
      %3193 = vmatpush1.msra.mxu0 0.0
      %3194 = vmatprep.subr.mxu0 0.0
      %3195 = vmatpush1.msra.mxu0 0.0
      %3196 = vmatprep.subr.mxu0 0.0
      %3197 = vmatpush1.msra.mxu0 0.0
      %3198 = vmatprep.subr.mxu0 0.0
      %3199 = vmatpush1.msra.mxu0 0.0
      %3200 = vmatprep.subr.mxu0 0.0
      %3201 = vmatpush1.msra.mxu0 0.0
      %3202 = vmatprep.subr.mxu0 0.0
      %3203 = vmatpush1.msra.mxu0 0.0
      %3204 = vmatprep.subr.mxu0 0.0
      %3205 = vmatpush1.msra.mxu0 %v3171
      %3206 = vmatprep.subr.mxu0 0.0
      %3207 = vmatpush1.msra.mxu0 %v3170
      %3208 = vmatprep.subr.mxu0 0.0
      %3209 = vmatpush2.msra.mxu0 0.0
      %3210 = vmatprep.subr.mxu0 0.0
      %3211 = vmatpush2.msra.mxu0 0.0
      %3212 = vmatprep.subr.mxu0 0.0
      %3213 = vmatpush2.msra.mxu0 0.0
      %3214 = vmatprep.subr.mxu0 0.0
      %3215 = vmatpush2.msra.mxu0 0.0
      %3216 = vmatprep.subr.mxu0 0.0
      %3217 = vmatpush2.msra.mxu0 0.0
      %3218 = vmatprep.subr.mxu0 0.0
      %3219 = vmatpush2.msra.mxu0 0.0
      %3220 = vmatprep.subr.mxu0 0.0
      %3221 = vmatpush2.msra.mxu0 0.0
      %3222 = vmatprep.subr.mxu0 0.0
      %3223 = vmatpush2.msra.mxu0 0.0
      %3224 = vmatprep.subr.mxu0 0.0
      %3225 = vmatpush2.msra.mxu0 0.0
      %3226 = vmatprep.subr.mxu0 0.0
      %3227 = vmatpush2.msra.mxu0 0.0
      %3228 = vmatprep.subr.mxu0 0.0
      %3229 = vmatpush2.msra.mxu0 0.0
      %3230 = vmatprep.subr.mxu0 0.0
      %3231 = vmatpush2.msra.mxu0 0.0
      %3232 = vmatprep.subr.mxu0 0.0
      %3233 = vmatpush2.msra.mxu0 0.0
      %3234 = vmatprep.subr.mxu0 0.0
      %3235 = vmatpush2.msra.mxu0 0.0
      %3236 = vmatprep.subr.mxu0 0.0
      %3237 = vmatpush2.msra.mxu0 0.0
      %3238 = vmatprep.subr.mxu0 0.0
      %3239 = vmatpush2.msra.mxu0 0.0
      %3240 = vmatprep.mubr.f32.mxu0 0.0
      %3241 = vmatmul.mubr.f32.gmra.mxu0 %v3174
      %v3242 = vpop.f32.mrf.mxu0
      %v3243 = vadd.f32 0.0, %v3242
      %v3244 = vpop.f32.mrf.mxu0
      %3245 = vdwg.mxu0
      %v3246 = vld [vmem:[%s10] sm:$0xff]
      %v3248 = vsel %vm426, %v3246, 0
      %3250 = vmatprep.subr.mxu0 0.0
      %3251 = vmatpush1.msra.mxu0 0.0
      %3252 = vmatprep.subr.mxu0 0.0
      %3253 = vmatpush1.msra.mxu0 0.0
      %3254 = vmatprep.subr.mxu0 0.0
      %3255 = vmatpush1.msra.mxu0 0.0
      %3256 = vmatprep.subr.mxu0 0.0
      %3257 = vmatpush1.msra.mxu0 0.0
      %3258 = vmatprep.subr.mxu0 0.0
      %3259 = vmatpush1.msra.mxu0 0.0
      %3260 = vmatprep.subr.mxu0 0.0
      %3261 = vmatpush1.msra.mxu0 0.0
      %3262 = vmatprep.subr.mxu0 0.0
      %3263 = vmatpush1.msra.mxu0 0.0
      %3264 = vmatprep.subr.mxu0 0.0
      %3265 = vmatpush1.msra.mxu0 0.0
      %3266 = vmatprep.subr.mxu0 0.0
      %3267 = vmatpush1.msra.mxu0 0.0
      %3268 = vmatprep.subr.mxu0 0.0
      %3269 = vmatpush1.msra.mxu0 0.0
      %3270 = vmatprep.subr.mxu0 0.0
      %3271 = vmatpush1.msra.mxu0 0.0
      %3272 = vmatprep.subr.mxu0 0.0
      %3273 = vmatpush1.msra.mxu0 0.0
      %3274 = vmatprep.subr.mxu0 0.0
      %3275 = vmatpush1.msra.mxu0 0.0
      %3276 = vmatprep.subr.mxu0 0.0
      %3277 = vmatpush1.msra.mxu0 0.0
      %3278 = vmatprep.subr.mxu0 0.0
      %3279 = vmatpush1.msra.mxu0 %v3171
      %3280 = vmatprep.subr.mxu0 0.0
      %3281 = vmatpush1.msra.mxu0 %v3170
      %3282 = vmatprep.subr.mxu0 0.0
      %3283 = vmatpush2.msra.mxu0 0.0
      %3284 = vmatprep.subr.mxu0 0.0
      %3285 = vmatpush2.msra.mxu0 0.0
      %3286 = vmatprep.subr.mxu0 0.0
      %3287 = vmatpush2.msra.mxu0 0.0
      %3288 = vmatprep.subr.mxu0 0.0
      %3289 = vmatpush2.msra.mxu0 0.0
      %3290 = vmatprep.subr.mxu0 0.0
      %3291 = vmatpush2.msra.mxu0 0.0
      %3292 = vmatprep.subr.mxu0 0.0
      %3293 = vmatpush2.msra.mxu0 0.0
      %3294 = vmatprep.subr.mxu0 0.0
      %3295 = vmatpush2.msra.mxu0 0.0
      %3296 = vmatprep.subr.mxu0 0.0
      %3297 = vmatpush2.msra.mxu0 0.0
      %3298 = vmatprep.subr.mxu0 0.0
      %3299 = vmatpush2.msra.mxu0 0.0
      %3300 = vmatprep.subr.mxu0 0.0
      %3301 = vmatpush2.msra.mxu0 0.0
      %3302 = vmatprep.subr.mxu0 0.0
      %3303 = vmatpush2.msra.mxu0 0.0
      %3304 = vmatprep.subr.mxu0 0.0
      %3305 = vmatpush2.msra.mxu0 0.0
      %3306 = vmatprep.subr.mxu0 0.0
      %3307 = vmatpush2.msra.mxu0 0.0
      %3308 = vmatprep.subr.mxu0 0.0
      %3309 = vmatpush2.msra.mxu0 0.0
      %3310 = vmatprep.subr.mxu0 0.0
      %3311 = vmatpush2.msra.mxu0 0.0
      %3312 = vmatprep.subr.mxu0 0.0
      %3313 = vmatpush2.msra.mxu0 0.0
      %3314 = vmatprep.mubr.f32.mxu0 0.0
      %3315 = vmatmul.mubr.f32.gmra.mxu0 %v3248
      %v3316 = vpop.f32.mrf.mxu0
      %v3317 = vadd.f32 0.0, %v3316
      %v3318 = vpop.f32.mrf.mxu0
      %3319 = vdwg.mxu0
      %v3320 = vmax.f32 %v3243, %v3317
      %3321 = vmatprep.subr.mxu0 0.0
      %3322 = vmatpush1.msra.mxu0 %v3003
      %3323 = vmatprep.subr.mxu0 0.0
      %3324 = vmatpush1.msra.mxu0 %v3002
      %3325 = vmatprep.subr.mxu0 0.0
      %3326 = vmatpush1.msra.mxu0 %v3001
      %3327 = vmatprep.subr.mxu0 0.0
      %3328 = vmatpush1.msra.mxu0 %v3000
      %3329 = vmatprep.subr.mxu0 0.0
      %3330 = vmatpush1.msra.mxu0 %v2999
      %3331 = vmatprep.subr.mxu0 0.0
      %3332 = vmatpush1.msra.mxu0 %v2998
      %3333 = vmatprep.subr.mxu0 0.0
      %3334 = vmatpush1.msra.mxu0 %v2997
      %3335 = vmatprep.subr.mxu0 0.0
      %3336 = vmatpush1.msra.mxu0 %v2996
      %3337 = vmatprep.subr.mxu0 0.0
      %3338 = vmatpush1.msra.mxu0 %v2995
      %3339 = vmatprep.subr.mxu0 0.0
      %3340 = vmatpush1.msra.mxu0 %v2994
      %3341 = vmatprep.subr.mxu0 0.0
      %3342 = vmatpush1.msra.mxu0 %v2993
      %3343 = vmatprep.subr.mxu0 0.0
      %3344 = vmatpush1.msra.mxu0 %v2992
      %3345 = vmatprep.subr.mxu0 0.0
      %3346 = vmatpush1.msra.mxu0 %v2991
      %3347 = vmatprep.subr.mxu0 0.0
      %3348 = vmatpush1.msra.mxu0 %v2990
      %3349 = vmatprep.subr.mxu0 0.0
      %3350 = vmatpush1.msra.mxu0 %v2989
      %3351 = vmatprep.subr.mxu0 0.0
      %3352 = vmatpush1.msra.mxu0 %v2988
      %3353 = vmatprep.subr.mxu0 0.0
      %3354 = vmatpush2.msra.mxu0 0.0
      %3355 = vmatprep.subr.mxu0 0.0
      %3356 = vmatpush2.msra.mxu0 0.0
      %3357 = vmatprep.subr.mxu0 0.0
      %3358 = vmatpush2.msra.mxu0 0.0
      %3359 = vmatprep.subr.mxu0 0.0
      %3360 = vmatpush2.msra.mxu0 0.0
      %3361 = vmatprep.subr.mxu0 0.0
      %3362 = vmatpush2.msra.mxu0 0.0
      %3363 = vmatprep.subr.mxu0 0.0
      %3364 = vmatpush2.msra.mxu0 0.0
      %3365 = vmatprep.subr.mxu0 0.0
      %3366 = vmatpush2.msra.mxu0 0.0
      %3367 = vmatprep.subr.mxu0 0.0
      %3368 = vmatpush2.msra.mxu0 0.0
      %3369 = vmatprep.subr.mxu0 0.0
      %3370 = vmatpush2.msra.mxu0 0.0
      %3371 = vmatprep.subr.mxu0 0.0
      %3372 = vmatpush2.msra.mxu0 0.0
      %3373 = vmatprep.subr.mxu0 0.0
      %3374 = vmatpush2.msra.mxu0 0.0
      %3375 = vmatprep.subr.mxu0 0.0
      %3376 = vmatpush2.msra.mxu0 0.0
      %3377 = vmatprep.subr.mxu0 0.0
      %3378 = vmatpush2.msra.mxu0 0.0
      %3379 = vmatprep.subr.mxu0 0.0
      %3380 = vmatpush2.msra.mxu0 0.0
      %3381 = vmatprep.subr.mxu0 0.0
      %3382 = vmatpush2.msra.mxu0 0.0
      %3383 = vmatprep.subr.mxu0 0.0
      %3384 = vmatpush2.msra.mxu0 0.0
      %3385 = vmatprep.mubr.f32.mxu0 0.0
      %3386 = vmatmul.mubr.f32.gmra.mxu0 %v2882
      %v3387 = vpop.f32.mrf.mxu0
      %v3388 = vadd.f32 0.0, %v3387
      %v3389 = vpop.f32.mrf.mxu0
      %3390 = vmatprep.mubr.f32.mxu0 0.0
      %3391 = vmatmul.mubr.f32.gmra.mxu0 %v2883
      %v3392 = vpop.f32.mrf.mxu0
      %v3393 = vadd.f32 0.0, %v3392
      %v3394 = vpop.f32.mrf.mxu0
      %3395 = vdwg.mxu0
      %3396 = vmatprep.subr.mxu0 0.0
      %3397 = vmatpush1.msra.mxu0 %v3094
      %3398 = vmatprep.subr.mxu0 0.0
      %3399 = vmatpush1.msra.mxu0 %v3093
      %3400 = vmatprep.subr.mxu0 0.0
      %3401 = vmatpush1.msra.mxu0 %v3092
      %3402 = vmatprep.subr.mxu0 0.0
      %3403 = vmatpush1.msra.mxu0 %v3091
      %3404 = vmatprep.subr.mxu0 0.0
      %3405 = vmatpush1.msra.mxu0 %v3090
      %3406 = vmatprep.subr.mxu0 0.0
      %3407 = vmatpush1.msra.mxu0 %v3089
      %3408 = vmatprep.subr.mxu0 0.0
      %3409 = vmatpush1.msra.mxu0 %v3088
      %3410 = vmatprep.subr.mxu0 0.0
      %3411 = vmatpush1.msra.mxu0 %v3087
      %3412 = vmatprep.subr.mxu0 0.0
      %3413 = vmatpush1.msra.mxu0 %v3086
      %3414 = vmatprep.subr.mxu0 0.0
      %3415 = vmatpush1.msra.mxu0 %v3085
      %3416 = vmatprep.subr.mxu0 0.0
      %3417 = vmatpush1.msra.mxu0 %v3084
      %3418 = vmatprep.subr.mxu0 0.0
      %3419 = vmatpush1.msra.mxu0 %v3083
      %3420 = vmatprep.subr.mxu0 0.0
      %3421 = vmatpush1.msra.mxu0 %v3082
      %3422 = vmatprep.subr.mxu0 0.0
      %3423 = vmatpush1.msra.mxu0 %v3081
      %3424 = vmatprep.subr.mxu0 0.0
      %3425 = vmatpush1.msra.mxu0 %v3080
      %3426 = vmatprep.subr.mxu0 0.0
      %3427 = vmatpush1.msra.mxu0 %v3079
      %3428 = vmatprep.subr.mxu0 0.0
      %3429 = vmatpush2.msra.mxu0 0.0
      %3430 = vmatprep.subr.mxu0 0.0
      %3431 = vmatpush2.msra.mxu0 0.0
      %3432 = vmatprep.subr.mxu0 0.0
      %3433 = vmatpush2.msra.mxu0 0.0
      %3434 = vmatprep.subr.mxu0 0.0
      %3435 = vmatpush2.msra.mxu0 0.0
      %3436 = vmatprep.subr.mxu0 0.0
      %3437 = vmatpush2.msra.mxu0 0.0
      %3438 = vmatprep.subr.mxu0 0.0
      %3439 = vmatpush2.msra.mxu0 0.0
      %3440 = vmatprep.subr.mxu0 0.0
      %3441 = vmatpush2.msra.mxu0 0.0
      %3442 = vmatprep.subr.mxu0 0.0
      %3443 = vmatpush2.msra.mxu0 0.0
      %3444 = vmatprep.subr.mxu0 0.0
      %3445 = vmatpush2.msra.mxu0 0.0
      %3446 = vmatprep.subr.mxu0 0.0
      %3447 = vmatpush2.msra.mxu0 0.0
      %3448 = vmatprep.subr.mxu0 0.0
      %3449 = vmatpush2.msra.mxu0 0.0
      %3450 = vmatprep.subr.mxu0 0.0
      %3451 = vmatpush2.msra.mxu0 0.0
      %3452 = vmatprep.subr.mxu0 0.0
      %3453 = vmatpush2.msra.mxu0 0.0
      %3454 = vmatprep.subr.mxu0 0.0
      %3455 = vmatpush2.msra.mxu0 0.0
      %3456 = vmatprep.subr.mxu0 0.0
      %3457 = vmatpush2.msra.mxu0 0.0
      %3458 = vmatprep.subr.mxu0 0.0
      %3459 = vmatpush2.msra.mxu0 0.0
      %3460 = vmatprep.mubr.f32.mxu0 0.0
      %3461 = vmatmul.mubr.f32.gmra.mxu0 %v2882
      %v3462 = vpop.f32.mrf.mxu0
      %v3463 = vadd.f32 0.0, %v3462
      %v3464 = vpop.f32.mrf.mxu0
      %3465 = vmatprep.mubr.f32.mxu0 0.0
      %3466 = vmatmul.mubr.f32.gmra.mxu0 %v2883
      %v3467 = vpop.f32.mrf.mxu0
      %v3468 = vadd.f32 0.0, %v3467
      %v3469 = vpop.f32.mrf.mxu0
      %3470 = vdwg.mxu0
      %v3471 = vmax.f32 %v3388, %v3463
      %v3472 = vmax.f32 %v3393, %v3468
      %3473 = vmatprep.subr.mxu0 0.0
      %3474 = vmatpush1.msra.mxu0 0.0
      %3475 = vmatprep.subr.mxu0 0.0
      %3476 = vmatpush1.msra.mxu0 0.0
      %3477 = vmatprep.subr.mxu0 0.0
      %3478 = vmatpush1.msra.mxu0 0.0
      %3479 = vmatprep.subr.mxu0 0.0
      %3480 = vmatpush1.msra.mxu0 0.0
      %3481 = vmatprep.subr.mxu0 0.0
      %3482 = vmatpush1.msra.mxu0 0.0
      %3483 = vmatprep.subr.mxu0 0.0
      %3484 = vmatpush1.msra.mxu0 0.0
      %3485 = vmatprep.subr.mxu0 0.0
      %3486 = vmatpush1.msra.mxu0 0.0
      %3487 = vmatprep.subr.mxu0 0.0
      %3488 = vmatpush1.msra.mxu0 0.0
      %3489 = vmatprep.subr.mxu0 0.0
      %3490 = vmatpush1.msra.mxu0 0.0
      %3491 = vmatprep.subr.mxu0 0.0
      %3492 = vmatpush1.msra.mxu0 0.0
      %3493 = vmatprep.subr.mxu0 0.0
      %3494 = vmatpush1.msra.mxu0 0.0
      %3495 = vmatprep.subr.mxu0 0.0
      %3496 = vmatpush1.msra.mxu0 0.0
      %3497 = vmatprep.subr.mxu0 0.0
      %3498 = vmatpush1.msra.mxu0 0.0
      %3499 = vmatprep.subr.mxu0 0.0
      %3500 = vmatpush1.msra.mxu0 0.0
      %3501 = vmatprep.subr.mxu0 0.0
      %3502 = vmatpush1.msra.mxu0 %v3472
      %3503 = vmatprep.subr.mxu0 0.0
      %3504 = vmatpush1.msra.mxu0 %v3471
      %3505 = vmatprep.subr.mxu0 0.0
      %3506 = vmatpush2.msra.mxu0 0.0
      %3507 = vmatprep.subr.mxu0 0.0
      %3508 = vmatpush2.msra.mxu0 0.0
      %3509 = vmatprep.subr.mxu0 0.0
      %3510 = vmatpush2.msra.mxu0 0.0
      %3511 = vmatprep.subr.mxu0 0.0
      %3512 = vmatpush2.msra.mxu0 0.0
      %3513 = vmatprep.subr.mxu0 0.0
      %3514 = vmatpush2.msra.mxu0 0.0
      %3515 = vmatprep.subr.mxu0 0.0
      %3516 = vmatpush2.msra.mxu0 0.0
      %3517 = vmatprep.subr.mxu0 0.0
      %3518 = vmatpush2.msra.mxu0 0.0
      %3519 = vmatprep.subr.mxu0 0.0
      %3520 = vmatpush2.msra.mxu0 0.0
      %3521 = vmatprep.subr.mxu0 0.0
      %3522 = vmatpush2.msra.mxu0 0.0
      %3523 = vmatprep.subr.mxu0 0.0
      %3524 = vmatpush2.msra.mxu0 0.0
      %3525 = vmatprep.subr.mxu0 0.0
      %3526 = vmatpush2.msra.mxu0 0.0
      %3527 = vmatprep.subr.mxu0 0.0
      %3528 = vmatpush2.msra.mxu0 0.0
      %3529 = vmatprep.subr.mxu0 0.0
      %3530 = vmatpush2.msra.mxu0 0.0
      %3531 = vmatprep.subr.mxu0 0.0
      %3532 = vmatpush2.msra.mxu0 0.0
      %3533 = vmatprep.subr.mxu0 0.0
      %3534 = vmatpush2.msra.mxu0 0.0
      %3535 = vmatprep.subr.mxu0 0.0
      %3536 = vmatpush2.msra.mxu0 0.0
      %3537 = vmatprep.mubr.f32.mxu0 0.0
      %3538 = vmatmul.mubr.f32.gmra.mxu0 %v3174
      %v3539 = vpop.f32.mrf.mxu0
      %v3540 = vadd.f32 0.0, %v3539
      %v3541 = vpop.f32.mrf.mxu0
      %3542 = vdwg.mxu0
      %3543 = vmatprep.subr.mxu0 0.0
      %3544 = vmatpush1.msra.mxu0 0.0
      %3545 = vmatprep.subr.mxu0 0.0
      %3546 = vmatpush1.msra.mxu0 0.0
      %3547 = vmatprep.subr.mxu0 0.0
      %3548 = vmatpush1.msra.mxu0 0.0
      %3549 = vmatprep.subr.mxu0 0.0
      %3550 = vmatpush1.msra.mxu0 0.0
      %3551 = vmatprep.subr.mxu0 0.0
      %3552 = vmatpush1.msra.mxu0 0.0
      %3553 = vmatprep.subr.mxu0 0.0
      %3554 = vmatpush1.msra.mxu0 0.0
      %3555 = vmatprep.subr.mxu0 0.0
      %3556 = vmatpush1.msra.mxu0 0.0
      %3557 = vmatprep.subr.mxu0 0.0
      %3558 = vmatpush1.msra.mxu0 0.0
      %3559 = vmatprep.subr.mxu0 0.0
      %3560 = vmatpush1.msra.mxu0 0.0
      %3561 = vmatprep.subr.mxu0 0.0
      %3562 = vmatpush1.msra.mxu0 0.0
      %3563 = vmatprep.subr.mxu0 0.0
      %3564 = vmatpush1.msra.mxu0 0.0
      %3565 = vmatprep.subr.mxu0 0.0
      %3566 = vmatpush1.msra.mxu0 0.0
      %3567 = vmatprep.subr.mxu0 0.0
      %3568 = vmatpush1.msra.mxu0 0.0
      %3569 = vmatprep.subr.mxu0 0.0
      %3570 = vmatpush1.msra.mxu0 0.0
      %3571 = vmatprep.subr.mxu0 0.0
      %3572 = vmatpush1.msra.mxu0 %v3472
      %3573 = vmatprep.subr.mxu0 0.0
      %3574 = vmatpush1.msra.mxu0 %v3471
      %3575 = vmatprep.subr.mxu0 0.0
      %3576 = vmatpush2.msra.mxu0 0.0
      %3577 = vmatprep.subr.mxu0 0.0
      %3578 = vmatpush2.msra.mxu0 0.0
      %3579 = vmatprep.subr.mxu0 0.0
      %3580 = vmatpush2.msra.mxu0 0.0
      %3581 = vmatprep.subr.mxu0 0.0
      %3582 = vmatpush2.msra.mxu0 0.0
      %3583 = vmatprep.subr.mxu0 0.0
      %3584 = vmatpush2.msra.mxu0 0.0
      %3585 = vmatprep.subr.mxu0 0.0
      %3586 = vmatpush2.msra.mxu0 0.0
      %3587 = vmatprep.subr.mxu0 0.0
      %3588 = vmatpush2.msra.mxu0 0.0
      %3589 = vmatprep.subr.mxu0 0.0
      %3590 = vmatpush2.msra.mxu0 0.0
      %3591 = vmatprep.subr.mxu0 0.0
      %3592 = vmatpush2.msra.mxu0 0.0
      %3593 = vmatprep.subr.mxu0 0.0
      %3594 = vmatpush2.msra.mxu0 0.0
      %3595 = vmatprep.subr.mxu0 0.0
      %3596 = vmatpush2.msra.mxu0 0.0
      %3597 = vmatprep.subr.mxu0 0.0
      %3598 = vmatpush2.msra.mxu0 0.0
      %3599 = vmatprep.subr.mxu0 0.0
      %3600 = vmatpush2.msra.mxu0 0.0
      %3601 = vmatprep.subr.mxu0 0.0
      %3602 = vmatpush2.msra.mxu0 0.0
      %3603 = vmatprep.subr.mxu0 0.0
      %3604 = vmatpush2.msra.mxu0 0.0
      %3605 = vmatprep.subr.mxu0 0.0
      %3606 = vmatpush2.msra.mxu0 0.0
      %3607 = vmatprep.mubr.f32.mxu0 0.0
      %3608 = vmatmul.mubr.f32.gmra.mxu0 %v3248
      %v3609 = vpop.f32.mrf.mxu0
      %v3610 = vadd.f32 0.0, %v3609
      %v3611 = vpop.f32.mrf.mxu0
      %3612 = vdwg.mxu0
      %v3613 = vmax.f32 %v3540, %v3610
      %3615 = vrot.lane.b32.xlu0 %v3613, 64
      %v3616 = vpop.permute.xlu0 %3615
      %vm3618 = vcmask 523264
      %v3619 = vsel %vm3618, %v3320, %v3616
      %3620 = vst [vmem:[%s419] sm:$0xff] %v3619
      %p3621 = scmp.lt.s32.totalorder %s24, 1
      %s3622 = scalar_select %p3621, %s24, 1
      %s3623 = smul.addr %s3622, 8
      %s3624 = scalar_lea.vmem %s11, %s3623
      %p3625 = scmp.lt.s32.totalorder %s24, 1
      %s3626 = scalar_select %p3625, %s24, 1
      %s3627 = smul.addr %s3626, 2
      %s3628 = smul.addr %s3627, 8
      %s3629 = scalar_lea.vmem %s12, %s3628
      // Predicated region
      $region65: #{dense_block_drop_forward.1} parent=63 // pred_check
        %p3630 = pneg %p278
      $region66: #{dense_block_drop_forward.1} parent=63 // pred_check_branch
        %3632 = sbr.rel (%p3630) target = $region68
      $region67: #{dense_block_drop_forward.1} parent=63 // pred_region
        _
      $region68: #{dense_block_drop_forward.1} parent=63 // pred_fallthru
        _
      // Predicated region
      $region69: #{dense_block_drop_forward.1} parent=63 // pred_check
        %p3633 = pneg %p304
      $region70: #{dense_block_drop_forward.1} parent=63 // pred_check_branch
        %3635 = sbr.rel (%p3633) target = $region72
      $region71: #{dense_block_drop_forward.1} parent=63 // pred_region
        _
      $region72: #{dense_block_drop_forward.1} parent=63 // pred_fallthru
        _
    $region64: #{dense_block_drop_forward.1} parent=5 // pred_fallthru
      _
    %p3636 = scmp.le.s32.totalorder 2, %s19
    // Predicated region
    $region73: #{dense_block_drop_forward.1} parent=5 // pred_check
      %p3637 = pneg %p3636
    $region74: #{dense_block_drop_forward.1} parent=5 // pred_check_branch
      %3639 = sbr.rel (%p3637) target = $region76
    $region75: #{dense_block_drop_forward.1} parent=5 // pred_region
      %s3640 = ssub.s32 %s19, 2
      // Predicated region
      $region77: #{dense_block_drop_forward.1} parent=75 // pred_check
        %p3641 = pneg %p284
      $region78: #{dense_block_drop_forward.1} parent=75 // pred_check_branch
        %3643 = sbr.rel (%p3641) target = $region80
      $region79: #{dense_block_drop_forward.1} parent=75 // pred_region
        %p3644 = scmp.lt.s32.totalorder %s25, 1
        %s3645 = scalar_select %p3644, %s25, 1
        %s3646 = smul.addr %s3645, 8
        %s3647 = scalar_lea.vmem %s11, %s3646
      $region80: #{dense_block_drop_forward.1} parent=75 // pred_fallthru
        _
      // Predicated region
      $region81: #{dense_block_drop_forward.1} parent=75 // pred_check
        %p3648 = pneg %p310
      $region82: #{dense_block_drop_forward.1} parent=75 // pred_check_branch
        %3650 = sbr.rel (%p3648) target = $region84
      $region83: #{dense_block_drop_forward.1} parent=75 // pred_region
        %p3651 = scmp.lt.s32.totalorder %s25, 1
        %s3652 = scalar_select %p3651, %s25, 1
        %s3653 = smul.addr %s3652, 2
        %s3654 = smul.addr %s3653, 8
        %s3655 = scalar_lea.vmem %s12, %s3654
      $region84: #{dense_block_drop_forward.1} parent=75 // pred_fallthru
        _
    $region76: #{dense_block_drop_forward.1} parent=5 // pred_fallthru
      _
  $region6: #{dense_block_drop_forward.1} parent=0 // loop_footer
    %s23 = sadd.s32 1, %s19
  $region7: #{dense_block_drop_forward.1} parent=0 // loop_footer_branch
    %18 = sbr.rel target = $region3
  $region8: #{dense_block_drop_forward.1} parent=0 // loop_exit
    _

</llo_original>
